<compile_context>
chip_gen: v6e
topology: v6e:2x2x1
jax: 0.10.0
libtpu: 0.0.40
codegen_flags: <defaults>
</compile_context>

<pallas_src>
import functools
import jax
import jax.numpy as jnp
from jax import lax
from jax.experimental import pallas as pl
from jax.experimental.pallas import tpu as pltpu

EPS_BN = 1e-5
NEG_BIG = -1e30          # finite "-inf": NaN-safe for fully-padded rows
_CPARAMS = pltpu.CompilerParams(dimension_semantics=("arbitrary",))


def _full_spec(shape):
    """Whole-array block (grid=(1,)) -> block dims equal full array dims."""
    nd = len(shape)
    return pl.BlockSpec(shape, lambda *_: (0,) * nd)


# ------------------------------ fused ESIM kernel ------------------------------
def _esim_kernel(x_ref, m1_ref, m2_ref,
                 wih1_ref, whh1_ref, b1_ref,
                 wih2_ref, whh2_ref, b2_ref,
                 bn1s_ref, bn1t_ref, fw1_ref, fb1_ref,
                 bn2s_ref, bn2t_ref, fw2_ref, fb2_ref,
                 out_ref,
                 gates_ref, o_ref, qc_ref, c_ref):
    # x_ref     : (L*NP, E)    time-major stacked input (row = l*NP + n; n<B sent1,
    #                           B<=n<2B sent2, rest zero padding)
    # m1/m2_ref : (B, L)       additive masks (0 or NEG_BIG)
    # gates_ref : (L*NP, 8H)   fused fwd|bwd gate projections (reused for both layers)
    # o_ref     : (L, NP, 2H)  BiLSTM1 output (time-major)
    # qc_ref    : (L, NP, 8H)  combined features (time-major)
    # c_ref     : (L, NP, 2H)  BiLSTM2 output (time-major)
    # out_ref   : (B, 128)     padded logits (real logits in lanes [:2])
    L, NP, H2 = o_ref.shape
    H = H2 // 2
    G = 8 * H                                  # fused gate width (both directions)
    B = m1_ref.shape[0]

    # -------- fused bidirectional LSTM layer (shared for layer 1 and layer 2) --------
    def run_bilstm(x2d_bf16, wih_ref, whh_ref, bias_ref, out_scr):
        # hoisted input projection: ONE wide matmul + ONE wide store
        gates_ref[...] = (
            jnp.dot(x2d_bf16, wih_ref[...], preferred_element_type=jnp.float32)
            + bias_ref[...])                                       # (L*NP, 8H) f32
        whh_bd = whh_ref[...]                                      # (2H, 8H) bf16 blockdiag

        def step(t, carry):
            h_cat, cf, cb = carry                                  # (NP,2H),(NP,H),(NP,H)
            rt = L - 1 - t                                         # bwd time reversal
            # single block-diagonal recurrent matmul for both directions
            rec = jnp.dot(h_cat.astype(jnp.bfloat16), whh_bd,
                          preferred_element_type=jnp.float32)      # (NP, 8H)
            rf = pl.multiple_of(t * NP, NP)
            rb = pl.multiple_of(rt * NP, NP)
            gf = gates_ref[pl.ds(rf, NP), 0:4 * H] + rec[:, 0:4 * H]
            gb = gates_ref[pl.ds(rb, NP), 4 * H:8 * H] + rec[:, 4 * H:8 * H]
            g = jnp.concatenate([gf, gb], axis=-1)                 # 128-lane aligned
            sg = jax.nn.sigmoid(g)                                 # one EUP pass (8H lanes)
            tg = jnp.tanh(g)                                       # one EUP pass
            # PyTorch gate order per direction: i, f, g, o
            cf_n = sg[:, H:2 * H] * cf + sg[:, 0:H] * tg[:, 2 * H:3 * H]
            hf_n = sg[:, 3 * H:4 * H] * jnp.tanh(cf_n)
            cb_n = sg[:, 5 * H:6 * H] * cb + sg[:, 4 * H:5 * H] * tg[:, 6 * H:7 * H]
            hb_n = sg[:, 7 * H:8 * H] * jnp.tanh(cb_n)
            # store directly from the loop (no hf/hb scratch, no epilogue concat)
            out_scr[t, :, 0:H] = hf_n
            out_scr[rt, :, H:2 * H] = hb_n
            return jnp.concatenate([hf_n, hb_n], axis=-1), cf_n, cb_n

        z2 = jnp.zeros((NP, 2 * H), jnp.float32)
        z1 = jnp.zeros((NP, H), jnp.float32)
        lax.fori_loop(0, L, step, (z2, z1, z1), unroll=(L if L <= 16 else 8))

    # ------------------------------- layer 1 -------------------------------
    run_bilstm(x_ref[...].astype(jnp.bfloat16), wih1_ref, whh1_ref, b1_ref, o_ref)

    # --------------------- soft attention + combine (time-major) ---------------------
    o3 = o_ref[...]                                                # (L, NP, 2H)
    m1 = m1_ref[...]
    m2 = m2_ref[...]

    def softmax_last(s):
        mx = jnp.max(s, axis=-1, keepdims=True)
        e = jnp.exp(s - mx)
        return e * pl.reciprocal(jnp.sum(e, axis=-1, keepdims=True), approx=True)

    # B is tiny and static -> per-example 2-D dots; for large B make this a batched
    # einsum / extra grid axis instead.
    for b in range(B):
        o1b = o3[:, b, :]                                          # (L, 2H) sentence 1
        o2b = o3[:, B + b, :]                                      # (L, 2H) sentence 2
        o1bf = o1b.astype(jnp.bfloat16)
        o2bf = o2b.astype(jnp.bfloat16)
        attn = lax.dot_general(o1bf, o2bf, (((1,), (1,)), ((), ())),
                               preferred_element_type=jnp.float32)  # (L, L)
        w1 = softmax_last(attn + m2[b:b + 1, :])                   # mask over sent2 pos
        w2 = softmax_last(attn.T + m1[b:b + 1, :])                 # reuse attn^T (XLU)
        x1a = jnp.dot(w1.astype(jnp.bfloat16), o2bf, preferred_element_type=jnp.float32)
        x2a = jnp.dot(w2.astype(jnp.bfloat16), o1bf, preferred_element_type=jnp.float32)
        qc_ref[:, b, :] = jnp.concatenate([o1b, x1a, o1b - x1a, o1b * x1a], axis=-1)
        qc_ref[:, B + b, :] = jnp.concatenate([o2b, x2a, o2b - x2a, o2b * x2a], axis=-1)
    if NP > 2 * B:                                                 # keep pad rows finite
        qc_ref[:, 2 * B:NP, :] = jnp.zeros((L, NP - 2 * B, G), jnp.float32)

    # ------------------------------- layer 2 -------------------------------
    qc_bf = qc_ref[...].reshape(L * NP, G).astype(jnp.bfloat16)    # layout-preserving
    run_bilstm(qc_bf, wih2_ref, whh2_ref, b2_ref, c_ref)

    # --------------------------- pooling + FC head ---------------------------
    c3 = c_ref[...]                                                # (L, NP, 2H)
    rep = jnp.concatenate([jnp.mean(c3, axis=0), jnp.max(c3, axis=0)], axis=-1)  # (NP,4H)
    x = jnp.concatenate([rep[0:B], rep[B:2 * B]], axis=-1)         # (B, 8H)
    x = x * bn1s_ref[...] + bn1t_ref[...]                          # BatchNorm1d (eval)
    x = jnp.dot(x.astype(jnp.bfloat16), fw1_ref[...],
                preferred_element_type=jnp.float32) + fb1_ref[...]
    x = jnp.maximum(x, 0.0)                                        # ReLU
    x = x * bn2s_ref[...] + bn2t_ref[...]                          # BatchNorm1d (eval)
    # TODO(synk): Dropout(p=0.5) is identity in eval mode; training-mode dropout not modeled.
    out_ref[...] = (jnp.dot(x.astype(jnp.bfloat16), fw2_ref[...],
                            preferred_element_type=jnp.float32) + fb2_ref[...])


# --------------------------------- parameters ---------------------------------
def init_params(key, embed, hidden):
    H = hidden
    k = 1.0 / float(H) ** 0.5
    keys = jax.random.split(key, 24)

    def u(kk, shape, scale=k):
        return jax.random.uniform(kk, shape, jnp.float32, -scale, scale)

    def lstm_params(ks, din):
        wih_f = u(ks[0], (din, 4 * H))
        whh_f = u(ks[1], (H, 4 * H))
        b_f = u(ks[2], (1, 4 * H)) + u(ks[3], (1, 4 * H))          # b_ih + b_hh
        wih_b = u(ks[4], (din, 4 * H))
        whh_b = u(ks[5], (H, 4 * H))
        b_b = u(ks[6], (1, 4 * H)) + u(ks[7], (1, 4 * H))
        wih = jnp.concatenate([wih_f, wih_b], axis=1)              # (din, 8H)
        whh_bd = (jnp.zeros((2 * H, 8 * H), jnp.float32)           # blockdiag(whh_f, whh_b)
                  .at[0:H, 0:4 * H].set(whh_f)
                  .at[H:2 * H, 4 * H:8 * H].set(whh_b))
        bias = jnp.concatenate([b_f, b_b], axis=1)                 # (1, 8H)
        return {'wih': wih.astype(jnp.bfloat16),
                'whh': whh_bd.astype(jnp.bfloat16),
                'b': bias}

    lstm1 = lstm_params(keys[0:8], embed)
    lstm2 = lstm_params(keys[8:16], H * 8)

    d_in, lin, pad_out = H * 8, 128, 128
    # BatchNorm1d eval with init running stats: gamma=1, beta=0, mean=0, var=1
    bn1_scale = jnp.full((1, d_in), 1.0 / (1.0 + EPS_BN) ** 0.5, jnp.float32)
    bn1_shift = jnp.zeros((1, d_in), jnp.float32)
    bn2_scale = jnp.full((1, lin), 1.0 / (1.0 + EPS_BN) ** 0.5, jnp.float32)
    bn2_shift = jnp.zeros((1, lin), jnp.float32)
    k1 = 1.0 / float(d_in) ** 0.5
    k2 = 1.0 / float(lin) ** 0.5
    # classifier padded to 128 output lanes (zero columns beyond the 2 real logits)
    w2 = jnp.zeros((lin, pad_out), jnp.float32).at[:, :2].set(u(keys[18], (lin, 2), k2))
    b2 = jnp.zeros((1, pad_out), jnp.float32).at[:, :2].set(u(keys[19], (1, 2), k2))
    fc = dict(
        bn1_scale=bn1_scale, bn1_shift=bn1_shift,
        w1=u(keys[16], (d_in, lin), k1).astype(jnp.bfloat16), b1=u(keys[17], (1, lin), k1),
        bn2_scale=bn2_scale, bn2_shift=bn2_shift,
        w2=w2.astype(jnp.bfloat16), b2=b2,
    )
    return dict(lstm1=lstm1, lstm2=lstm2, fc=fc)


# --------------------------------- forward ---------------------------------
def esim_forward(params, sent1, sent2, hidden=32):
    B, L, E = sent1.shape
    H = hidden
    N = 2 * B
    NP = ((N + 7) // 8) * 8                    # stacked batch padded to sublane multiple

    # mask = (sent.sum(-1) == 0); additive large-negative (NaN-safe vs -inf)
    madd1 = jnp.where(jnp.sum(sent1, axis=-1) == 0.0, NEG_BIG, 0.0).astype(jnp.float32)
    madd2 = jnp.where(jnp.sum(sent2, axis=-1) == 0.0, NEG_BIG, 0.0).astype(jnp.float32)

    # stack both sentences along batch (shared lstm weights), pad, go time-major
    xs = jnp.concatenate([sent1, sent2], axis=0).astype(jnp.float32)   # (2B, L, E)
    if NP > N:
        xs = jnp.concatenate([xs, jnp.zeros((NP - N, L, E), jnp.float32)], axis=0)
    x2d = jnp.transpose(xs, (1, 0, 2)).reshape(L * NP, E)              # (L*NP, E)

    p1, p2, fc = params['lstm1'], params['lstm2'], params['fc']
    args = (x2d, madd1, madd2,
            p1['wih'], p1['whh'], p1['b'],
            p2['wih'], p2['whh'], p2['b'],
            fc['bn1_scale'], fc['bn1_shift'], fc['w1'], fc['b1'],
            fc['bn2_scale'], fc['bn2_shift'], fc['w2'], fc['b2'])

    logits_pad = pl.pallas_call(
        _esim_kernel,
        grid=(1,),
        in_specs=[_full_spec(a.shape) for a in args],
        out_specs=_full_spec((B, 128)),
        out_shape=jax.ShapeDtypeStruct((B, 128), jnp.float32),
        scratch_shapes=[
            pltpu.VMEM((L * NP, 8 * H), jnp.float32),   # fused gates (shared L1/L2)
            pltpu.VMEM((L, NP, 2 * H), jnp.float32),    # BiLSTM1 output
            pltpu.VMEM((L, NP, 8 * H), jnp.float32),    # combined features
            pltpu.VMEM((L, NP, 2 * H), jnp.float32),    # BiLSTM2 output
        ],
        compiler_params=_CPARAMS,
    )(*args)
    return logits_pad[:, :2]                                           # (B, 2) real logits


if __name__ == "__main__":
    B, L, EMBED, HIDDEN = 2, 8, 64, 32   # small-shape instantiation (embed_size=64)
    key = jax.random.PRNGKey(0)
    kp, ka, kb = jax.random.split(key, 3)
    params = init_params(kp, EMBED, HIDDEN)
    sent1 = jax.random.normal(ka, (B, L, EMBED), jnp.float32)
    sent2 = jax.random.normal(kb, (B, L, EMBED), jnp.float32)

    fwd = jax.jit(functools.partial(esim_forward, hidden=HIDDEN))
    out = fwd(params, sent1, sent2)
    jax.block_until_ready(out)
    assert out.shape == (B, 2) and out.dtype == jnp.float32
    assert bool(jnp.all(jnp.isfinite(out)))
    print("KERNEL_OK")
</pallas_src>

<mosaic_0001>
module attributes {stable_mosaic.version = 11 : i64} {
  func.func @_esim_kernel(%arg0: i32, %arg1: memref<64x64xf32, #tpu.memory_space<vmem>>, %arg2: memref<2x8xf32, #tpu.memory_space<vmem>>, %arg3: memref<2x8xf32, #tpu.memory_space<vmem>>, %arg4: memref<64x256xbf16, #tpu.memory_space<vmem>>, %arg5: memref<64x256xbf16, #tpu.memory_space<vmem>>, %arg6: memref<1x256xf32, #tpu.memory_space<vmem>>, %arg7: memref<256x256xbf16, #tpu.memory_space<vmem>>, %arg8: memref<64x256xbf16, #tpu.memory_space<vmem>>, %arg9: memref<1x256xf32, #tpu.memory_space<vmem>>, %arg10: memref<1x256xf32, #tpu.memory_space<vmem>>, %arg11: memref<1x256xf32, #tpu.memory_space<vmem>>, %arg12: memref<256x128xbf16, #tpu.memory_space<vmem>>, %arg13: memref<1x128xf32, #tpu.memory_space<vmem>>, %arg14: memref<1x128xf32, #tpu.memory_space<vmem>>, %arg15: memref<1x128xf32, #tpu.memory_space<vmem>>, %arg16: memref<128x128xbf16, #tpu.memory_space<vmem>>, %arg17: memref<1x128xf32, #tpu.memory_space<vmem>>, %arg18: memref<2x128xf32, #tpu.memory_space<vmem>>, %arg19: memref<64x256xf32, #tpu.memory_space<vmem>>, %arg20: memref<8x8x64xf32, #tpu.memory_space<vmem>>, %arg21: memref<8x8x256xf32, #tpu.memory_space<vmem>>, %arg22: memref<8x8x64xf32, #tpu.memory_space<vmem>>) attributes {dimension_semantics = [#tpu.dimension_semantics<arbitrary>], iteration_bounds = array<i64: 1>, scalar_prefetch = 0 : i64, scratch_operands = 4 : i64, tpu.core_type = #tpu.core_type<tc>, window_params = [{pipeline_mode = #tpu.pipeline_mode<synchronous>, transform_indices = @transform_0, window_bounds = array<i64: 64, 64>}, {pipeline_mode = #tpu.pipeline_mode<synchronous>, transform_indices = @transform_1, window_bounds = array<i64: 2, 8>}, {pipeline_mode = #tpu.pipeline_mode<synchronous>, transform_indices = @transform_2, window_bounds = array<i64: 2, 8>}, {pipeline_mode = #tpu.pipeline_mode<synchronous>, transform_indices = @transform_3, window_bounds = array<i64: 64, 256>}, {pipeline_mode = #tpu.pipeline_mode<synchronous>, transform_indices = @transform_4, window_bounds = array<i64: 64, 256>}, {pipeline_mode = #tpu.pipeline_mode<synchronous>, transform_indices = @transform_5, window_bounds = array<i64: 1, 256>}, {pipeline_mode = #tpu.pipeline_mode<synchronous>, transform_indices = @transform_6, window_bounds = array<i64: 256, 256>}, {pipeline_mode = #tpu.pipeline_mode<synchronous>, transform_indices = @transform_7, window_bounds = array<i64: 64, 256>}, {pipeline_mode = #tpu.pipeline_mode<synchronous>, transform_indices = @transform_8, window_bounds = array<i64: 1, 256>}, {pipeline_mode = #tpu.pipeline_mode<synchronous>, transform_indices = @transform_9, window_bounds = array<i64: 1, 256>}, {pipeline_mode = #tpu.pipeline_mode<synchronous>, transform_indices = @transform_10, window_bounds = array<i64: 1, 256>}, {pipeline_mode = #tpu.pipeline_mode<synchronous>, transform_indices = @transform_11, window_bounds = array<i64: 256, 128>}, {pipeline_mode = #tpu.pipeline_mode<synchronous>, transform_indices = @transform_12, window_bounds = array<i64: 1, 128>}, {pipeline_mode = #tpu.pipeline_mode<synchronous>, transform_indices = @transform_13, window_bounds = array<i64: 1, 128>}, {pipeline_mode = #tpu.pipeline_mode<synchronous>, transform_indices = @transform_14, window_bounds = array<i64: 1, 128>}, {pipeline_mode = #tpu.pipeline_mode<synchronous>, transform_indices = @transform_15, window_bounds = array<i64: 128, 128>}, {pipeline_mode = #tpu.pipeline_mode<synchronous>, transform_indices = @transform_16, window_bounds = array<i64: 1, 128>}, {pipeline_mode = #tpu.pipeline_mode<synchronous>, transform_indices = @transform_17, window_bounds = array<i64: 2, 128>}]} {
    %c0 = arith.constant 0 : index
    %c0_0 = arith.constant 0 : index
    %0 = vector.load %arg1[%c0, %c0_0] : memref<64x64xf32, #tpu.memory_space<vmem>>, vector<64x64xf32>
    %1 = arith.truncf %0 : vector<64x64xf32> to vector<64x64xbf16>
    %c0_1 = arith.constant 0 : index
    %c0_2 = arith.constant 0 : index
    %2 = vector.load %arg4[%c0_1, %c0_2] : memref<64x256xbf16, #tpu.memory_space<vmem>>, vector<64x256xbf16>
    %cst = arith.constant dense<0.000000e+00> : vector<64x256xf32>
    %3 = tpu.matmul %1, %2, %cst {dimension_numbers = #tpu.dot_dimension_numbers<[1], [0], [0], [1], [0, 0, 1, 1], [], []>} : vector<64x64xbf16>, vector<64x256xbf16>, vector<64x256xf32> -> vector<64x256xf32>
    %c0_3 = arith.constant 0 : index
    %c0_4 = arith.constant 0 : index
    %4 = vector.load %arg6[%c0_3, %c0_4] : memref<1x256xf32, #tpu.memory_space<vmem>>, vector<1x256xf32>
    %5 = vector.broadcast %4 : vector<1x256xf32> to vector<64x256xf32>
    %6 = arith.addf %3, %5 : vector<64x256xf32>
    %c0_5 = arith.constant 0 : index
    %c0_6 = arith.constant 0 : index
    %7 = vector.load %arg19[%c0_5, %c0_6] : memref<64x256xf32, #tpu.memory_space<vmem>>, vector<64x256xf32>
    tpu.vector_store %arg19[%c0_5, %c0_6], %6 {strides = array<i32>} : memref<64x256xf32, #tpu.memory_space<vmem>>, vector<64x256xf32>,
    %c0_7 = arith.constant 0 : index
    %c0_8 = arith.constant 0 : index
    %8 = vector.load %arg5[%c0_7, %c0_8] : memref<64x256xbf16, #tpu.memory_space<vmem>>, vector<64x256xbf16>
    %cst_9 = arith.constant 0.000000e+00 : f32
    %9 = vector.broadcast %cst_9 : f32 to vector<8x64xf32>
    %cst_10 = arith.constant 0.000000e+00 : f32
    %10 = vector.broadcast %cst_10 : f32 to vector<8x32xf32>
    %c0_i32 = arith.constant 0 : i32
    %c7_i32 = arith.constant 7 : i32
    %11 = arith.subi %c7_i32, %c0_i32 : i32
    %12 = arith.truncf %9 : vector<8x64xf32> to vector<8x64xbf16>
    %cst_11 = arith.constant dense<0.000000e+00> : vector<8x256xf32>
    %13 = tpu.matmul %12, %8, %cst_11 {dimension_numbers = #tpu.dot_dimension_numbers<[1], [0], [0], [1], [0, 0, 1, 1], [], []>} : vector<8x64xbf16>, vector<64x256xbf16>, vector<8x256xf32> -> vector<8x256xf32>
    %c8_i32 = arith.constant 8 : i32
    %14 = arith.muli %c0_i32, %c8_i32 : i32
    %15 = tpu.assume_multiple %14, 8 : i32
    %c8_i32_12 = arith.constant 8 : i32
    %16 = arith.muli %11, %c8_i32_12 : i32
    %17 = tpu.assume_multiple %16, 8 : i32
    %18 = arith.index_cast %15 : i32 to index
    %c0_13 = arith.constant 0 : index
    %19 = vector.load %arg19[%18, %c0_13] : memref<64x256xf32, #tpu.memory_space<vmem>>, vector<8x128xf32>
    %20 = vector.extract_strided_slice %13 {offsets = [0, 0], sizes = [8, 128], strides = [1, 1]} : vector<8x256xf32> to vector<8x128xf32>
    %21 = arith.addf %19, %20 : vector<8x128xf32>
    %22 = arith.index_cast %17 : i32 to index
    %c128 = arith.constant 128 : index
    %23 = vector.load %arg19[%22, %c128] : memref<64x256xf32, #tpu.memory_space<vmem>>, vector<8x128xf32>
    %24 = vector.extract_strided_slice %13 {offsets = [0, 128], sizes = [8, 128], strides = [1, 1]} : vector<8x256xf32> to vector<8x128xf32>
    %25 = arith.addf %23, %24 : vector<8x128xf32>
    %26 = tpu.concatenate %21, %25 in 1 : vector<8x128xf32>, vector<8x128xf32> -> vector<8x256xf32>
    %27 = arith.negf %26 : vector<8x256xf32>
    %28 = math.exp %27 : vector<8x256xf32>
    %cst_14 = arith.constant 1.000000e+00 : f32
    %29 = vector.broadcast %cst_14 : f32 to vector<8x256xf32>
    %30 = arith.addf %29, %28 : vector<8x256xf32>
    %31 = arith.divf %29, %30 : vector<8x256xf32>
    %32 = math.tanh %26 : vector<8x256xf32>
    %33 = vector.extract_strided_slice %31 {offsets = [0, 32], sizes = [8, 32], strides = [1, 1]} : vector<8x256xf32> to vector<8x32xf32>
    %34 = arith.mulf %33, %10 : vector<8x32xf32>
    %35 = vector.extract_strided_slice %31 {offsets = [0, 0], sizes = [8, 32], strides = [1, 1]} : vector<8x256xf32> to vector<8x32xf32>
    %36 = vector.extract_strided_slice %32 {offsets = [0, 64], sizes = [8, 32], strides = [1, 1]} : vector<8x256xf32> to vector<8x32xf32>
    %37 = arith.mulf %35, %36 : vector<8x32xf32>
    %38 = arith.addf %34, %37 : vector<8x32xf32>
    %39 = vector.extract_strided_slice %31 {offsets = [0, 96], sizes = [8, 32], strides = [1, 1]} : vector<8x256xf32> to vector<8x32xf32>
    %40 = math.tanh %38 : vector<8x32xf32>
    %41 = arith.mulf %39, %40 : vector<8x32xf32>
    %42 = vector.extract_strided_slice %31 {offsets = [0, 160], sizes = [8, 32], strides = [1, 1]} : vector<8x256xf32> to vector<8x32xf32>
    %43 = arith.mulf %42, %10 : vector<8x32xf32>
    %44 = vector.extract_strided_slice %31 {offsets = [0, 128], sizes = [8, 32], strides = [1, 1]} : vector<8x256xf32> to vector<8x32xf32>
    %45 = vector.extract_strided_slice %32 {offsets = [0, 192], sizes = [8, 32], strides = [1, 1]} : vector<8x256xf32> to vector<8x32xf32>
    %46 = arith.mulf %44, %45 : vector<8x32xf32>
    %47 = arith.addf %43, %46 : vector<8x32xf32>
    %48 = vector.extract_strided_slice %31 {offsets = [0, 224], sizes = [8, 32], strides = [1, 1]} : vector<8x256xf32> to vector<8x32xf32>
    %49 = math.tanh %47 : vector<8x32xf32>
    %50 = arith.mulf %48, %49 : vector<8x32xf32>
    %51 = arith.index_cast %c0_i32 : i32 to index
    %c0_15 = arith.constant 0 : index
    %c0_16 = arith.constant 0 : index
    %52 = vector.load %arg20[%51, %c0_15, %c0_16] : memref<8x8x64xf32, #tpu.memory_space<vmem>>, vector<1x8x32xf32>
    %53 = vector.shape_cast %52 : vector<1x8x32xf32> to vector<8x32xf32>
    %54 = vector.shape_cast %41 : vector<8x32xf32> to vector<1x8x32xf32>
    tpu.vector_store %arg20[%51, %c0_15, %c0_16], %54 {strides = array<i32>} : memref<8x8x64xf32, #tpu.memory_space<vmem>>, vector<1x8x32xf32>,
    %55 = arith.index_cast %11 : i32 to index
    %c0_17 = arith.constant 0 : index
    %c32 = arith.constant 32 : index
    %56 = vector.load %arg20[%55, %c0_17, %c32] : memref<8x8x64xf32, #tpu.memory_space<vmem>>, vector<1x8x32xf32>
    %57 = vector.shape_cast %56 : vector<1x8x32xf32> to vector<8x32xf32>
    %58 = vector.shape_cast %50 : vector<8x32xf32> to vector<1x8x32xf32>
    tpu.vector_store %arg20[%55, %c0_17, %c32], %58 {strides = array<i32>} : memref<8x8x64xf32, #tpu.memory_space<vmem>>, vector<1x8x32xf32>,
    %59 = tpu.concatenate %41, %50 in 1 : vector<8x32xf32>, vector<8x32xf32> -> vector<8x64xf32>
    %c1_i32 = arith.constant 1 : i32
    %c7_i32_18 = arith.constant 7 : i32
    %60 = arith.subi %c7_i32_18, %c1_i32 : i32
    %61 = arith.truncf %59 : vector<8x64xf32> to vector<8x64xbf16>
    %cst_19 = arith.constant dense<0.000000e+00> : vector<8x256xf32>
    %62 = tpu.matmul %61, %8, %cst_19 {dimension_numbers = #tpu.dot_dimension_numbers<[1], [0], [0], [1], [0, 0, 1, 1], [], []>} : vector<8x64xbf16>, vector<64x256xbf16>, vector<8x256xf32> -> vector<8x256xf32>
    %c8_i32_20 = arith.constant 8 : i32
    %63 = arith.muli %c1_i32, %c8_i32_20 : i32
    %64 = tpu.assume_multiple %63, 8 : i32
    %c8_i32_21 = arith.constant 8 : i32
    %65 = arith.muli %60, %c8_i32_21 : i32
    %66 = tpu.assume_multiple %65, 8 : i32
    %67 = arith.index_cast %64 : i32 to index
    %c0_22 = arith.constant 0 : index
    %68 = vector.load %arg19[%67, %c0_22] : memref<64x256xf32, #tpu.memory_space<vmem>>, vector<8x128xf32>
    %69 = vector.extract_strided_slice %62 {offsets = [0, 0], sizes = [8, 128], strides = [1, 1]} : vector<8x256xf32> to vector<8x128xf32>
    %70 = arith.addf %68, %69 : vector<8x128xf32>
    %71 = arith.index_cast %66 : i32 to index
    %c128_23 = arith.constant 128 : index
    %72 = vector.load %arg19[%71, %c128_23] : memref<64x256xf32, #tpu.memory_space<vmem>>, vector<8x128xf32>
    %73 = vector.extract_strided_slice %62 {offsets = [0, 128], sizes = [8, 128], strides = [1, 1]} : vector<8x256xf32> to vector<8x128xf32>
    %74 = arith.addf %72, %73 : vector<8x128xf32>
    %75 = tpu.concatenate %70, %74 in 1 : vector<8x128xf32>, vector<8x128xf32> -> vector<8x256xf32>
    %76 = arith.negf %75 : vector<8x256xf32>
    %77 = math.exp %76 : vector<8x256xf32>
    %cst_24 = arith.constant 1.000000e+00 : f32
    %78 = vector.broadcast %cst_24 : f32 to vector<8x256xf32>
    %79 = arith.addf %78, %77 : vector<8x256xf32>
    %80 = arith.divf %78, %79 : vector<8x256xf32>
    %81 = math.tanh %75 : vector<8x256xf32>
    %82 = vector.extract_strided_slice %80 {offsets = [0, 32], sizes = [8, 32], strides = [1, 1]} : vector<8x256xf32> to vector<8x32xf32>
    %83 = arith.mulf %82, %38 : vector<8x32xf32>
    %84 = vector.extract_strided_slice %80 {offsets = [0, 0], sizes = [8, 32], strides = [1, 1]} : vector<8x256xf32> to vector<8x32xf32>
    %85 = vector.extract_strided_slice %81 {offsets = [0, 64], sizes = [8, 32], strides = [1, 1]} : vector<8x256xf32> to vector<8x32xf32>
    %86 = arith.mulf %84, %85 : vector<8x32xf32>
    %87 = arith.addf %83, %86 : vector<8x32xf32>
    %88 = vector.extract_strided_slice %80 {offsets = [0, 96], sizes = [8, 32], strides = [1, 1]} : vector<8x256xf32> to vector<8x32xf32>
    %89 = math.tanh %87 : vector<8x32xf32>
    %90 = arith.mulf %88, %89 : vector<8x32xf32>
    %91 = vector.extract_strided_slice %80 {offsets = [0, 160], sizes = [8, 32], strides = [1, 1]} : vector<8x256xf32> to vector<8x32xf32>
    %92 = arith.mulf %91, %47 : vector<8x32xf32>
    %93 = vector.extract_strided_slice %80 {offsets = [0, 128], sizes = [8, 32], strides = [1, 1]} : vector<8x256xf32> to vector<8x32xf32>
    %94 = vector.extract_strided_slice %81 {offsets = [0, 192], sizes = [8, 32], strides = [1, 1]} : vector<8x256xf32> to vector<8x32xf32>
    %95 = arith.mulf %93, %94 : vector<8x32xf32>
    %96 = arith.addf %92, %95 : vector<8x32xf32>
    %97 = vector.extract_strided_slice %80 {offsets = [0, 224], sizes = [8, 32], strides = [1, 1]} : vector<8x256xf32> to vector<8x32xf32>
    %98 = math.tanh %96 : vector<8x32xf32>
    %99 = arith.mulf %97, %98 : vector<8x32xf32>
    %100 = arith.index_cast %c1_i32 : i32 to index
    %c0_25 = arith.constant 0 : index
    %c0_26 = arith.constant 0 : index
    %101 = vector.load %arg20[%100, %c0_25, %c0_26] : memref<8x8x64xf32, #tpu.memory_space<vmem>>, vector<1x8x32xf32>
    %102 = vector.shape_cast %101 : vector<1x8x32xf32> to vector<8x32xf32>
    %103 = vector.shape_cast %90 : vector<8x32xf32> to vector<1x8x32xf32>
    tpu.vector_store %arg20[%100, %c0_25, %c0_26], %103 {strides = array<i32>} : memref<8x8x64xf32, #tpu.memory_space<vmem>>, vector<1x8x32xf32>,
    %104 = arith.index_cast %60 : i32 to index
    %c0_27 = arith.constant 0 : index
    %c32_28 = arith.constant 32 : index
    %105 = vector.load %arg20[%104, %c0_27, %c32_28] : memref<8x8x64xf32, #tpu.memory_space<vmem>>, vector<1x8x32xf32>
    %106 = vector.shape_cast %105 : vector<1x8x32xf32> to vector<8x32xf32>
    %107 = vector.shape_cast %99 : vector<8x32xf32> to vector<1x8x32xf32>
    tpu.vector_store %arg20[%104, %c0_27, %c32_28], %107 {strides = array<i32>} : memref<8x8x64xf32, #tpu.memory_space<vmem>>, vector<1x8x32xf32>,
    %108 = tpu.concatenate %90, %99 in 1 : vector<8x32xf32>, vector<8x32xf32> -> vector<8x64xf32>
    %c2_i32 = arith.constant 2 : i32
    %c7_i32_29 = arith.constant 7 : i32
    %109 = arith.subi %c7_i32_29, %c2_i32 : i32
    %110 = arith.truncf %108 : vector<8x64xf32> to vector<8x64xbf16>
    %cst_30 = arith.constant dense<0.000000e+00> : vector<8x256xf32>
    %111 = tpu.matmul %110, %8, %cst_30 {dimension_numbers = #tpu.dot_dimension_numbers<[1], [0], [0], [1], [0, 0, 1, 1], [], []>} : vector<8x64xbf16>, vector<64x256xbf16>, vector<8x256xf32> -> vector<8x256xf32>
    %c8_i32_31 = arith.constant 8 : i32
    %112 = arith.muli %c2_i32, %c8_i32_31 : i32
    %113 = tpu.assume_multiple %112, 8 : i32
    %c8_i32_32 = arith.constant 8 : i32
    %114 = arith.muli %109, %c8_i32_32 : i32
    %115 = tpu.assume_multiple %114, 8 : i32
    %116 = arith.index_cast %113 : i32 to index
    %c0_33 = arith.constant 0 : index
    %117 = vector.load %arg19[%116, %c0_33] : memref<64x256xf32, #tpu.memory_space<vmem>>, vector<8x128xf32>
    %118 = vector.extract_strided_slice %111 {offsets = [0, 0], sizes = [8, 128], strides = [1, 1]} : vector<8x256xf32> to vector<8x128xf32>
    %119 = arith.addf %117, %118 : vector<8x128xf32>
    %120 = arith.index_cast %115 : i32 to index
    %c128_34 = arith.constant 128 : index
    %121 = vector.load %arg19[%120, %c128_34] : memref<64x256xf32, #tpu.memory_space<vmem>>, vector<8x128xf32>
    %122 = vector.extract_strided_slice %111 {offsets = [0, 128], sizes = [8, 128], strides = [1, 1]} : vector<8x256xf32> to vector<8x128xf32>
    %123 = arith.addf %121, %122 : vector<8x128xf32>
    %124 = tpu.concatenate %119, %123 in 1 : vector<8x128xf32>, vector<8x128xf32> -> vector<8x256xf32>
    %125 = arith.negf %124 : vector<8x256xf32>
    %126 = math.exp %125 : vector<8x256xf32>
    %cst_35 = arith.constant 1.000000e+00 : f32
    %127 = vector.broadcast %cst_35 : f32 to vector<8x256xf32>
    %128 = arith.addf %127, %126 : vector<8x256xf32>
    %129 = arith.divf %127, %128 : vector<8x256xf32>
    %130 = math.tanh %124 : vector<8x256xf32>
    %131 = vector.extract_strided_slice %129 {offsets = [0, 32], sizes = [8, 32], strides = [1, 1]} : vector<8x256xf32> to vector<8x32xf32>
    %132 = arith.mulf %131, %87 : vector<8x32xf32>
    %133 = vector.extract_strided_slice %129 {offsets = [0, 0], sizes = [8, 32], strides = [1, 1]} : vector<8x256xf32> to vector<8x32xf32>
    %134 = vector.extract_strided_slice %130 {offsets = [0, 64], sizes = [8, 32], strides = [1, 1]} : vector<8x256xf32> to vector<8x32xf32>
    %135 = arith.mulf %133, %134 : vector<8x32xf32>
    %136 = arith.addf %132, %135 : vector<8x32xf32>
    %137 = vector.extract_strided_slice %129 {offsets = [0, 96], sizes = [8, 32], strides = [1, 1]} : vector<8x256xf32> to vector<8x32xf32>
    %138 = math.tanh %136 : vector<8x32xf32>
    %139 = arith.mulf %137, %138 : vector<8x32xf32>
    %140 = vector.extract_strided_slice %129 {offsets = [0, 160], sizes = [8, 32], strides = [1, 1]} : vector<8x256xf32> to vector<8x32xf32>
    %141 = arith.mulf %140, %96 : vector<8x32xf32>
    %142 = vector.extract_strided_slice %129 {offsets = [0, 128], sizes = [8, 32], strides = [1, 1]} : vector<8x256xf32> to vector<8x32xf32>
    %143 = vector.extract_strided_slice %130 {offsets = [0, 192], sizes = [8, 32], strides = [1, 1]} : vector<8x256xf32> to vector<8x32xf32>
    %144 = arith.mulf %142, %143 : vector<8x32xf32>
    %145 = arith.addf %141, %144 : vector<8x32xf32>
    %146 = vector.extract_strided_slice %129 {offsets = [0, 224], sizes = [8, 32], strides = [1, 1]} : vector<8x256xf32> to vector<8x32xf32>
    %147 = math.tanh %145 : vector<8x32xf32>
    %148 = arith.mulf %146, %147 : vector<8x32xf32>
    %149 = arith.index_cast %c2_i32 : i32 to index
    %c0_36 = arith.constant 0 : index
    %c0_37 = arith.constant 0 : index
    %150 = vector.load %arg20[%149, %c0_36, %c0_37] : memref<8x8x64xf32, #tpu.memory_space<vmem>>, vector<1x8x32xf32>
    %151 = vector.shape_cast %150 : vector<1x8x32xf32> to vector<8x32xf32>
    %152 = vector.shape_cast %139 : vector<8x32xf32> to vector<1x8x32xf32>
    tpu.vector_store %arg20[%149, %c0_36, %c0_37], %152 {strides = array<i32>} : memref<8x8x64xf32, #tpu.memory_space<vmem>>, vector<1x8x32xf32>,
    %153 = arith.index_cast %109 : i32 to index
    %c0_38 = arith.constant 0 : index
    %c32_39 = arith.constant 32 : index
    %154 = vector.load %arg20[%153, %c0_38, %c32_39] : memref<8x8x64xf32, #tpu.memory_space<vmem>>, vector<1x8x32xf32>
    %155 = vector.shape_cast %154 : vector<1x8x32xf32> to vector<8x32xf32>
    %156 = vector.shape_cast %148 : vector<8x32xf32> to vector<1x8x32xf32>
    tpu.vector_store %arg20[%153, %c0_38, %c32_39], %156 {strides = array<i32>} : memref<8x8x64xf32, #tpu.memory_space<vmem>>, vector<1x8x32xf32>,
    %157 = tpu.concatenate %139, %148 in 1 : vector<8x32xf32>, vector<8x32xf32> -> vector<8x64xf32>
    %c3_i32 = arith.constant 3 : i32
    %c7_i32_40 = arith.constant 7 : i32
    %158 = arith.subi %c7_i32_40, %c3_i32 : i32
    %159 = arith.truncf %157 : vector<8x64xf32> to vector<8x64xbf16>
    %cst_41 = arith.constant dense<0.000000e+00> : vector<8x256xf32>
    %160 = tpu.matmul %159, %8, %cst_41 {dimension_numbers = #tpu.dot_dimension_numbers<[1], [0], [0], [1], [0, 0, 1, 1], [], []>} : vector<8x64xbf16>, vector<64x256xbf16>, vector<8x256xf32> -> vector<8x256xf32>
    %c8_i32_42 = arith.constant 8 : i32
    %161 = arith.muli %c3_i32, %c8_i32_42 : i32
    %162 = tpu.assume_multiple %161, 8 : i32
    %c8_i32_43 = arith.constant 8 : i32
    %163 = arith.muli %158, %c8_i32_43 : i32
    %164 = tpu.assume_multiple %163, 8 : i32
    %165 = arith.index_cast %162 : i32 to index
    %c0_44 = arith.constant 0 : index
    %166 = vector.load %arg19[%165, %c0_44] : memref<64x256xf32, #tpu.memory_space<vmem>>, vector<8x128xf32>
    %167 = vector.extract_strided_slice %160 {offsets = [0, 0], sizes = [8, 128], strides = [1, 1]} : vector<8x256xf32> to vector<8x128xf32>
    %168 = arith.addf %166, %167 : vector<8x128xf32>
    %169 = arith.index_cast %164 : i32 to index
    %c128_45 = arith.constant 128 : index
    %170 = vector.load %arg19[%169, %c128_45] : memref<64x256xf32, #tpu.memory_space<vmem>>, vector<8x128xf32>
    %171 = vector.extract_strided_slice %160 {offsets = [0, 128], sizes = [8, 128], strides = [1, 1]} : vector<8x256xf32> to vector<8x128xf32>
    %172 = arith.addf %170, %171 : vector<8x128xf32>
    %173 = tpu.concatenate %168, %172 in 1 : vector<8x128xf32>, vector<8x128xf32> -> vector<8x256xf32>
    %174 = arith.negf %173 : vector<8x256xf32>
    %175 = math.exp %174 : vector<8x256xf32>
    %cst_46 = arith.constant 1.000000e+00 : f32
    %176 = vector.broadcast %cst_46 : f32 to vector<8x256xf32>
    %177 = arith.addf %176, %175 : vector<8x256xf32>
    %178 = arith.divf %176, %177 : vector<8x256xf32>
    %179 = math.tanh %173 : vector<8x256xf32>
    %180 = vector.extract_strided_slice %178 {offsets = [0, 32], sizes = [8, 32], strides = [1, 1]} : vector<8x256xf32> to vector<8x32xf32>
    %181 = arith.mulf %180, %136 : vector<8x32xf32>
    %182 = vector.extract_strided_slice %178 {offsets = [0, 0], sizes = [8, 32], strides = [1, 1]} : vector<8x256xf32> to vector<8x32xf32>
    %183 = vector.extract_strided_slice %179 {offsets = [0, 64], sizes = [8, 32], strides = [1, 1]} : vector<8x256xf32> to vector<8x32xf32>
    %184 = arith.mulf %182, %183 : vector<8x32xf32>
    %185 = arith.addf %181, %184 : vector<8x32xf32>
    %186 = vector.extract_strided_slice %178 {offsets = [0, 96], sizes = [8, 32], strides = [1, 1]} : vector<8x256xf32> to vector<8x32xf32>
    %187 = math.tanh %185 : vector<8x32xf32>
    %188 = arith.mulf %186, %187 : vector<8x32xf32>
    %189 = vector.extract_strided_slice %178 {offsets = [0, 160], sizes = [8, 32], strides = [1, 1]} : vector<8x256xf32> to vector<8x32xf32>
    %190 = arith.mulf %189, %145 : vector<8x32xf32>
    %191 = vector.extract_strided_slice %178 {offsets = [0, 128], sizes = [8, 32], strides = [1, 1]} : vector<8x256xf32> to vector<8x32xf32>
    %192 = vector.extract_strided_slice %179 {offsets = [0, 192], sizes = [8, 32], strides = [1, 1]} : vector<8x256xf32> to vector<8x32xf32>
    %193 = arith.mulf %191, %192 : vector<8x32xf32>
    %194 = arith.addf %190, %193 : vector<8x32xf32>
    %195 = vector.extract_strided_slice %178 {offsets = [0, 224], sizes = [8, 32], strides = [1, 1]} : vector<8x256xf32> to vector<8x32xf32>
    %196 = math.tanh %194 : vector<8x32xf32>
    %197 = arith.mulf %195, %196 : vector<8x32xf32>
    %198 = arith.index_cast %c3_i32 : i32 to index
    %c0_47 = arith.constant 0 : index
    %c0_48 = arith.constant 0 : index
    %199 = vector.load %arg20[%198, %c0_47, %c0_48] : memref<8x8x64xf32, #tpu.memory_space<vmem>>, vector<1x8x32xf32>
    %200 = vector.shape_cast %199 : vector<1x8x32xf32> to vector<8x32xf32>
    %201 = vector.shape_cast %188 : vector<8x32xf32> to vector<1x8x32xf32>
    tpu.vector_store %arg20[%198, %c0_47, %c0_48], %201 {strides = array<i32>} : memref<8x8x64xf32, #tpu.memory_space<vmem>>, vector<1x8x32xf32>,
    %202 = arith.index_cast %158 : i32 to index
    %c0_49 = arith.constant 0 : index
    %c32_50 = arith.constant 32 : index
    %203 = vector.load %arg20[%202, %c0_49, %c32_50] : memref<8x8x64xf32, #tpu.memory_space<vmem>>, vector<1x8x32xf32>
    %204 = vector.shape_cast %203 : vector<1x8x32xf32> to vector<8x32xf32>
    %205 = vector.shape_cast %197 : vector<8x32xf32> to vector<1x8x32xf32>
    tpu.vector_store %arg20[%202, %c0_49, %c32_50], %205 {strides = array<i32>} : memref<8x8x64xf32, #tpu.memory_space<vmem>>, vector<1x8x32xf32>,
    %206 = tpu.concatenate %188, %197 in 1 : vector<8x32xf32>, vector<8x32xf32> -> vector<8x64xf32>
    %c4_i32 = arith.constant 4 : i32
    %c7_i32_51 = arith.constant 7 : i32
    %207 = arith.subi %c7_i32_51, %c4_i32 : i32
    %208 = arith.truncf %206 : vector<8x64xf32> to vector<8x64xbf16>
    %cst_52 = arith.constant dense<0.000000e+00> : vector<8x256xf32>
    %209 = tpu.matmul %208, %8, %cst_52 {dimension_numbers = #tpu.dot_dimension_numbers<[1], [0], [0], [1], [0, 0, 1, 1], [], []>} : vector<8x64xbf16>, vector<64x256xbf16>, vector<8x256xf32> -> vector<8x256xf32>
    %c8_i32_53 = arith.constant 8 : i32
    %210 = arith.muli %c4_i32, %c8_i32_53 : i32
    %211 = tpu.assume_multiple %210, 8 : i32
    %c8_i32_54 = arith.constant 8 : i32
    %212 = arith.muli %207, %c8_i32_54 : i32
    %213 = tpu.assume_multiple %212, 8 : i32
    %214 = arith.index_cast %211 : i32 to index
    %c0_55 = arith.constant 0 : index
    %215 = vector.load %arg19[%214, %c0_55] : memref<64x256xf32, #tpu.memory_space<vmem>>, vector<8x128xf32>
    %216 = vector.extract_strided_slice %209 {offsets = [0, 0], sizes = [8, 128], strides = [1, 1]} : vector<8x256xf32> to vector<8x128xf32>
    %217 = arith.addf %215, %216 : vector<8x128xf32>
    %218 = arith.index_cast %213 : i32 to index
    %c128_56 = arith.constant 128 : index
    %219 = vector.load %arg19[%218, %c128_56] : memref<64x256xf32, #tpu.memory_space<vmem>>, vector<8x128xf32>
    %220 = vector.extract_strided_slice %209 {offsets = [0, 128], sizes = [8, 128], strides = [1, 1]} : vector<8x256xf32> to vector<8x128xf32>
    %221 = arith.addf %219, %220 : vector<8x128xf32>
    %222 = tpu.concatenate %217, %221 in 1 : vector<8x128xf32>, vector<8x128xf32> -> vector<8x256xf32>
    %223 = arith.negf %222 : vector<8x256xf32>
    %224 = math.exp %223 : vector<8x256xf32>
    %cst_57 = arith.constant 1.000000e+00 : f32
    %225 = vector.broadcast %cst_57 : f32 to vector<8x256xf32>
    %226 = arith.addf %225, %224 : vector<8x256xf32>
    %227 = arith.divf %225, %226 : vector<8x256xf32>
    %228 = math.tanh %222 : vector<8x256xf32>
    %229 = vector.extract_strided_slice %227 {offsets = [0, 32], sizes = [8, 32], strides = [1, 1]} : vector<8x256xf32> to vector<8x32xf32>
    %230 = arith.mulf %229, %185 : vector<8x32xf32>
    %231 = vector.extract_strided_slice %227 {offsets = [0, 0], sizes = [8, 32], strides = [1, 1]} : vector<8x256xf32> to vector<8x32xf32>
    %232 = vector.extract_strided_slice %228 {offsets = [0, 64], sizes = [8, 32], strides = [1, 1]} : vector<8x256xf32> to vector<8x32xf32>
    %233 = arith.mulf %231, %232 : vector<8x32xf32>
    %234 = arith.addf %230, %233 : vector<8x32xf32>
    %235 = vector.extract_strided_slice %227 {offsets = [0, 96], sizes = [8, 32], strides = [1, 1]} : vector<8x256xf32> to vector<8x32xf32>
    %236 = math.tanh %234 : vector<8x32xf32>
    %237 = arith.mulf %235, %236 : vector<8x32xf32>
    %238 = vector.extract_strided_slice %227 {offsets = [0, 160], sizes = [8, 32], strides = [1, 1]} : vector<8x256xf32> to vector<8x32xf32>
    %239 = arith.mulf %238, %194 : vector<8x32xf32>
    %240 = vector.extract_strided_slice %227 {offsets = [0, 128], sizes = [8, 32], strides = [1, 1]} : vector<8x256xf32> to vector<8x32xf32>
    %241 = vector.extract_strided_slice %228 {offsets = [0, 192], sizes = [8, 32], strides = [1, 1]} : vector<8x256xf32> to vector<8x32xf32>
    %242 = arith.mulf %240, %241 : vector<8x32xf32>
    %243 = arith.addf %239, %242 : vector<8x32xf32>
    %244 = vector.extract_strided_slice %227 {offsets = [0, 224], sizes = [8, 32], strides = [1, 1]} : vector<8x256xf32> to vector<8x32xf32>
    %245 = math.tanh %243 : vector<8x32xf32>
    %246 = arith.mulf %244, %245 : vector<8x32xf32>
    %247 = arith.index_cast %c4_i32 : i32 to index
    %c0_58 = arith.constant 0 : index
    %c0_59 = arith.constant 0 : index
    %248 = vector.load %arg20[%247, %c0_58, %c0_59] : memref<8x8x64xf32, #tpu.memory_space<vmem>>, vector<1x8x32xf32>
    %249 = vector.shape_cast %248 : vector<1x8x32xf32> to vector<8x32xf32>
    %250 = vector.shape_cast %237 : vector<8x32xf32> to vector<1x8x32xf32>
    tpu.vector_store %arg20[%247, %c0_58, %c0_59], %250 {strides = array<i32>} : memref<8x8x64xf32, #tpu.memory_space<vmem>>, vector<1x8x32xf32>,
    %251 = arith.index_cast %207 : i32 to index
    %c0_60 = arith.constant 0 : index
    %c32_61 = arith.constant 32 : index
    %252 = vector.load %arg20[%251, %c0_60, %c32_61] : memref<8x8x64xf32, #tpu.memory_space<vmem>>, vector<1x8x32xf32>
    %253 = vector.shape_cast %252 : vector<1x8x32xf32> to vector<8x32xf32>
    %254 = vector.shape_cast %246 : vector<8x32xf32> to vector<1x8x32xf32>
    tpu.vector_store %arg20[%251, %c0_60, %c32_61], %254 {strides = array<i32>} : memref<8x8x64xf32, #tpu.memory_space<vmem>>, vector<1x8x32xf32>,
    %255 = tpu.concatenate %237, %246 in 1 : vector<8x32xf32>, vector<8x32xf32> -> vector<8x64xf32>
    %c5_i32 = arith.constant 5 : i32
    %c7_i32_62 = arith.constant 7 : i32
    %256 = arith.subi %c7_i32_62, %c5_i32 : i32
    %257 = arith.truncf %255 : vector<8x64xf32> to vector<8x64xbf16>
    %cst_63 = arith.constant dense<0.000000e+00> : vector<8x256xf32>
    %258 = tpu.matmul %257, %8, %cst_63 {dimension_numbers = #tpu.dot_dimension_numbers<[1], [0], [0], [1], [0, 0, 1, 1], [], []>} : vector<8x64xbf16>, vector<64x256xbf16>, vector<8x256xf32> -> vector<8x256xf32>
    %c8_i32_64 = arith.constant 8 : i32
    %259 = arith.muli %c5_i32, %c8_i32_64 : i32
    %260 = tpu.assume_multiple %259, 8 : i32
    %c8_i32_65 = arith.constant 8 : i32
    %261 = arith.muli %256, %c8_i32_65 : i32
    %262 = tpu.assume_multiple %261, 8 : i32
    %263 = arith.index_cast %260 : i32 to index
    %c0_66 = arith.constant 0 : index
    %264 = vector.load %arg19[%263, %c0_66] : memref<64x256xf32, #tpu.memory_space<vmem>>, vector<8x128xf32>
    %265 = vector.extract_strided_slice %258 {offsets = [0, 0], sizes = [8, 128], strides = [1, 1]} : vector<8x256xf32> to vector<8x128xf32>
    %266 = arith.addf %264, %265 : vector<8x128xf32>
    %267 = arith.index_cast %262 : i32 to index
    %c128_67 = arith.constant 128 : index
    %268 = vector.load %arg19[%267, %c128_67] : memref<64x256xf32, #tpu.memory_space<vmem>>, vector<8x128xf32>
    %269 = vector.extract_strided_slice %258 {offsets = [0, 128], sizes = [8, 128], strides = [1, 1]} : vector<8x256xf32> to vector<8x128xf32>
    %270 = arith.addf %268, %269 : vector<8x128xf32>
    %271 = tpu.concatenate %266, %270 in 1 : vector<8x128xf32>, vector<8x128xf32> -> vector<8x256xf32>
    %272 = arith.negf %271 : vector<8x256xf32>
    %273 = math.exp %272 : vector<8x256xf32>
    %cst_68 = arith.constant 1.000000e+00 : f32
    %274 = vector.broadcast %cst_68 : f32 to vector<8x256xf32>
    %275 = arith.addf %274, %273 : vector<8x256xf32>
    %276 = arith.divf %274, %275 : vector<8x256xf32>
    %277 = math.tanh %271 : vector<8x256xf32>
    %278 = vector.extract_strided_slice %276 {offsets = [0, 32], sizes = [8, 32], strides = [1, 1]} : vector<8x256xf32> to vector<8x32xf32>
    %279 = arith.mulf %278, %234 : vector<8x32xf32>
    %280 = vector.extract_strided_slice %276 {offsets = [0, 0], sizes = [8, 32], strides = [1, 1]} : vector<8x256xf32> to vector<8x32xf32>
    %281 = vector.extract_strided_slice %277 {offsets = [0, 64], sizes = [8, 32], strides = [1, 1]} : vector<8x256xf32> to vector<8x32xf32>
    %282 = arith.mulf %280, %281 : vector<8x32xf32>
    %283 = arith.addf %279, %282 : vector<8x32xf32>
    %284 = vector.extract_strided_slice %276 {offsets = [0, 96], sizes = [8, 32], strides = [1, 1]} : vector<8x256xf32> to vector<8x32xf32>
    %285 = math.tanh %283 : vector<8x32xf32>
    %286 = arith.mulf %284, %285 : vector<8x32xf32>
    %287 = vector.extract_strided_slice %276 {offsets = [0, 160], sizes = [8, 32], strides = [1, 1]} : vector<8x256xf32> to vector<8x32xf32>
    %288 = arith.mulf %287, %243 : vector<8x32xf32>
    %289 = vector.extract_strided_slice %276 {offsets = [0, 128], sizes = [8, 32], strides = [1, 1]} : vector<8x256xf32> to vector<8x32xf32>
    %290 = vector.extract_strided_slice %277 {offsets = [0, 192], sizes = [8, 32], strides = [1, 1]} : vector<8x256xf32> to vector<8x32xf32>
    %291 = arith.mulf %289, %290 : vector<8x32xf32>
    %292 = arith.addf %288, %291 : vector<8x32xf32>
    %293 = vector.extract_strided_slice %276 {offsets = [0, 224], sizes = [8, 32], strides = [1, 1]} : vector<8x256xf32> to vector<8x32xf32>
    %294 = math.tanh %292 : vector<8x32xf32>
    %295 = arith.mulf %293, %294 : vector<8x32xf32>
    %296 = arith.index_cast %c5_i32 : i32 to index
    %c0_69 = arith.constant 0 : index
    %c0_70 = arith.constant 0 : index
    %297 = vector.load %arg20[%296, %c0_69, %c0_70] : memref<8x8x64xf32, #tpu.memory_space<vmem>>, vector<1x8x32xf32>
    %298 = vector.shape_cast %297 : vector<1x8x32xf32> to vector<8x32xf32>
    %299 = vector.shape_cast %286 : vector<8x32xf32> to vector<1x8x32xf32>
    tpu.vector_store %arg20[%296, %c0_69, %c0_70], %299 {strides = array<i32>} : memref<8x8x64xf32, #tpu.memory_space<vmem>>, vector<1x8x32xf32>,
    %300 = arith.index_cast %256 : i32 to index
    %c0_71 = arith.constant 0 : index
    %c32_72 = arith.constant 32 : index
    %301 = vector.load %arg20[%300, %c0_71, %c32_72] : memref<8x8x64xf32, #tpu.memory_space<vmem>>, vector<1x8x32xf32>
    %302 = vector.shape_cast %301 : vector<1x8x32xf32> to vector<8x32xf32>
    %303 = vector.shape_cast %295 : vector<8x32xf32> to vector<1x8x32xf32>
    tpu.vector_store %arg20[%300, %c0_71, %c32_72], %303 {strides = array<i32>} : memref<8x8x64xf32, #tpu.memory_space<vmem>>, vector<1x8x32xf32>,
    %304 = tpu.concatenate %286, %295 in 1 : vector<8x32xf32>, vector<8x32xf32> -> vector<8x64xf32>
    %c6_i32 = arith.constant 6 : i32
    %c7_i32_73 = arith.constant 7 : i32
    %305 = arith.subi %c7_i32_73, %c6_i32 : i32
    %306 = arith.truncf %304 : vector<8x64xf32> to vector<8x64xbf16>
    %cst_74 = arith.constant dense<0.000000e+00> : vector<8x256xf32>
    %307 = tpu.matmul %306, %8, %cst_74 {dimension_numbers = #tpu.dot_dimension_numbers<[1], [0], [0], [1], [0, 0, 1, 1], [], []>} : vector<8x64xbf16>, vector<64x256xbf16>, vector<8x256xf32> -> vector<8x256xf32>
    %c8_i32_75 = arith.constant 8 : i32
    %308 = arith.muli %c6_i32, %c8_i32_75 : i32
    %309 = tpu.assume_multiple %308, 8 : i32
    %c8_i32_76 = arith.constant 8 : i32
    %310 = arith.muli %305, %c8_i32_76 : i32
    %311 = tpu.assume_multiple %310, 8 : i32
    %312 = arith.index_cast %309 : i32 to index
    %c0_77 = arith.constant 0 : index
    %313 = vector.load %arg19[%312, %c0_77] : memref<64x256xf32, #tpu.memory_space<vmem>>, vector<8x128xf32>
    %314 = vector.extract_strided_slice %307 {offsets = [0, 0], sizes = [8, 128], strides = [1, 1]} : vector<8x256xf32> to vector<8x128xf32>
    %315 = arith.addf %313, %314 : vector<8x128xf32>
    %316 = arith.index_cast %311 : i32 to index
    %c128_78 = arith.constant 128 : index
    %317 = vector.load %arg19[%316, %c128_78] : memref<64x256xf32, #tpu.memory_space<vmem>>, vector<8x128xf32>
    %318 = vector.extract_strided_slice %307 {offsets = [0, 128], sizes = [8, 128], strides = [1, 1]} : vector<8x256xf32> to vector<8x128xf32>
    %319 = arith.addf %317, %318 : vector<8x128xf32>
    %320 = tpu.concatenate %315, %319 in 1 : vector<8x128xf32>, vector<8x128xf32> -> vector<8x256xf32>
    %321 = arith.negf %320 : vector<8x256xf32>
    %322 = math.exp %321 : vector<8x256xf32>
    %cst_79 = arith.constant 1.000000e+00 : f32
    %323 = vector.broadcast %cst_79 : f32 to vector<8x256xf32>
    %324 = arith.addf %323, %322 : vector<8x256xf32>
    %325 = arith.divf %323, %324 : vector<8x256xf32>
    %326 = math.tanh %320 : vector<8x256xf32>
    %327 = vector.extract_strided_slice %325 {offsets = [0, 32], sizes = [8, 32], strides = [1, 1]} : vector<8x256xf32> to vector<8x32xf32>
    %328 = arith.mulf %327, %283 : vector<8x32xf32>
    %329 = vector.extract_strided_slice %325 {offsets = [0, 0], sizes = [8, 32], strides = [1, 1]} : vector<8x256xf32> to vector<8x32xf32>
    %330 = vector.extract_strided_slice %326 {offsets = [0, 64], sizes = [8, 32], strides = [1, 1]} : vector<8x256xf32> to vector<8x32xf32>
    %331 = arith.mulf %329, %330 : vector<8x32xf32>
    %332 = arith.addf %328, %331 : vector<8x32xf32>
    %333 = vector.extract_strided_slice %325 {offsets = [0, 96], sizes = [8, 32], strides = [1, 1]} : vector<8x256xf32> to vector<8x32xf32>
    %334 = math.tanh %332 : vector<8x32xf32>
    %335 = arith.mulf %333, %334 : vector<8x32xf32>
    %336 = vector.extract_strided_slice %325 {offsets = [0, 160], sizes = [8, 32], strides = [1, 1]} : vector<8x256xf32> to vector<8x32xf32>
    %337 = arith.mulf %336, %292 : vector<8x32xf32>
    %338 = vector.extract_strided_slice %325 {offsets = [0, 128], sizes = [8, 32], strides = [1, 1]} : vector<8x256xf32> to vector<8x32xf32>
    %339 = vector.extract_strided_slice %326 {offsets = [0, 192], sizes = [8, 32], strides = [1, 1]} : vector<8x256xf32> to vector<8x32xf32>
    %340 = arith.mulf %338, %339 : vector<8x32xf32>
    %341 = arith.addf %337, %340 : vector<8x32xf32>
    %342 = vector.extract_strided_slice %325 {offsets = [0, 224], sizes = [8, 32], strides = [1, 1]} : vector<8x256xf32> to vector<8x32xf32>
    %343 = math.tanh %341 : vector<8x32xf32>
    %344 = arith.mulf %342, %343 : vector<8x32xf32>
    %345 = arith.index_cast %c6_i32 : i32 to index
    %c0_80 = arith.constant 0 : index
    %c0_81 = arith.constant 0 : index
    %346 = vector.load %arg20[%345, %c0_80, %c0_81] : memref<8x8x64xf32, #tpu.memory_space<vmem>>, vector<1x8x32xf32>
    %347 = vector.shape_cast %346 : vector<1x8x32xf32> to vector<8x32xf32>
    %348 = vector.shape_cast %335 : vector<8x32xf32> to vector<1x8x32xf32>
    tpu.vector_store %arg20[%345, %c0_80, %c0_81], %348 {strides = array<i32>} : memref<8x8x64xf32, #tpu.memory_space<vmem>>, vector<1x8x32xf32>,
    %349 = arith.index_cast %305 : i32 to index
    %c0_82 = arith.constant 0 : index
    %c32_83 = arith.constant 32 : index
    %350 = vector.load %arg20[%349, %c0_82, %c32_83] : memref<8x8x64xf32, #tpu.memory_space<vmem>>, vector<1x8x32xf32>
    %351 = vector.shape_cast %350 : vector<1x8x32xf32> to vector<8x32xf32>
    %352 = vector.shape_cast %344 : vector<8x32xf32> to vector<1x8x32xf32>
    tpu.vector_store %arg20[%349, %c0_82, %c32_83], %352 {strides = array<i32>} : memref<8x8x64xf32, #tpu.memory_space<vmem>>, vector<1x8x32xf32>,
    %353 = tpu.concatenate %335, %344 in 1 : vector<8x32xf32>, vector<8x32xf32> -> vector<8x64xf32>
    %c7_i32_84 = arith.constant 7 : i32
    %c7_i32_85 = arith.constant 7 : i32
    %354 = arith.subi %c7_i32_85, %c7_i32_84 : i32
    %355 = arith.truncf %353 : vector<8x64xf32> to vector<8x64xbf16>
    %cst_86 = arith.constant dense<0.000000e+00> : vector<8x256xf32>
    %356 = tpu.matmul %355, %8, %cst_86 {dimension_numbers = #tpu.dot_dimension_numbers<[1], [0], [0], [1], [0, 0, 1, 1], [], []>} : vector<8x64xbf16>, vector<64x256xbf16>, vector<8x256xf32> -> vector<8x256xf32>
    %c8_i32_87 = arith.constant 8 : i32
    %357 = arith.muli %c7_i32_84, %c8_i32_87 : i32
    %358 = tpu.assume_multiple %357, 8 : i32
    %c8_i32_88 = arith.constant 8 : i32
    %359 = arith.muli %354, %c8_i32_88 : i32
    %360 = tpu.assume_multiple %359, 8 : i32
    %361 = arith.index_cast %358 : i32 to index
    %c0_89 = arith.constant 0 : index
    %362 = vector.load %arg19[%361, %c0_89] : memref<64x256xf32, #tpu.memory_space<vmem>>, vector<8x128xf32>
    %363 = vector.extract_strided_slice %356 {offsets = [0, 0], sizes = [8, 128], strides = [1, 1]} : vector<8x256xf32> to vector<8x128xf32>
    %364 = arith.addf %362, %363 : vector<8x128xf32>
    %365 = arith.index_cast %360 : i32 to index
    %c128_90 = arith.constant 128 : index
    %366 = vector.load %arg19[%365, %c128_90] : memref<64x256xf32, #tpu.memory_space<vmem>>, vector<8x128xf32>
    %367 = vector.extract_strided_slice %356 {offsets = [0, 128], sizes = [8, 128], strides = [1, 1]} : vector<8x256xf32> to vector<8x128xf32>
    %368 = arith.addf %366, %367 : vector<8x128xf32>
    %369 = tpu.concatenate %364, %368 in 1 : vector<8x128xf32>, vector<8x128xf32> -> vector<8x256xf32>
    %370 = arith.negf %369 : vector<8x256xf32>
    %371 = math.exp %370 : vector<8x256xf32>
    %cst_91 = arith.constant 1.000000e+00 : f32
    %372 = vector.broadcast %cst_91 : f32 to vector<8x256xf32>
    %373 = arith.addf %372, %371 : vector<8x256xf32>
    %374 = arith.divf %372, %373 : vector<8x256xf32>
    %375 = math.tanh %369 : vector<8x256xf32>
    %376 = vector.extract_strided_slice %374 {offsets = [0, 32], sizes = [8, 32], strides = [1, 1]} : vector<8x256xf32> to vector<8x32xf32>
    %377 = arith.mulf %376, %332 : vector<8x32xf32>
    %378 = vector.extract_strided_slice %374 {offsets = [0, 0], sizes = [8, 32], strides = [1, 1]} : vector<8x256xf32> to vector<8x32xf32>
    %379 = vector.extract_strided_slice %375 {offsets = [0, 64], sizes = [8, 32], strides = [1, 1]} : vector<8x256xf32> to vector<8x32xf32>
    %380 = arith.mulf %378, %379 : vector<8x32xf32>
    %381 = arith.addf %377, %380 : vector<8x32xf32>
    %382 = vector.extract_strided_slice %374 {offsets = [0, 96], sizes = [8, 32], strides = [1, 1]} : vector<8x256xf32> to vector<8x32xf32>
    %383 = math.tanh %381 : vector<8x32xf32>
    %384 = arith.mulf %382, %383 : vector<8x32xf32>
    %385 = vector.extract_strided_slice %374 {offsets = [0, 160], sizes = [8, 32], strides = [1, 1]} : vector<8x256xf32> to vector<8x32xf32>
    %386 = arith.mulf %385, %341 : vector<8x32xf32>
    %387 = vector.extract_strided_slice %374 {offsets = [0, 128], sizes = [8, 32], strides = [1, 1]} : vector<8x256xf32> to vector<8x32xf32>
    %388 = vector.extract_strided_slice %375 {offsets = [0, 192], sizes = [8, 32], strides = [1, 1]} : vector<8x256xf32> to vector<8x32xf32>
    %389 = arith.mulf %387, %388 : vector<8x32xf32>
    %390 = arith.addf %386, %389 : vector<8x32xf32>
    %391 = vector.extract_strided_slice %374 {offsets = [0, 224], sizes = [8, 32], strides = [1, 1]} : vector<8x256xf32> to vector<8x32xf32>
    %392 = math.tanh %390 : vector<8x32xf32>
    %393 = arith.mulf %391, %392 : vector<8x32xf32>
    %394 = arith.index_cast %c7_i32_84 : i32 to index
    %c0_92 = arith.constant 0 : index
    %c0_93 = arith.constant 0 : index
    %395 = vector.load %arg20[%394, %c0_92, %c0_93] : memref<8x8x64xf32, #tpu.memory_space<vmem>>, vector<1x8x32xf32>
    %396 = vector.shape_cast %395 : vector<1x8x32xf32> to vector<8x32xf32>
    %397 = vector.shape_cast %384 : vector<8x32xf32> to vector<1x8x32xf32>
    tpu.vector_store %arg20[%394, %c0_92, %c0_93], %397 {strides = array<i32>} : memref<8x8x64xf32, #tpu.memory_space<vmem>>, vector<1x8x32xf32>,
    %398 = arith.index_cast %354 : i32 to index
    %c0_94 = arith.constant 0 : index
    %c32_95 = arith.constant 32 : index
    %399 = vector.load %arg20[%398, %c0_94, %c32_95] : memref<8x8x64xf32, #tpu.memory_space<vmem>>, vector<1x8x32xf32>
    %400 = vector.shape_cast %399 : vector<1x8x32xf32> to vector<8x32xf32>
    %401 = vector.shape_cast %393 : vector<8x32xf32> to vector<1x8x32xf32>
    tpu.vector_store %arg20[%398, %c0_94, %c32_95], %401 {strides = array<i32>} : memref<8x8x64xf32, #tpu.memory_space<vmem>>, vector<1x8x32xf32>,
    %402 = tpu.concatenate %384, %393 in 1 : vector<8x32xf32>, vector<8x32xf32> -> vector<8x64xf32>
    %c8_i32_96 = arith.constant 8 : i32
    %c0_97 = arith.constant 0 : index
    %c0_98 = arith.constant 0 : index
    %c0_99 = arith.constant 0 : index
    %403 = vector.load %arg20[%c0_97, %c0_98, %c0_99] : memref<8x8x64xf32, #tpu.memory_space<vmem>>, vector<8x8x64xf32>
    %c0_100 = arith.constant 0 : index
    %c0_101 = arith.constant 0 : index
    %404 = vector.load %arg2[%c0_100, %c0_101] : memref<2x8xf32, #tpu.memory_space<vmem>>, vector<2x8xf32>
    %c0_102 = arith.constant 0 : index
    %c0_103 = arith.constant 0 : index
    %405 = vector.load %arg3[%c0_102, %c0_103] : memref<2x8xf32, #tpu.memory_space<vmem>>, vector<2x8xf32>
    %406 = vector.extract_strided_slice %403 {offsets = [0, 0, 0], sizes = [8, 1, 64], strides = [1, 1, 1]} : vector<8x8x64xf32> to vector<8x1x64xf32>
    %407 = vector.shape_cast %406 : vector<8x1x64xf32> to vector<8x64xf32>
    %408 = vector.extract_strided_slice %403 {offsets = [0, 2, 0], sizes = [8, 1, 64], strides = [1, 1, 1]} : vector<8x8x64xf32> to vector<8x1x64xf32>
    %409 = vector.shape_cast %408 : vector<8x1x64xf32> to vector<8x64xf32>
    %410 = arith.truncf %407 : vector<8x64xf32> to vector<8x64xbf16>
    %411 = arith.truncf %409 : vector<8x64xf32> to vector<8x64xbf16>
    %cst_104 = arith.constant dense<0.000000e+00> : vector<8x8xf32>
    %412 = tpu.matmul %410, %411, %cst_104 {dimension_numbers = #tpu.dot_dimension_numbers<[1], [1], [0], [0], [0, 0, 1, 0], [], []>} : vector<8x64xbf16>, vector<8x64xbf16>, vector<8x8xf32> -> vector<8x8xf32>
    %413 = vector.extract_strided_slice %405 {offsets = [0, 0], sizes = [1, 8], strides = [1, 1]} : vector<2x8xf32> to vector<1x8xf32>
    %414 = vector.broadcast %413 : vector<1x8xf32> to vector<8x8xf32>
    %415 = arith.addf %412, %414 : vector<8x8xf32>
    %cst_105 = arith.constant dense<0xFF800000> : vector<8xf32>
    %416 = vector.multi_reduction <maximumf>, %415, %cst_105 [1] : vector<8x8xf32> to vector<8xf32>
    %417 = vector.shape_cast %416 : vector<8xf32> to vector<8x1xf32>
    %418 = vector.broadcast %417 : vector<8x1xf32> to vector<8x8xf32>
    %419 = arith.subf %415, %418 : vector<8x8xf32>
    %420 = math.exp %419 : vector<8x8xf32>
    %cst_106 = arith.constant dense<0.000000e+00> : vector<8xf32>
    %421 = vector.multi_reduction <add>, %420, %cst_106 [1] : vector<8x8xf32> to vector<8xf32>
    %422 = vector.shape_cast %421 : vector<8xf32> to vector<8x1xf32>
    %423 = tpu.reciprocal %422 {approx = true} : vector<8x1xf32> -> vector<8x1xf32>
    %424 = vector.broadcast %423 : vector<8x1xf32> to vector<8x8xf32>
    %425 = arith.mulf %420, %424 : vector<8x8xf32>
    %426 = tpu.transpose %412, [1, 0] : vector<8x8xf32> -> vector<8x8xf32>
    %427 = vector.extract_strided_slice %404 {offsets = [0, 0], sizes = [1, 8], strides = [1, 1]} : vector<2x8xf32> to vector<1x8xf32>
    %428 = vector.broadcast %427 : vector<1x8xf32> to vector<8x8xf32>
    %429 = arith.addf %426, %428 : vector<8x8xf32>
    %cst_107 = arith.constant dense<0xFF800000> : vector<8xf32>
    %430 = vector.multi_reduction <maximumf>, %429, %cst_107 [1] : vector<8x8xf32> to vector<8xf32>
    %431 = vector.shape_cast %430 : vector<8xf32> to vector<8x1xf32>
    %432 = vector.broadcast %431 : vector<8x1xf32> to vector<8x8xf32>
    %433 = arith.subf %429, %432 : vector<8x8xf32>
    %434 = math.exp %433 : vector<8x8xf32>
    %cst_108 = arith.constant dense<0.000000e+00> : vector<8xf32>
    %435 = vector.multi_reduction <add>, %434, %cst_108 [1] : vector<8x8xf32> to vector<8xf32>
    %436 = vector.shape_cast %435 : vector<8xf32> to vector<8x1xf32>
    %437 = tpu.reciprocal %436 {approx = true} : vector<8x1xf32> -> vector<8x1xf32>
    %438 = vector.broadcast %437 : vector<8x1xf32> to vector<8x8xf32>
    %439 = arith.mulf %434, %438 : vector<8x8xf32>
    %440 = arith.truncf %425 : vector<8x8xf32> to vector<8x8xbf16>
    %cst_109 = arith.constant dense<0.000000e+00> : vector<8x64xf32>
    %441 = tpu.matmul %440, %411, %cst_109 {dimension_numbers = #tpu.dot_dimension_numbers<[1], [0], [0], [1], [0, 0, 1, 1], [], []>} : vector<8x8xbf16>, vector<8x64xbf16>, vector<8x64xf32> -> vector<8x64xf32>
    %442 = arith.truncf %439 : vector<8x8xf32> to vector<8x8xbf16>
    %cst_110 = arith.constant dense<0.000000e+00> : vector<8x64xf32>
    %443 = tpu.matmul %442, %410, %cst_110 {dimension_numbers = #tpu.dot_dimension_numbers<[1], [0], [0], [1], [0, 0, 1, 1], [], []>} : vector<8x8xbf16>, vector<8x64xbf16>, vector<8x64xf32> -> vector<8x64xf32>
    %444 = arith.subf %407, %441 : vector<8x64xf32>
    %445 = arith.mulf %407, %441 : vector<8x64xf32>
    %446 = tpu.concatenate %407, %441, %444, %445 in 1 : vector<8x64xf32>, vector<8x64xf32>, vector<8x64xf32>, vector<8x64xf32> -> vector<8x256xf32>
    %c0_111 = arith.constant 0 : index
    %c0_112 = arith.constant 0 : index
    %c0_113 = arith.constant 0 : index
    %447 = vector.load %arg21[%c0_111, %c0_112, %c0_113] : memref<8x8x256xf32, #tpu.memory_space<vmem>>, vector<8x1x256xf32>
    %448 = vector.shape_cast %447 : vector<8x1x256xf32> to vector<8x256xf32>
    %449 = vector.shape_cast %446 : vector<8x256xf32> to vector<8x1x256xf32>
    tpu.vector_store %arg21[%c0_111, %c0_112, %c0_113], %449 {strides = array<i32>} : memref<8x8x256xf32, #tpu.memory_space<vmem>>, vector<8x1x256xf32>,
    %450 = arith.subf %409, %443 : vector<8x64xf32>
    %451 = arith.mulf %409, %443 : vector<8x64xf32>
    %452 = tpu.concatenate %409, %443, %450, %451 in 1 : vector<8x64xf32>, vector<8x64xf32>, vector<8x64xf32>, vector<8x64xf32> -> vector<8x256xf32>
    %c0_114 = arith.constant 0 : index
    %c2 = arith.constant 2 : index
    %c0_115 = arith.constant 0 : index
    %453 = vector.load %arg21[%c0_114, %c2, %c0_115] : memref<8x8x256xf32, #tpu.memory_space<vmem>>, vector<8x1x256xf32>
    %454 = vector.shape_cast %453 : vector<8x1x256xf32> to vector<8x256xf32>
    %455 = vector.shape_cast %452 : vector<8x256xf32> to vector<8x1x256xf32>
    tpu.vector_store %arg21[%c0_114, %c2, %c0_115], %455 {strides = array<i32>} : memref<8x8x256xf32, #tpu.memory_space<vmem>>, vector<8x1x256xf32>,
    %456 = vector.extract_strided_slice %403 {offsets = [0, 1, 0], sizes = [8, 1, 64], strides = [1, 1, 1]} : vector<8x8x64xf32> to vector<8x1x64xf32>
    %457 = vector.shape_cast %456 : vector<8x1x64xf32> to vector<8x64xf32>
    %458 = vector.extract_strided_slice %403 {offsets = [0, 3, 0], sizes = [8, 1, 64], strides = [1, 1, 1]} : vector<8x8x64xf32> to vector<8x1x64xf32>
    %459 = vector.shape_cast %458 : vector<8x1x64xf32> to vector<8x64xf32>
    %460 = arith.truncf %457 : vector<8x64xf32> to vector<8x64xbf16>
    %461 = arith.truncf %459 : vector<8x64xf32> to vector<8x64xbf16>
    %cst_116 = arith.constant dense<0.000000e+00> : vector<8x8xf32>
    %462 = tpu.matmul %460, %461, %cst_116 {dimension_numbers = #tpu.dot_dimension_numbers<[1], [1], [0], [0], [0, 0, 1, 0], [], []>} : vector<8x64xbf16>, vector<8x64xbf16>, vector<8x8xf32> -> vector<8x8xf32>
    %463 = vector.extract_strided_slice %405 {offsets = [1, 0], sizes = [1, 8], strides = [1, 1]} : vector<2x8xf32> to vector<1x8xf32>
    %464 = vector.broadcast %463 : vector<1x8xf32> to vector<8x8xf32>
    %465 = arith.addf %462, %464 : vector<8x8xf32>
    %cst_117 = arith.constant dense<0xFF800000> : vector<8xf32>
    %466 = vector.multi_reduction <maximumf>, %465, %cst_117 [1] : vector<8x8xf32> to vector<8xf32>
    %467 = vector.shape_cast %466 : vector<8xf32> to vector<8x1xf32>
    %468 = vector.broadcast %467 : vector<8x1xf32> to vector<8x8xf32>
    %469 = arith.subf %465, %468 : vector<8x8xf32>
    %470 = math.exp %469 : vector<8x8xf32>
    %cst_118 = arith.constant dense<0.000000e+00> : vector<8xf32>
    %471 = vector.multi_reduction <add>, %470, %cst_118 [1] : vector<8x8xf32> to vector<8xf32>
    %472 = vector.shape_cast %471 : vector<8xf32> to vector<8x1xf32>
    %473 = tpu.reciprocal %472 {approx = true} : vector<8x1xf32> -> vector<8x1xf32>
    %474 = vector.broadcast %473 : vector<8x1xf32> to vector<8x8xf32>
    %475 = arith.mulf %470, %474 : vector<8x8xf32>
    %476 = tpu.transpose %462, [1, 0] : vector<8x8xf32> -> vector<8x8xf32>
    %477 = vector.extract_strided_slice %404 {offsets = [1, 0], sizes = [1, 8], strides = [1, 1]} : vector<2x8xf32> to vector<1x8xf32>
    %478 = vector.broadcast %477 : vector<1x8xf32> to vector<8x8xf32>
    %479 = arith.addf %476, %478 : vector<8x8xf32>
    %cst_119 = arith.constant dense<0xFF800000> : vector<8xf32>
    %480 = vector.multi_reduction <maximumf>, %479, %cst_119 [1] : vector<8x8xf32> to vector<8xf32>
    %481 = vector.shape_cast %480 : vector<8xf32> to vector<8x1xf32>
    %482 = vector.broadcast %481 : vector<8x1xf32> to vector<8x8xf32>
    %483 = arith.subf %479, %482 : vector<8x8xf32>
    %484 = math.exp %483 : vector<8x8xf32>
    %cst_120 = arith.constant dense<0.000000e+00> : vector<8xf32>
    %485 = vector.multi_reduction <add>, %484, %cst_120 [1] : vector<8x8xf32> to vector<8xf32>
    %486 = vector.shape_cast %485 : vector<8xf32> to vector<8x1xf32>
    %487 = tpu.reciprocal %486 {approx = true} : vector<8x1xf32> -> vector<8x1xf32>
    %488 = vector.broadcast %487 : vector<8x1xf32> to vector<8x8xf32>
    %489 = arith.mulf %484, %488 : vector<8x8xf32>
    %490 = arith.truncf %475 : vector<8x8xf32> to vector<8x8xbf16>
    %cst_121 = arith.constant dense<0.000000e+00> : vector<8x64xf32>
    %491 = tpu.matmul %490, %461, %cst_121 {dimension_numbers = #tpu.dot_dimension_numbers<[1], [0], [0], [1], [0, 0, 1, 1], [], []>} : vector<8x8xbf16>, vector<8x64xbf16>, vector<8x64xf32> -> vector<8x64xf32>
    %492 = arith.truncf %489 : vector<8x8xf32> to vector<8x8xbf16>
    %cst_122 = arith.constant dense<0.000000e+00> : vector<8x64xf32>
    %493 = tpu.matmul %492, %460, %cst_122 {dimension_numbers = #tpu.dot_dimension_numbers<[1], [0], [0], [1], [0, 0, 1, 1], [], []>} : vector<8x8xbf16>, vector<8x64xbf16>, vector<8x64xf32> -> vector<8x64xf32>
    %494 = arith.subf %457, %491 : vector<8x64xf32>
    %495 = arith.mulf %457, %491 : vector<8x64xf32>
    %496 = tpu.concatenate %457, %491, %494, %495 in 1 : vector<8x64xf32>, vector<8x64xf32>, vector<8x64xf32>, vector<8x64xf32> -> vector<8x256xf32>
    %c0_123 = arith.constant 0 : index
    %c1 = arith.constant 1 : index
    %c0_124 = arith.constant 0 : index
    %497 = vector.load %arg21[%c0_123, %c1, %c0_124] : memref<8x8x256xf32, #tpu.memory_space<vmem>>, vector<8x1x256xf32>
    %498 = vector.shape_cast %497 : vector<8x1x256xf32> to vector<8x256xf32>
    %499 = vector.shape_cast %496 : vector<8x256xf32> to vector<8x1x256xf32>
    tpu.vector_store %arg21[%c0_123, %c1, %c0_124], %499 {strides = array<i32>} : memref<8x8x256xf32, #tpu.memory_space<vmem>>, vector<8x1x256xf32>,
    %500 = arith.subf %459, %493 : vector<8x64xf32>
    %501 = arith.mulf %459, %493 : vector<8x64xf32>
    %502 = tpu.concatenate %459, %493, %500, %501 in 1 : vector<8x64xf32>, vector<8x64xf32>, vector<8x64xf32>, vector<8x64xf32> -> vector<8x256xf32>
    %c0_125 = arith.constant 0 : index
    %c3 = arith.constant 3 : index
    %c0_126 = arith.constant 0 : index
    %503 = vector.load %arg21[%c0_125, %c3, %c0_126] : memref<8x8x256xf32, #tpu.memory_space<vmem>>, vector<8x1x256xf32>
    %504 = vector.shape_cast %503 : vector<8x1x256xf32> to vector<8x256xf32>
    %505 = vector.shape_cast %502 : vector<8x256xf32> to vector<8x1x256xf32>
    tpu.vector_store %arg21[%c0_125, %c3, %c0_126], %505 {strides = array<i32>} : memref<8x8x256xf32, #tpu.memory_space<vmem>>, vector<8x1x256xf32>,
    %cst_127 = arith.constant 0.000000e+00 : f32
    %506 = vector.broadcast %cst_127 : f32 to vector<8x4x256xf32>
    %c0_128 = arith.constant 0 : index
    %c4 = arith.constant 4 : index
    %c0_129 = arith.constant 0 : index
    %507 = vector.load %arg21[%c0_128, %c4, %c0_129] : memref<8x8x256xf32, #tpu.memory_space<vmem>>, vector<8x4x256xf32>
    tpu.vector_store %arg21[%c0_128, %c4, %c0_129], %506 {strides = array<i32>} : memref<8x8x256xf32, #tpu.memory_space<vmem>>, vector<8x4x256xf32>,
    %c0_130 = arith.constant 0 : index
    %c0_131 = arith.constant 0 : index
    %c0_132 = arith.constant 0 : index
    %508 = vector.load %arg21[%c0_130, %c0_131, %c0_132] : memref<8x8x256xf32, #tpu.memory_space<vmem>>, vector<8x8x256xf32>
    %509 = vector.shape_cast %508 : vector<8x8x256xf32> to vector<64x256xf32>
    %510 = arith.truncf %509 : vector<64x256xf32> to vector<64x256xbf16>
    %c0_133 = arith.constant 0 : index
    %c0_134 = arith.constant 0 : index
    %511 = vector.load %arg7[%c0_133, %c0_134] : memref<256x256xbf16, #tpu.memory_space<vmem>>, vector<256x256xbf16>
    %cst_135 = arith.constant dense<0.000000e+00> : vector<64x256xf32>
    %512 = tpu.matmul %510, %511, %cst_135 {dimension_numbers = #tpu.dot_dimension_numbers<[1], [0], [0], [1], [0, 0, 1, 1], [], []>} : vector<64x256xbf16>, vector<256x256xbf16>, vector<64x256xf32> -> vector<64x256xf32>
    %c0_136 = arith.constant 0 : index
    %c0_137 = arith.constant 0 : index
    %513 = vector.load %arg9[%c0_136, %c0_137] : memref<1x256xf32, #tpu.memory_space<vmem>>, vector<1x256xf32>
    %514 = vector.broadcast %513 : vector<1x256xf32> to vector<64x256xf32>
    %515 = arith.addf %512, %514 : vector<64x256xf32>
    %c0_138 = arith.constant 0 : index
    %c0_139 = arith.constant 0 : index
    %516 = vector.load %arg19[%c0_138, %c0_139] : memref<64x256xf32, #tpu.memory_space<vmem>>, vector<64x256xf32>
    tpu.vector_store %arg19[%c0_138, %c0_139], %515 {strides = array<i32>} : memref<64x256xf32, #tpu.memory_space<vmem>>, vector<64x256xf32>,
    %c0_140 = arith.constant 0 : index
    %c0_141 = arith.constant 0 : index
    %517 = vector.load %arg8[%c0_140, %c0_141] : memref<64x256xbf16, #tpu.memory_space<vmem>>, vector<64x256xbf16>
    %cst_142 = arith.constant 0.000000e+00 : f32
    %518 = vector.broadcast %cst_142 : f32 to vector<8x64xf32>
    %cst_143 = arith.constant 0.000000e+00 : f32
    %519 = vector.broadcast %cst_143 : f32 to vector<8x32xf32>
    %c0_i32_144 = arith.constant 0 : i32
    %c7_i32_145 = arith.constant 7 : i32
    %520 = arith.subi %c7_i32_145, %c0_i32_144 : i32
    %521 = arith.truncf %518 : vector<8x64xf32> to vector<8x64xbf16>
    %cst_146 = arith.constant dense<0.000000e+00> : vector<8x256xf32>
    %522 = tpu.matmul %521, %517, %cst_146 {dimension_numbers = #tpu.dot_dimension_numbers<[1], [0], [0], [1], [0, 0, 1, 1], [], []>} : vector<8x64xbf16>, vector<64x256xbf16>, vector<8x256xf32> -> vector<8x256xf32>
    %c8_i32_147 = arith.constant 8 : i32
    %523 = arith.muli %c0_i32_144, %c8_i32_147 : i32
    %524 = tpu.assume_multiple %523, 8 : i32
    %c8_i32_148 = arith.constant 8 : i32
    %525 = arith.muli %520, %c8_i32_148 : i32
    %526 = tpu.assume_multiple %525, 8 : i32
    %527 = arith.index_cast %524 : i32 to index
    %c0_149 = arith.constant 0 : index
    %528 = vector.load %arg19[%527, %c0_149] : memref<64x256xf32, #tpu.memory_space<vmem>>, vector<8x128xf32>
    %529 = vector.extract_strided_slice %522 {offsets = [0, 0], sizes = [8, 128], strides = [1, 1]} : vector<8x256xf32> to vector<8x128xf32>
    %530 = arith.addf %528, %529 : vector<8x128xf32>
    %531 = arith.index_cast %526 : i32 to index
    %c128_150 = arith.constant 128 : index
    %532 = vector.load %arg19[%531, %c128_150] : memref<64x256xf32, #tpu.memory_space<vmem>>, vector<8x128xf32>
    %533 = vector.extract_strided_slice %522 {offsets = [0, 128], sizes = [8, 128], strides = [1, 1]} : vector<8x256xf32> to vector<8x128xf32>
    %534 = arith.addf %532, %533 : vector<8x128xf32>
    %535 = tpu.concatenate %530, %534 in 1 : vector<8x128xf32>, vector<8x128xf32> -> vector<8x256xf32>
    %536 = arith.negf %535 : vector<8x256xf32>
    %537 = math.exp %536 : vector<8x256xf32>
    %cst_151 = arith.constant 1.000000e+00 : f32
    %538 = vector.broadcast %cst_151 : f32 to vector<8x256xf32>
    %539 = arith.addf %538, %537 : vector<8x256xf32>
    %540 = arith.divf %538, %539 : vector<8x256xf32>
    %541 = math.tanh %535 : vector<8x256xf32>
    %542 = vector.extract_strided_slice %540 {offsets = [0, 32], sizes = [8, 32], strides = [1, 1]} : vector<8x256xf32> to vector<8x32xf32>
    %543 = arith.mulf %542, %519 : vector<8x32xf32>
    %544 = vector.extract_strided_slice %540 {offsets = [0, 0], sizes = [8, 32], strides = [1, 1]} : vector<8x256xf32> to vector<8x32xf32>
    %545 = vector.extract_strided_slice %541 {offsets = [0, 64], sizes = [8, 32], strides = [1, 1]} : vector<8x256xf32> to vector<8x32xf32>
    %546 = arith.mulf %544, %545 : vector<8x32xf32>
    %547 = arith.addf %543, %546 : vector<8x32xf32>
    %548 = vector.extract_strided_slice %540 {offsets = [0, 96], sizes = [8, 32], strides = [1, 1]} : vector<8x256xf32> to vector<8x32xf32>
    %549 = math.tanh %547 : vector<8x32xf32>
    %550 = arith.mulf %548, %549 : vector<8x32xf32>
    %551 = vector.extract_strided_slice %540 {offsets = [0, 160], sizes = [8, 32], strides = [1, 1]} : vector<8x256xf32> to vector<8x32xf32>
    %552 = arith.mulf %551, %519 : vector<8x32xf32>
    %553 = vector.extract_strided_slice %540 {offsets = [0, 128], sizes = [8, 32], strides = [1, 1]} : vector<8x256xf32> to vector<8x32xf32>
    %554 = vector.extract_strided_slice %541 {offsets = [0, 192], sizes = [8, 32], strides = [1, 1]} : vector<8x256xf32> to vector<8x32xf32>
    %555 = arith.mulf %553, %554 : vector<8x32xf32>
    %556 = arith.addf %552, %555 : vector<8x32xf32>
    %557 = vector.extract_strided_slice %540 {offsets = [0, 224], sizes = [8, 32], strides = [1, 1]} : vector<8x256xf32> to vector<8x32xf32>
    %558 = math.tanh %556 : vector<8x32xf32>
    %559 = arith.mulf %557, %558 : vector<8x32xf32>
    %560 = arith.index_cast %c0_i32_144 : i32 to index
    %c0_152 = arith.constant 0 : index
    %c0_153 = arith.constant 0 : index
    %561 = vector.load %arg22[%560, %c0_152, %c0_153] : memref<8x8x64xf32, #tpu.memory_space<vmem>>, vector<1x8x32xf32>
    %562 = vector.shape_cast %561 : vector<1x8x32xf32> to vector<8x32xf32>
    %563 = vector.shape_cast %550 : vector<8x32xf32> to vector<1x8x32xf32>
    tpu.vector_store %arg22[%560, %c0_152, %c0_153], %563 {strides = array<i32>} : memref<8x8x64xf32, #tpu.memory_space<vmem>>, vector<1x8x32xf32>,
    %564 = arith.index_cast %520 : i32 to index
    %c0_154 = arith.constant 0 : index
    %c32_155 = arith.constant 32 : index
    %565 = vector.load %arg22[%564, %c0_154, %c32_155] : memref<8x8x64xf32, #tpu.memory_space<vmem>>, vector<1x8x32xf32>
    %566 = vector.shape_cast %565 : vector<1x8x32xf32> to vector<8x32xf32>
    %567 = vector.shape_cast %559 : vector<8x32xf32> to vector<1x8x32xf32>
    tpu.vector_store %arg22[%564, %c0_154, %c32_155], %567 {strides = array<i32>} : memref<8x8x64xf32, #tpu.memory_space<vmem>>, vector<1x8x32xf32>,
    %568 = tpu.concatenate %550, %559 in 1 : vector<8x32xf32>, vector<8x32xf32> -> vector<8x64xf32>
    %c1_i32_156 = arith.constant 1 : i32
    %c7_i32_157 = arith.constant 7 : i32
    %569 = arith.subi %c7_i32_157, %c1_i32_156 : i32
    %570 = arith.truncf %568 : vector<8x64xf32> to vector<8x64xbf16>
    %cst_158 = arith.constant dense<0.000000e+00> : vector<8x256xf32>
    %571 = tpu.matmul %570, %517, %cst_158 {dimension_numbers = #tpu.dot_dimension_numbers<[1], [0], [0], [1], [0, 0, 1, 1], [], []>} : vector<8x64xbf16>, vector<64x256xbf16>, vector<8x256xf32> -> vector<8x256xf32>
    %c8_i32_159 = arith.constant 8 : i32
    %572 = arith.muli %c1_i32_156, %c8_i32_159 : i32
    %573 = tpu.assume_multiple %572, 8 : i32
    %c8_i32_160 = arith.constant 8 : i32
    %574 = arith.muli %569, %c8_i32_160 : i32
    %575 = tpu.assume_multiple %574, 8 : i32
    %576 = arith.index_cast %573 : i32 to index
    %c0_161 = arith.constant 0 : index
    %577 = vector.load %arg19[%576, %c0_161] : memref<64x256xf32, #tpu.memory_space<vmem>>, vector<8x128xf32>
    %578 = vector.extract_strided_slice %571 {offsets = [0, 0], sizes = [8, 128], strides = [1, 1]} : vector<8x256xf32> to vector<8x128xf32>
    %579 = arith.addf %577, %578 : vector<8x128xf32>
    %580 = arith.index_cast %575 : i32 to index
    %c128_162 = arith.constant 128 : index
    %581 = vector.load %arg19[%580, %c128_162] : memref<64x256xf32, #tpu.memory_space<vmem>>, vector<8x128xf32>
    %582 = vector.extract_strided_slice %571 {offsets = [0, 128], sizes = [8, 128], strides = [1, 1]} : vector<8x256xf32> to vector<8x128xf32>
    %583 = arith.addf %581, %582 : vector<8x128xf32>
    %584 = tpu.concatenate %579, %583 in 1 : vector<8x128xf32>, vector<8x128xf32> -> vector<8x256xf32>
    %585 = arith.negf %584 : vector<8x256xf32>
    %586 = math.exp %585 : vector<8x256xf32>
    %cst_163 = arith.constant 1.000000e+00 : f32
    %587 = vector.broadcast %cst_163 : f32 to vector<8x256xf32>
    %588 = arith.addf %587, %586 : vector<8x256xf32>
    %589 = arith.divf %587, %588 : vector<8x256xf32>
    %590 = math.tanh %584 : vector<8x256xf32>
    %591 = vector.extract_strided_slice %589 {offsets = [0, 32], sizes = [8, 32], strides = [1, 1]} : vector<8x256xf32> to vector<8x32xf32>
    %592 = arith.mulf %591, %547 : vector<8x32xf32>
    %593 = vector.extract_strided_slice %589 {offsets = [0, 0], sizes = [8, 32], strides = [1, 1]} : vector<8x256xf32> to vector<8x32xf32>
    %594 = vector.extract_strided_slice %590 {offsets = [0, 64], sizes = [8, 32], strides = [1, 1]} : vector<8x256xf32> to vector<8x32xf32>
    %595 = arith.mulf %593, %594 : vector<8x32xf32>
    %596 = arith.addf %592, %595 : vector<8x32xf32>
    %597 = vector.extract_strided_slice %589 {offsets = [0, 96], sizes = [8, 32], strides = [1, 1]} : vector<8x256xf32> to vector<8x32xf32>
    %598 = math.tanh %596 : vector<8x32xf32>
    %599 = arith.mulf %597, %598 : vector<8x32xf32>
    %600 = vector.extract_strided_slice %589 {offsets = [0, 160], sizes = [8, 32], strides = [1, 1]} : vector<8x256xf32> to vector<8x32xf32>
    %601 = arith.mulf %600, %556 : vector<8x32xf32>
    %602 = vector.extract_strided_slice %589 {offsets = [0, 128], sizes = [8, 32], strides = [1, 1]} : vector<8x256xf32> to vector<8x32xf32>
    %603 = vector.extract_strided_slice %590 {offsets = [0, 192], sizes = [8, 32], strides = [1, 1]} : vector<8x256xf32> to vector<8x32xf32>
    %604 = arith.mulf %602, %603 : vector<8x32xf32>
    %605 = arith.addf %601, %604 : vector<8x32xf32>
    %606 = vector.extract_strided_slice %589 {offsets = [0, 224], sizes = [8, 32], strides = [1, 1]} : vector<8x256xf32> to vector<8x32xf32>
    %607 = math.tanh %605 : vector<8x32xf32>
    %608 = arith.mulf %606, %607 : vector<8x32xf32>
    %609 = arith.index_cast %c1_i32_156 : i32 to index
    %c0_164 = arith.constant 0 : index
    %c0_165 = arith.constant 0 : index
    %610 = vector.load %arg22[%609, %c0_164, %c0_165] : memref<8x8x64xf32, #tpu.memory_space<vmem>>, vector<1x8x32xf32>
    %611 = vector.shape_cast %610 : vector<1x8x32xf32> to vector<8x32xf32>
    %612 = vector.shape_cast %599 : vector<8x32xf32> to vector<1x8x32xf32>
    tpu.vector_store %arg22[%609, %c0_164, %c0_165], %612 {strides = array<i32>} : memref<8x8x64xf32, #tpu.memory_space<vmem>>, vector<1x8x32xf32>,
    %613 = arith.index_cast %569 : i32 to index
    %c0_166 = arith.constant 0 : index
    %c32_167 = arith.constant 32 : index
    %614 = vector.load %arg22[%613, %c0_166, %c32_167] : memref<8x8x64xf32, #tpu.memory_space<vmem>>, vector<1x8x32xf32>
    %615 = vector.shape_cast %614 : vector<1x8x32xf32> to vector<8x32xf32>
    %616 = vector.shape_cast %608 : vector<8x32xf32> to vector<1x8x32xf32>
    tpu.vector_store %arg22[%613, %c0_166, %c32_167], %616 {strides = array<i32>} : memref<8x8x64xf32, #tpu.memory_space<vmem>>, vector<1x8x32xf32>,
    %617 = tpu.concatenate %599, %608 in 1 : vector<8x32xf32>, vector<8x32xf32> -> vector<8x64xf32>
    %c2_i32_168 = arith.constant 2 : i32
    %c7_i32_169 = arith.constant 7 : i32
    %618 = arith.subi %c7_i32_169, %c2_i32_168 : i32
    %619 = arith.truncf %617 : vector<8x64xf32> to vector<8x64xbf16>
    %cst_170 = arith.constant dense<0.000000e+00> : vector<8x256xf32>
    %620 = tpu.matmul %619, %517, %cst_170 {dimension_numbers = #tpu.dot_dimension_numbers<[1], [0], [0], [1], [0, 0, 1, 1], [], []>} : vector<8x64xbf16>, vector<64x256xbf16>, vector<8x256xf32> -> vector<8x256xf32>
    %c8_i32_171 = arith.constant 8 : i32
    %621 = arith.muli %c2_i32_168, %c8_i32_171 : i32
    %622 = tpu.assume_multiple %621, 8 : i32
    %c8_i32_172 = arith.constant 8 : i32
    %623 = arith.muli %618, %c8_i32_172 : i32
    %624 = tpu.assume_multiple %623, 8 : i32
    %625 = arith.index_cast %622 : i32 to index
    %c0_173 = arith.constant 0 : index
    %626 = vector.load %arg19[%625, %c0_173] : memref<64x256xf32, #tpu.memory_space<vmem>>, vector<8x128xf32>
    %627 = vector.extract_strided_slice %620 {offsets = [0, 0], sizes = [8, 128], strides = [1, 1]} : vector<8x256xf32> to vector<8x128xf32>
    %628 = arith.addf %626, %627 : vector<8x128xf32>
    %629 = arith.index_cast %624 : i32 to index
    %c128_174 = arith.constant 128 : index
    %630 = vector.load %arg19[%629, %c128_174] : memref<64x256xf32, #tpu.memory_space<vmem>>, vector<8x128xf32>
    %631 = vector.extract_strided_slice %620 {offsets = [0, 128], sizes = [8, 128], strides = [1, 1]} : vector<8x256xf32> to vector<8x128xf32>
    %632 = arith.addf %630, %631 : vector<8x128xf32>
    %633 = tpu.concatenate %628, %632 in 1 : vector<8x128xf32>, vector<8x128xf32> -> vector<8x256xf32>
    %634 = arith.negf %633 : vector<8x256xf32>
    %635 = math.exp %634 : vector<8x256xf32>
    %cst_175 = arith.constant 1.000000e+00 : f32
    %636 = vector.broadcast %cst_175 : f32 to vector<8x256xf32>
    %637 = arith.addf %636, %635 : vector<8x256xf32>
    %638 = arith.divf %636, %637 : vector<8x256xf32>
    %639 = math.tanh %633 : vector<8x256xf32>
    %640 = vector.extract_strided_slice %638 {offsets = [0, 32], sizes = [8, 32], strides = [1, 1]} : vector<8x256xf32> to vector<8x32xf32>
    %641 = arith.mulf %640, %596 : vector<8x32xf32>
    %642 = vector.extract_strided_slice %638 {offsets = [0, 0], sizes = [8, 32], strides = [1, 1]} : vector<8x256xf32> to vector<8x32xf32>
    %643 = vector.extract_strided_slice %639 {offsets = [0, 64], sizes = [8, 32], strides = [1, 1]} : vector<8x256xf32> to vector<8x32xf32>
    %644 = arith.mulf %642, %643 : vector<8x32xf32>
    %645 = arith.addf %641, %644 : vector<8x32xf32>
    %646 = vector.extract_strided_slice %638 {offsets = [0, 96], sizes = [8, 32], strides = [1, 1]} : vector<8x256xf32> to vector<8x32xf32>
    %647 = math.tanh %645 : vector<8x32xf32>
    %648 = arith.mulf %646, %647 : vector<8x32xf32>
    %649 = vector.extract_strided_slice %638 {offsets = [0, 160], sizes = [8, 32], strides = [1, 1]} : vector<8x256xf32> to vector<8x32xf32>
    %650 = arith.mulf %649, %605 : vector<8x32xf32>
    %651 = vector.extract_strided_slice %638 {offsets = [0, 128], sizes = [8, 32], strides = [1, 1]} : vector<8x256xf32> to vector<8x32xf32>
    %652 = vector.extract_strided_slice %639 {offsets = [0, 192], sizes = [8, 32], strides = [1, 1]} : vector<8x256xf32> to vector<8x32xf32>
    %653 = arith.mulf %651, %652 : vector<8x32xf32>
    %654 = arith.addf %650, %653 : vector<8x32xf32>
    %655 = vector.extract_strided_slice %638 {offsets = [0, 224], sizes = [8, 32], strides = [1, 1]} : vector<8x256xf32> to vector<8x32xf32>
    %656 = math.tanh %654 : vector<8x32xf32>
    %657 = arith.mulf %655, %656 : vector<8x32xf32>
    %658 = arith.index_cast %c2_i32_168 : i32 to index
    %c0_176 = arith.constant 0 : index
    %c0_177 = arith.constant 0 : index
    %659 = vector.load %arg22[%658, %c0_176, %c0_177] : memref<8x8x64xf32, #tpu.memory_space<vmem>>, vector<1x8x32xf32>
    %660 = vector.shape_cast %659 : vector<1x8x32xf32> to vector<8x32xf32>
    %661 = vector.shape_cast %648 : vector<8x32xf32> to vector<1x8x32xf32>
    tpu.vector_store %arg22[%658, %c0_176, %c0_177], %661 {strides = array<i32>} : memref<8x8x64xf32, #tpu.memory_space<vmem>>, vector<1x8x32xf32>,
    %662 = arith.index_cast %618 : i32 to index
    %c0_178 = arith.constant 0 : index
    %c32_179 = arith.constant 32 : index
    %663 = vector.load %arg22[%662, %c0_178, %c32_179] : memref<8x8x64xf32, #tpu.memory_space<vmem>>, vector<1x8x32xf32>
    %664 = vector.shape_cast %663 : vector<1x8x32xf32> to vector<8x32xf32>
    %665 = vector.shape_cast %657 : vector<8x32xf32> to vector<1x8x32xf32>
    tpu.vector_store %arg22[%662, %c0_178, %c32_179], %665 {strides = array<i32>} : memref<8x8x64xf32, #tpu.memory_space<vmem>>, vector<1x8x32xf32>,
    %666 = tpu.concatenate %648, %657 in 1 : vector<8x32xf32>, vector<8x32xf32> -> vector<8x64xf32>
    %c3_i32_180 = arith.constant 3 : i32
    %c7_i32_181 = arith.constant 7 : i32
    %667 = arith.subi %c7_i32_181, %c3_i32_180 : i32
    %668 = arith.truncf %666 : vector<8x64xf32> to vector<8x64xbf16>
    %cst_182 = arith.constant dense<0.000000e+00> : vector<8x256xf32>
    %669 = tpu.matmul %668, %517, %cst_182 {dimension_numbers = #tpu.dot_dimension_numbers<[1], [0], [0], [1], [0, 0, 1, 1], [], []>} : vector<8x64xbf16>, vector<64x256xbf16>, vector<8x256xf32> -> vector<8x256xf32>
    %c8_i32_183 = arith.constant 8 : i32
    %670 = arith.muli %c3_i32_180, %c8_i32_183 : i32
    %671 = tpu.assume_multiple %670, 8 : i32
    %c8_i32_184 = arith.constant 8 : i32
    %672 = arith.muli %667, %c8_i32_184 : i32
    %673 = tpu.assume_multiple %672, 8 : i32
    %674 = arith.index_cast %671 : i32 to index
    %c0_185 = arith.constant 0 : index
    %675 = vector.load %arg19[%674, %c0_185] : memref<64x256xf32, #tpu.memory_space<vmem>>, vector<8x128xf32>
    %676 = vector.extract_strided_slice %669 {offsets = [0, 0], sizes = [8, 128], strides = [1, 1]} : vector<8x256xf32> to vector<8x128xf32>
    %677 = arith.addf %675, %676 : vector<8x128xf32>
    %678 = arith.index_cast %673 : i32 to index
    %c128_186 = arith.constant 128 : index
    %679 = vector.load %arg19[%678, %c128_186] : memref<64x256xf32, #tpu.memory_space<vmem>>, vector<8x128xf32>
    %680 = vector.extract_strided_slice %669 {offsets = [0, 128], sizes = [8, 128], strides = [1, 1]} : vector<8x256xf32> to vector<8x128xf32>
    %681 = arith.addf %679, %680 : vector<8x128xf32>
    %682 = tpu.concatenate %677, %681 in 1 : vector<8x128xf32>, vector<8x128xf32> -> vector<8x256xf32>
    %683 = arith.negf %682 : vector<8x256xf32>
    %684 = math.exp %683 : vector<8x256xf32>
    %cst_187 = arith.constant 1.000000e+00 : f32
    %685 = vector.broadcast %cst_187 : f32 to vector<8x256xf32>
    %686 = arith.addf %685, %684 : vector<8x256xf32>
    %687 = arith.divf %685, %686 : vector<8x256xf32>
    %688 = math.tanh %682 : vector<8x256xf32>
    %689 = vector.extract_strided_slice %687 {offsets = [0, 32], sizes = [8, 32], strides = [1, 1]} : vector<8x256xf32> to vector<8x32xf32>
    %690 = arith.mulf %689, %645 : vector<8x32xf32>
    %691 = vector.extract_strided_slice %687 {offsets = [0, 0], sizes = [8, 32], strides = [1, 1]} : vector<8x256xf32> to vector<8x32xf32>
    %692 = vector.extract_strided_slice %688 {offsets = [0, 64], sizes = [8, 32], strides = [1, 1]} : vector<8x256xf32> to vector<8x32xf32>
    %693 = arith.mulf %691, %692 : vector<8x32xf32>
    %694 = arith.addf %690, %693 : vector<8x32xf32>
    %695 = vector.extract_strided_slice %687 {offsets = [0, 96], sizes = [8, 32], strides = [1, 1]} : vector<8x256xf32> to vector<8x32xf32>
    %696 = math.tanh %694 : vector<8x32xf32>
    %697 = arith.mulf %695, %696 : vector<8x32xf32>
    %698 = vector.extract_strided_slice %687 {offsets = [0, 160], sizes = [8, 32], strides = [1, 1]} : vector<8x256xf32> to vector<8x32xf32>
    %699 = arith.mulf %698, %654 : vector<8x32xf32>
    %700 = vector.extract_strided_slice %687 {offsets = [0, 128], sizes = [8, 32], strides = [1, 1]} : vector<8x256xf32> to vector<8x32xf32>
    %701 = vector.extract_strided_slice %688 {offsets = [0, 192], sizes = [8, 32], strides = [1, 1]} : vector<8x256xf32> to vector<8x32xf32>
    %702 = arith.mulf %700, %701 : vector<8x32xf32>
    %703 = arith.addf %699, %702 : vector<8x32xf32>
    %704 = vector.extract_strided_slice %687 {offsets = [0, 224], sizes = [8, 32], strides = [1, 1]} : vector<8x256xf32> to vector<8x32xf32>
    %705 = math.tanh %703 : vector<8x32xf32>
    %706 = arith.mulf %704, %705 : vector<8x32xf32>
    %707 = arith.index_cast %c3_i32_180 : i32 to index
    %c0_188 = arith.constant 0 : index
    %c0_189 = arith.constant 0 : index
    %708 = vector.load %arg22[%707, %c0_188, %c0_189] : memref<8x8x64xf32, #tpu.memory_space<vmem>>, vector<1x8x32xf32>
    %709 = vector.shape_cast %708 : vector<1x8x32xf32> to vector<8x32xf32>
    %710 = vector.shape_cast %697 : vector<8x32xf32> to vector<1x8x32xf32>
    tpu.vector_store %arg22[%707, %c0_188, %c0_189], %710 {strides = array<i32>} : memref<8x8x64xf32, #tpu.memory_space<vmem>>, vector<1x8x32xf32>,
    %711 = arith.index_cast %667 : i32 to index
    %c0_190 = arith.constant 0 : index
    %c32_191 = arith.constant 32 : index
    %712 = vector.load %arg22[%711, %c0_190, %c32_191] : memref<8x8x64xf32, #tpu.memory_space<vmem>>, vector<1x8x32xf32>
    %713 = vector.shape_cast %712 : vector<1x8x32xf32> to vector<8x32xf32>
    %714 = vector.shape_cast %706 : vector<8x32xf32> to vector<1x8x32xf32>
    tpu.vector_store %arg22[%711, %c0_190, %c32_191], %714 {strides = array<i32>} : memref<8x8x64xf32, #tpu.memory_space<vmem>>, vector<1x8x32xf32>,
    %715 = tpu.concatenate %697, %706 in 1 : vector<8x32xf32>, vector<8x32xf32> -> vector<8x64xf32>
    %c4_i32_192 = arith.constant 4 : i32
    %c7_i32_193 = arith.constant 7 : i32
    %716 = arith.subi %c7_i32_193, %c4_i32_192 : i32
    %717 = arith.truncf %715 : vector<8x64xf32> to vector<8x64xbf16>
    %cst_194 = arith.constant dense<0.000000e+00> : vector<8x256xf32>
    %718 = tpu.matmul %717, %517, %cst_194 {dimension_numbers = #tpu.dot_dimension_numbers<[1], [0], [0], [1], [0, 0, 1, 1], [], []>} : vector<8x64xbf16>, vector<64x256xbf16>, vector<8x256xf32> -> vector<8x256xf32>
    %c8_i32_195 = arith.constant 8 : i32
    %719 = arith.muli %c4_i32_192, %c8_i32_195 : i32
    %720 = tpu.assume_multiple %719, 8 : i32
    %c8_i32_196 = arith.constant 8 : i32
    %721 = arith.muli %716, %c8_i32_196 : i32
    %722 = tpu.assume_multiple %721, 8 : i32
    %723 = arith.index_cast %720 : i32 to index
    %c0_197 = arith.constant 0 : index
    %724 = vector.load %arg19[%723, %c0_197] : memref<64x256xf32, #tpu.memory_space<vmem>>, vector<8x128xf32>
    %725 = vector.extract_strided_slice %718 {offsets = [0, 0], sizes = [8, 128], strides = [1, 1]} : vector<8x256xf32> to vector<8x128xf32>
    %726 = arith.addf %724, %725 : vector<8x128xf32>
    %727 = arith.index_cast %722 : i32 to index
    %c128_198 = arith.constant 128 : index
    %728 = vector.load %arg19[%727, %c128_198] : memref<64x256xf32, #tpu.memory_space<vmem>>, vector<8x128xf32>
    %729 = vector.extract_strided_slice %718 {offsets = [0, 128], sizes = [8, 128], strides = [1, 1]} : vector<8x256xf32> to vector<8x128xf32>
    %730 = arith.addf %728, %729 : vector<8x128xf32>
    %731 = tpu.concatenate %726, %730 in 1 : vector<8x128xf32>, vector<8x128xf32> -> vector<8x256xf32>
    %732 = arith.negf %731 : vector<8x256xf32>
    %733 = math.exp %732 : vector<8x256xf32>
    %cst_199 = arith.constant 1.000000e+00 : f32
    %734 = vector.broadcast %cst_199 : f32 to vector<8x256xf32>
    %735 = arith.addf %734, %733 : vector<8x256xf32>
    %736 = arith.divf %734, %735 : vector<8x256xf32>
    %737 = math.tanh %731 : vector<8x256xf32>
    %738 = vector.extract_strided_slice %736 {offsets = [0, 32], sizes = [8, 32], strides = [1, 1]} : vector<8x256xf32> to vector<8x32xf32>
    %739 = arith.mulf %738, %694 : vector<8x32xf32>
    %740 = vector.extract_strided_slice %736 {offsets = [0, 0], sizes = [8, 32], strides = [1, 1]} : vector<8x256xf32> to vector<8x32xf32>
    %741 = vector.extract_strided_slice %737 {offsets = [0, 64], sizes = [8, 32], strides = [1, 1]} : vector<8x256xf32> to vector<8x32xf32>
    %742 = arith.mulf %740, %741 : vector<8x32xf32>
    %743 = arith.addf %739, %742 : vector<8x32xf32>
    %744 = vector.extract_strided_slice %736 {offsets = [0, 96], sizes = [8, 32], strides = [1, 1]} : vector<8x256xf32> to vector<8x32xf32>
    %745 = math.tanh %743 : vector<8x32xf32>
    %746 = arith.mulf %744, %745 : vector<8x32xf32>
    %747 = vector.extract_strided_slice %736 {offsets = [0, 160], sizes = [8, 32], strides = [1, 1]} : vector<8x256xf32> to vector<8x32xf32>
    %748 = arith.mulf %747, %703 : vector<8x32xf32>
    %749 = vector.extract_strided_slice %736 {offsets = [0, 128], sizes = [8, 32], strides = [1, 1]} : vector<8x256xf32> to vector<8x32xf32>
    %750 = vector.extract_strided_slice %737 {offsets = [0, 192], sizes = [8, 32], strides = [1, 1]} : vector<8x256xf32> to vector<8x32xf32>
    %751 = arith.mulf %749, %750 : vector<8x32xf32>
    %752 = arith.addf %748, %751 : vector<8x32xf32>
    %753 = vector.extract_strided_slice %736 {offsets = [0, 224], sizes = [8, 32], strides = [1, 1]} : vector<8x256xf32> to vector<8x32xf32>
    %754 = math.tanh %752 : vector<8x32xf32>
    %755 = arith.mulf %753, %754 : vector<8x32xf32>
    %756 = arith.index_cast %c4_i32_192 : i32 to index
    %c0_200 = arith.constant 0 : index
    %c0_201 = arith.constant 0 : index
    %757 = vector.load %arg22[%756, %c0_200, %c0_201] : memref<8x8x64xf32, #tpu.memory_space<vmem>>, vector<1x8x32xf32>
    %758 = vector.shape_cast %757 : vector<1x8x32xf32> to vector<8x32xf32>
    %759 = vector.shape_cast %746 : vector<8x32xf32> to vector<1x8x32xf32>
    tpu.vector_store %arg22[%756, %c0_200, %c0_201], %759 {strides = array<i32>} : memref<8x8x64xf32, #tpu.memory_space<vmem>>, vector<1x8x32xf32>,
    %760 = arith.index_cast %716 : i32 to index
    %c0_202 = arith.constant 0 : index
    %c32_203 = arith.constant 32 : index
    %761 = vector.load %arg22[%760, %c0_202, %c32_203] : memref<8x8x64xf32, #tpu.memory_space<vmem>>, vector<1x8x32xf32>
    %762 = vector.shape_cast %761 : vector<1x8x32xf32> to vector<8x32xf32>
    %763 = vector.shape_cast %755 : vector<8x32xf32> to vector<1x8x32xf32>
    tpu.vector_store %arg22[%760, %c0_202, %c32_203], %763 {strides = array<i32>} : memref<8x8x64xf32, #tpu.memory_space<vmem>>, vector<1x8x32xf32>,
    %764 = tpu.concatenate %746, %755 in 1 : vector<8x32xf32>, vector<8x32xf32> -> vector<8x64xf32>
    %c5_i32_204 = arith.constant 5 : i32
    %c7_i32_205 = arith.constant 7 : i32
    %765 = arith.subi %c7_i32_205, %c5_i32_204 : i32
    %766 = arith.truncf %764 : vector<8x64xf32> to vector<8x64xbf16>
    %cst_206 = arith.constant dense<0.000000e+00> : vector<8x256xf32>
    %767 = tpu.matmul %766, %517, %cst_206 {dimension_numbers = #tpu.dot_dimension_numbers<[1], [0], [0], [1], [0, 0, 1, 1], [], []>} : vector<8x64xbf16>, vector<64x256xbf16>, vector<8x256xf32> -> vector<8x256xf32>
    %c8_i32_207 = arith.constant 8 : i32
    %768 = arith.muli %c5_i32_204, %c8_i32_207 : i32
    %769 = tpu.assume_multiple %768, 8 : i32
    %c8_i32_208 = arith.constant 8 : i32
    %770 = arith.muli %765, %c8_i32_208 : i32
    %771 = tpu.assume_multiple %770, 8 : i32
    %772 = arith.index_cast %769 : i32 to index
    %c0_209 = arith.constant 0 : index
    %773 = vector.load %arg19[%772, %c0_209] : memref<64x256xf32, #tpu.memory_space<vmem>>, vector<8x128xf32>
    %774 = vector.extract_strided_slice %767 {offsets = [0, 0], sizes = [8, 128], strides = [1, 1]} : vector<8x256xf32> to vector<8x128xf32>
    %775 = arith.addf %773, %774 : vector<8x128xf32>
    %776 = arith.index_cast %771 : i32 to index
    %c128_210 = arith.constant 128 : index
    %777 = vector.load %arg19[%776, %c128_210] : memref<64x256xf32, #tpu.memory_space<vmem>>, vector<8x128xf32>
    %778 = vector.extract_strided_slice %767 {offsets = [0, 128], sizes = [8, 128], strides = [1, 1]} : vector<8x256xf32> to vector<8x128xf32>
    %779 = arith.addf %777, %778 : vector<8x128xf32>
    %780 = tpu.concatenate %775, %779 in 1 : vector<8x128xf32>, vector<8x128xf32> -> vector<8x256xf32>
    %781 = arith.negf %780 : vector<8x256xf32>
    %782 = math.exp %781 : vector<8x256xf32>
    %cst_211 = arith.constant 1.000000e+00 : f32
    %783 = vector.broadcast %cst_211 : f32 to vector<8x256xf32>
    %784 = arith.addf %783, %782 : vector<8x256xf32>
    %785 = arith.divf %783, %784 : vector<8x256xf32>
    %786 = math.tanh %780 : vector<8x256xf32>
    %787 = vector.extract_strided_slice %785 {offsets = [0, 32], sizes = [8, 32], strides = [1, 1]} : vector<8x256xf32> to vector<8x32xf32>
    %788 = arith.mulf %787, %743 : vector<8x32xf32>
    %789 = vector.extract_strided_slice %785 {offsets = [0, 0], sizes = [8, 32], strides = [1, 1]} : vector<8x256xf32> to vector<8x32xf32>
    %790 = vector.extract_strided_slice %786 {offsets = [0, 64], sizes = [8, 32], strides = [1, 1]} : vector<8x256xf32> to vector<8x32xf32>
    %791 = arith.mulf %789, %790 : vector<8x32xf32>
    %792 = arith.addf %788, %791 : vector<8x32xf32>
    %793 = vector.extract_strided_slice %785 {offsets = [0, 96], sizes = [8, 32], strides = [1, 1]} : vector<8x256xf32> to vector<8x32xf32>
    %794 = math.tanh %792 : vector<8x32xf32>
    %795 = arith.mulf %793, %794 : vector<8x32xf32>
    %796 = vector.extract_strided_slice %785 {offsets = [0, 160], sizes = [8, 32], strides = [1, 1]} : vector<8x256xf32> to vector<8x32xf32>
    %797 = arith.mulf %796, %752 : vector<8x32xf32>
    %798 = vector.extract_strided_slice %785 {offsets = [0, 128], sizes = [8, 32], strides = [1, 1]} : vector<8x256xf32> to vector<8x32xf32>
    %799 = vector.extract_strided_slice %786 {offsets = [0, 192], sizes = [8, 32], strides = [1, 1]} : vector<8x256xf32> to vector<8x32xf32>
    %800 = arith.mulf %798, %799 : vector<8x32xf32>
    %801 = arith.addf %797, %800 : vector<8x32xf32>
    %802 = vector.extract_strided_slice %785 {offsets = [0, 224], sizes = [8, 32], strides = [1, 1]} : vector<8x256xf32> to vector<8x32xf32>
    %803 = math.tanh %801 : vector<8x32xf32>
    %804 = arith.mulf %802, %803 : vector<8x32xf32>
    %805 = arith.index_cast %c5_i32_204 : i32 to index
    %c0_212 = arith.constant 0 : index
    %c0_213 = arith.constant 0 : index
    %806 = vector.load %arg22[%805, %c0_212, %c0_213] : memref<8x8x64xf32, #tpu.memory_space<vmem>>, vector<1x8x32xf32>
    %807 = vector.shape_cast %806 : vector<1x8x32xf32> to vector<8x32xf32>
    %808 = vector.shape_cast %795 : vector<8x32xf32> to vector<1x8x32xf32>
    tpu.vector_store %arg22[%805, %c0_212, %c0_213], %808 {strides = array<i32>} : memref<8x8x64xf32, #tpu.memory_space<vmem>>, vector<1x8x32xf32>,
    %809 = arith.index_cast %765 : i32 to index
    %c0_214 = arith.constant 0 : index
    %c32_215 = arith.constant 32 : index
    %810 = vector.load %arg22[%809, %c0_214, %c32_215] : memref<8x8x64xf32, #tpu.memory_space<vmem>>, vector<1x8x32xf32>
    %811 = vector.shape_cast %810 : vector<1x8x32xf32> to vector<8x32xf32>
    %812 = vector.shape_cast %804 : vector<8x32xf32> to vector<1x8x32xf32>
    tpu.vector_store %arg22[%809, %c0_214, %c32_215], %812 {strides = array<i32>} : memref<8x8x64xf32, #tpu.memory_space<vmem>>, vector<1x8x32xf32>,
    %813 = tpu.concatenate %795, %804 in 1 : vector<8x32xf32>, vector<8x32xf32> -> vector<8x64xf32>
    %c6_i32_216 = arith.constant 6 : i32
    %c7_i32_217 = arith.constant 7 : i32
    %814 = arith.subi %c7_i32_217, %c6_i32_216 : i32
    %815 = arith.truncf %813 : vector<8x64xf32> to vector<8x64xbf16>
    %cst_218 = arith.constant dense<0.000000e+00> : vector<8x256xf32>
    %816 = tpu.matmul %815, %517, %cst_218 {dimension_numbers = #tpu.dot_dimension_numbers<[1], [0], [0], [1], [0, 0, 1, 1], [], []>} : vector<8x64xbf16>, vector<64x256xbf16>, vector<8x256xf32> -> vector<8x256xf32>
    %c8_i32_219 = arith.constant 8 : i32
    %817 = arith.muli %c6_i32_216, %c8_i32_219 : i32
    %818 = tpu.assume_multiple %817, 8 : i32
    %c8_i32_220 = arith.constant 8 : i32
    %819 = arith.muli %814, %c8_i32_220 : i32
    %820 = tpu.assume_multiple %819, 8 : i32
    %821 = arith.index_cast %818 : i32 to index
    %c0_221 = arith.constant 0 : index
    %822 = vector.load %arg19[%821, %c0_221] : memref<64x256xf32, #tpu.memory_space<vmem>>, vector<8x128xf32>
    %823 = vector.extract_strided_slice %816 {offsets = [0, 0], sizes = [8, 128], strides = [1, 1]} : vector<8x256xf32> to vector<8x128xf32>
    %824 = arith.addf %822, %823 : vector<8x128xf32>
    %825 = arith.index_cast %820 : i32 to index
    %c128_222 = arith.constant 128 : index
    %826 = vector.load %arg19[%825, %c128_222] : memref<64x256xf32, #tpu.memory_space<vmem>>, vector<8x128xf32>
    %827 = vector.extract_strided_slice %816 {offsets = [0, 128], sizes = [8, 128], strides = [1, 1]} : vector<8x256xf32> to vector<8x128xf32>
    %828 = arith.addf %826, %827 : vector<8x128xf32>
    %829 = tpu.concatenate %824, %828 in 1 : vector<8x128xf32>, vector<8x128xf32> -> vector<8x256xf32>
    %830 = arith.negf %829 : vector<8x256xf32>
    %831 = math.exp %830 : vector<8x256xf32>
    %cst_223 = arith.constant 1.000000e+00 : f32
    %832 = vector.broadcast %cst_223 : f32 to vector<8x256xf32>
    %833 = arith.addf %832, %831 : vector<8x256xf32>
    %834 = arith.divf %832, %833 : vector<8x256xf32>
    %835 = math.tanh %829 : vector<8x256xf32>
    %836 = vector.extract_strided_slice %834 {offsets = [0, 32], sizes = [8, 32], strides = [1, 1]} : vector<8x256xf32> to vector<8x32xf32>
    %837 = arith.mulf %836, %792 : vector<8x32xf32>
    %838 = vector.extract_strided_slice %834 {offsets = [0, 0], sizes = [8, 32], strides = [1, 1]} : vector<8x256xf32> to vector<8x32xf32>
    %839 = vector.extract_strided_slice %835 {offsets = [0, 64], sizes = [8, 32], strides = [1, 1]} : vector<8x256xf32> to vector<8x32xf32>
    %840 = arith.mulf %838, %839 : vector<8x32xf32>
    %841 = arith.addf %837, %840 : vector<8x32xf32>
    %842 = vector.extract_strided_slice %834 {offsets = [0, 96], sizes = [8, 32], strides = [1, 1]} : vector<8x256xf32> to vector<8x32xf32>
    %843 = math.tanh %841 : vector<8x32xf32>
    %844 = arith.mulf %842, %843 : vector<8x32xf32>
    %845 = vector.extract_strided_slice %834 {offsets = [0, 160], sizes = [8, 32], strides = [1, 1]} : vector<8x256xf32> to vector<8x32xf32>
    %846 = arith.mulf %845, %801 : vector<8x32xf32>
    %847 = vector.extract_strided_slice %834 {offsets = [0, 128], sizes = [8, 32], strides = [1, 1]} : vector<8x256xf32> to vector<8x32xf32>
    %848 = vector.extract_strided_slice %835 {offsets = [0, 192], sizes = [8, 32], strides = [1, 1]} : vector<8x256xf32> to vector<8x32xf32>
    %849 = arith.mulf %847, %848 : vector<8x32xf32>
    %850 = arith.addf %846, %849 : vector<8x32xf32>
    %851 = vector.extract_strided_slice %834 {offsets = [0, 224], sizes = [8, 32], strides = [1, 1]} : vector<8x256xf32> to vector<8x32xf32>
    %852 = math.tanh %850 : vector<8x32xf32>
    %853 = arith.mulf %851, %852 : vector<8x32xf32>
    %854 = arith.index_cast %c6_i32_216 : i32 to index
    %c0_224 = arith.constant 0 : index
    %c0_225 = arith.constant 0 : index
    %855 = vector.load %arg22[%854, %c0_224, %c0_225] : memref<8x8x64xf32, #tpu.memory_space<vmem>>, vector<1x8x32xf32>
    %856 = vector.shape_cast %855 : vector<1x8x32xf32> to vector<8x32xf32>
    %857 = vector.shape_cast %844 : vector<8x32xf32> to vector<1x8x32xf32>
    tpu.vector_store %arg22[%854, %c0_224, %c0_225], %857 {strides = array<i32>} : memref<8x8x64xf32, #tpu.memory_space<vmem>>, vector<1x8x32xf32>,
    %858 = arith.index_cast %814 : i32 to index
    %c0_226 = arith.constant 0 : index
    %c32_227 = arith.constant 32 : index
    %859 = vector.load %arg22[%858, %c0_226, %c32_227] : memref<8x8x64xf32, #tpu.memory_space<vmem>>, vector<1x8x32xf32>
    %860 = vector.shape_cast %859 : vector<1x8x32xf32> to vector<8x32xf32>
    %861 = vector.shape_cast %853 : vector<8x32xf32> to vector<1x8x32xf32>
    tpu.vector_store %arg22[%858, %c0_226, %c32_227], %861 {strides = array<i32>} : memref<8x8x64xf32, #tpu.memory_space<vmem>>, vector<1x8x32xf32>,
    %862 = tpu.concatenate %844, %853 in 1 : vector<8x32xf32>, vector<8x32xf32> -> vector<8x64xf32>
    %c7_i32_228 = arith.constant 7 : i32
    %c7_i32_229 = arith.constant 7 : i32
    %863 = arith.subi %c7_i32_229, %c7_i32_228 : i32
    %864 = arith.truncf %862 : vector<8x64xf32> to vector<8x64xbf16>
    %cst_230 = arith.constant dense<0.000000e+00> : vector<8x256xf32>
    %865 = tpu.matmul %864, %517, %cst_230 {dimension_numbers = #tpu.dot_dimension_numbers<[1], [0], [0], [1], [0, 0, 1, 1], [], []>} : vector<8x64xbf16>, vector<64x256xbf16>, vector<8x256xf32> -> vector<8x256xf32>
    %c8_i32_231 = arith.constant 8 : i32
    %866 = arith.muli %c7_i32_228, %c8_i32_231 : i32
    %867 = tpu.assume_multiple %866, 8 : i32
    %c8_i32_232 = arith.constant 8 : i32
    %868 = arith.muli %863, %c8_i32_232 : i32
    %869 = tpu.assume_multiple %868, 8 : i32
    %870 = arith.index_cast %867 : i32 to index
    %c0_233 = arith.constant 0 : index
    %871 = vector.load %arg19[%870, %c0_233] : memref<64x256xf32, #tpu.memory_space<vmem>>, vector<8x128xf32>
    %872 = vector.extract_strided_slice %865 {offsets = [0, 0], sizes = [8, 128], strides = [1, 1]} : vector<8x256xf32> to vector<8x128xf32>
    %873 = arith.addf %871, %872 : vector<8x128xf32>
    %874 = arith.index_cast %869 : i32 to index
    %c128_234 = arith.constant 128 : index
    %875 = vector.load %arg19[%874, %c128_234] : memref<64x256xf32, #tpu.memory_space<vmem>>, vector<8x128xf32>
    %876 = vector.extract_strided_slice %865 {offsets = [0, 128], sizes = [8, 128], strides = [1, 1]} : vector<8x256xf32> to vector<8x128xf32>
    %877 = arith.addf %875, %876 : vector<8x128xf32>
    %878 = tpu.concatenate %873, %877 in 1 : vector<8x128xf32>, vector<8x128xf32> -> vector<8x256xf32>
    %879 = arith.negf %878 : vector<8x256xf32>
    %880 = math.exp %879 : vector<8x256xf32>
    %cst_235 = arith.constant 1.000000e+00 : f32
    %881 = vector.broadcast %cst_235 : f32 to vector<8x256xf32>
    %882 = arith.addf %881, %880 : vector<8x256xf32>
    %883 = arith.divf %881, %882 : vector<8x256xf32>
    %884 = math.tanh %878 : vector<8x256xf32>
    %885 = vector.extract_strided_slice %883 {offsets = [0, 32], sizes = [8, 32], strides = [1, 1]} : vector<8x256xf32> to vector<8x32xf32>
    %886 = arith.mulf %885, %841 : vector<8x32xf32>
    %887 = vector.extract_strided_slice %883 {offsets = [0, 0], sizes = [8, 32], strides = [1, 1]} : vector<8x256xf32> to vector<8x32xf32>
    %888 = vector.extract_strided_slice %884 {offsets = [0, 64], sizes = [8, 32], strides = [1, 1]} : vector<8x256xf32> to vector<8x32xf32>
    %889 = arith.mulf %887, %888 : vector<8x32xf32>
    %890 = arith.addf %886, %889 : vector<8x32xf32>
    %891 = vector.extract_strided_slice %883 {offsets = [0, 96], sizes = [8, 32], strides = [1, 1]} : vector<8x256xf32> to vector<8x32xf32>
    %892 = math.tanh %890 : vector<8x32xf32>
    %893 = arith.mulf %891, %892 : vector<8x32xf32>
    %894 = vector.extract_strided_slice %883 {offsets = [0, 160], sizes = [8, 32], strides = [1, 1]} : vector<8x256xf32> to vector<8x32xf32>
    %895 = arith.mulf %894, %850 : vector<8x32xf32>
    %896 = vector.extract_strided_slice %883 {offsets = [0, 128], sizes = [8, 32], strides = [1, 1]} : vector<8x256xf32> to vector<8x32xf32>
    %897 = vector.extract_strided_slice %884 {offsets = [0, 192], sizes = [8, 32], strides = [1, 1]} : vector<8x256xf32> to vector<8x32xf32>
    %898 = arith.mulf %896, %897 : vector<8x32xf32>
    %899 = arith.addf %895, %898 : vector<8x32xf32>
    %900 = vector.extract_strided_slice %883 {offsets = [0, 224], sizes = [8, 32], strides = [1, 1]} : vector<8x256xf32> to vector<8x32xf32>
    %901 = math.tanh %899 : vector<8x32xf32>
    %902 = arith.mulf %900, %901 : vector<8x32xf32>
    %903 = arith.index_cast %c7_i32_228 : i32 to index
    %c0_236 = arith.constant 0 : index
    %c0_237 = arith.constant 0 : index
    %904 = vector.load %arg22[%903, %c0_236, %c0_237] : memref<8x8x64xf32, #tpu.memory_space<vmem>>, vector<1x8x32xf32>
    %905 = vector.shape_cast %904 : vector<1x8x32xf32> to vector<8x32xf32>
    %906 = vector.shape_cast %893 : vector<8x32xf32> to vector<1x8x32xf32>
    tpu.vector_store %arg22[%903, %c0_236, %c0_237], %906 {strides = array<i32>} : memref<8x8x64xf32, #tpu.memory_space<vmem>>, vector<1x8x32xf32>,
    %907 = arith.index_cast %863 : i32 to index
    %c0_238 = arith.constant 0 : index
    %c32_239 = arith.constant 32 : index
    %908 = vector.load %arg22[%907, %c0_238, %c32_239] : memref<8x8x64xf32, #tpu.memory_space<vmem>>, vector<1x8x32xf32>
    %909 = vector.shape_cast %908 : vector<1x8x32xf32> to vector<8x32xf32>
    %910 = vector.shape_cast %902 : vector<8x32xf32> to vector<1x8x32xf32>
    tpu.vector_store %arg22[%907, %c0_238, %c32_239], %910 {strides = array<i32>} : memref<8x8x64xf32, #tpu.memory_space<vmem>>, vector<1x8x32xf32>,
    %911 = tpu.concatenate %893, %902 in 1 : vector<8x32xf32>, vector<8x32xf32> -> vector<8x64xf32>
    %c8_i32_240 = arith.constant 8 : i32
    %c0_241 = arith.constant 0 : index
    %c0_242 = arith.constant 0 : index
    %c0_243 = arith.constant 0 : index
    %912 = vector.load %arg22[%c0_241, %c0_242, %c0_243] : memref<8x8x64xf32, #tpu.memory_space<vmem>>, vector<8x8x64xf32>
    %cst_244 = arith.constant dense<0.000000e+00> : vector<8x64xf32>
    %913 = vector.multi_reduction <add>, %912, %cst_244 [0] : vector<8x8x64xf32> to vector<8x64xf32>
    %cst_245 = arith.constant 8.000000e+00 : f32
    %914 = vector.broadcast %cst_245 : f32 to vector<8x64xf32>
    %915 = arith.divf %913, %914 : vector<8x64xf32>
    %cst_246 = arith.constant dense<0xFF800000> : vector<8x64xf32>
    %916 = vector.multi_reduction <maximumf>, %912, %cst_246 [0] : vector<8x8x64xf32> to vector<8x64xf32>
    %917 = tpu.concatenate %915, %916 in 1 : vector<8x64xf32>, vector<8x64xf32> -> vector<8x128xf32>
    %918 = vector.extract_strided_slice %917 {offsets = [0, 0], sizes = [2, 128], strides = [1, 1]} : vector<8x128xf32> to vector<2x128xf32>
    %919 = vector.extract_strided_slice %917 {offsets = [2, 0], sizes = [2, 128], strides = [1, 1]} : vector<8x128xf32> to vector<2x128xf32>
    %920 = tpu.concatenate %918, %919 in 1 : vector<2x128xf32>, vector<2x128xf32> -> vector<2x256xf32>
    %c0_247 = arith.constant 0 : index
    %c0_248 = arith.constant 0 : index
    %921 = vector.load %arg10[%c0_247, %c0_248] : memref<1x256xf32, #tpu.memory_space<vmem>>, vector<1x256xf32>
    %922 = vector.broadcast %921 : vector<1x256xf32> to vector<2x256xf32>
    %923 = arith.mulf %920, %922 : vector<2x256xf32>
    %c0_249 = arith.constant 0 : index
    %c0_250 = arith.constant 0 : index
    %924 = vector.load %arg11[%c0_249, %c0_250] : memref<1x256xf32, #tpu.memory_space<vmem>>, vector<1x256xf32>
    %925 = vector.broadcast %924 : vector<1x256xf32> to vector<2x256xf32>
    %926 = arith.addf %923, %925 : vector<2x256xf32>
    %927 = arith.truncf %926 : vector<2x256xf32> to vector<2x256xbf16>
    %c0_251 = arith.constant 0 : index
    %c0_252 = arith.constant 0 : index
    %928 = vector.load %arg12[%c0_251, %c0_252] : memref<256x128xbf16, #tpu.memory_space<vmem>>, vector<256x128xbf16>
    %cst_253 = arith.constant dense<0.000000e+00> : vector<2x128xf32>
    %929 = tpu.matmul %927, %928, %cst_253 {dimension_numbers = #tpu.dot_dimension_numbers<[1], [0], [0], [1], [0, 0, 1, 1], [], []>} : vector<2x256xbf16>, vector<256x128xbf16>, vector<2x128xf32> -> vector<2x128xf32>
    %c0_254 = arith.constant 0 : index
    %c0_255 = arith.constant 0 : index
    %930 = vector.load %arg13[%c0_254, %c0_255] : memref<1x128xf32, #tpu.memory_space<vmem>>, vector<1x128xf32>
    %931 = vector.broadcast %930 : vector<1x128xf32> to vector<2x128xf32>
    %932 = arith.addf %929, %931 : vector<2x128xf32>
    %cst_256 = arith.constant 0.000000e+00 : f32
    %933 = vector.broadcast %cst_256 : f32 to vector<2x128xf32>
    %934 = arith.maximumf %932, %933 : vector<2x128xf32>
    %c0_257 = arith.constant 0 : index
    %c0_258 = arith.constant 0 : index
    %935 = vector.load %arg14[%c0_257, %c0_258] : memref<1x128xf32, #tpu.memory_space<vmem>>, vector<1x128xf32>
    %936 = vector.broadcast %935 : vector<1x128xf32> to vector<2x128xf32>
    %937 = arith.mulf %934, %936 : vector<2x128xf32>
    %c0_259 = arith.constant 0 : index
    %c0_260 = arith.constant 0 : index
    %938 = vector.load %arg15[%c0_259, %c0_260] : memref<1x128xf32, #tpu.memory_space<vmem>>, vector<1x128xf32>
    %939 = vector.broadcast %938 : vector<1x128xf32> to vector<2x128xf32>
    %940 = arith.addf %937, %939 : vector<2x128xf32>
    %941 = arith.truncf %940 : vector<2x128xf32> to vector<2x128xbf16>
    %c0_261 = arith.constant 0 : index
    %c0_262 = arith.constant 0 : index
    %942 = vector.load %arg16[%c0_261, %c0_262] : memref<128x128xbf16, #tpu.memory_space<vmem>>, vector<128x128xbf16>
    %cst_263 = arith.constant dense<0.000000e+00> : vector<2x128xf32>
    %943 = tpu.matmul %941, %942, %cst_263 {dimension_numbers = #tpu.dot_dimension_numbers<[1], [0], [0], [1], [0, 0, 1, 1], [], []>} : vector<2x128xbf16>, vector<128x128xbf16>, vector<2x128xf32> -> vector<2x128xf32>
    %c0_264 = arith.constant 0 : index
    %c0_265 = arith.constant 0 : index
    %944 = vector.load %arg17[%c0_264, %c0_265] : memref<1x128xf32, #tpu.memory_space<vmem>>, vector<1x128xf32>
    %945 = vector.broadcast %944 : vector<1x128xf32> to vector<2x128xf32>
    %946 = arith.addf %943, %945 : vector<2x128xf32>
    %c0_266 = arith.constant 0 : index
    %c0_267 = arith.constant 0 : index
    %947 = vector.load %arg18[%c0_266, %c0_267] : memref<2x128xf32, #tpu.memory_space<vmem>>, vector<2x128xf32>
    tpu.vector_store %arg18[%c0_266, %c0_267], %946 {strides = array<i32>} : memref<2x128xf32, #tpu.memory_space<vmem>>, vector<2x128xf32>,
    return
  }
  func.func @transform_0(%arg0: i32) -> (i32, i32) {
    %c0_i32 = arith.constant 0 : i32
    %c0_i32_0 = arith.constant 0 : i32
    %c0_i32_1 = arith.constant 0 : i32
    return %c0_i32, %c0_i32_0 : i32, i32
  }
  func.func @transform_1(%arg0: i32) -> (i32, i32) {
    %c0_i32 = arith.constant 0 : i32
    %c0_i32_0 = arith.constant 0 : i32
    %c0_i32_1 = arith.constant 0 : i32
    return %c0_i32, %c0_i32_0 : i32, i32
  }
  func.func @transform_2(%arg0: i32) -> (i32, i32) {
    %c0_i32 = arith.constant 0 : i32
    %c0_i32_0 = arith.constant 0 : i32
    %c0_i32_1 = arith.constant 0 : i32
    return %c0_i32, %c0_i32_0 : i32, i32
  }
  func.func @transform_3(%arg0: i32) -> (i32, i32) {
    %c0_i32 = arith.constant 0 : i32
    %c0_i32_0 = arith.constant 0 : i32
    %c0_i32_1 = arith.constant 0 : i32
    return %c0_i32, %c0_i32_0 : i32, i32
  }
  func.func @transform_4(%arg0: i32) -> (i32, i32) {
    %c0_i32 = arith.constant 0 : i32
    %c0_i32_0 = arith.constant 0 : i32
    %c0_i32_1 = arith.constant 0 : i32
    return %c0_i32, %c0_i32_0 : i32, i32
  }
  func.func @transform_5(%arg0: i32) -> (i32, i32) {
    %c0_i32 = arith.constant 0 : i32
    %c0_i32_0 = arith.constant 0 : i32
    %c0_i32_1 = arith.constant 0 : i32
    return %c0_i32, %c0_i32_0 : i32, i32
  }
  func.func @transform_6(%arg0: i32) -> (i32, i32) {
    %c0_i32 = arith.constant 0 : i32
    %c0_i32_0 = arith.constant 0 : i32
    %c0_i32_1 = arith.constant 0 : i32
    return %c0_i32, %c0_i32_0 : i32, i32
  }
  func.func @transform_7(%arg0: i32) -> (i32, i32) {
    %c0_i32 = arith.constant 0 : i32
    %c0_i32_0 = arith.constant 0 : i32
    %c0_i32_1 = arith.constant 0 : i32
    return %c0_i32, %c0_i32_0 : i32, i32
  }
  func.func @transform_8(%arg0: i32) -> (i32, i32) {
    %c0_i32 = arith.constant 0 : i32
    %c0_i32_0 = arith.constant 0 : i32
    %c0_i32_1 = arith.constant 0 : i32
    return %c0_i32, %c0_i32_0 : i32, i32
  }
  func.func @transform_9(%arg0: i32) -> (i32, i32) {
    %c0_i32 = arith.constant 0 : i32
    %c0_i32_0 = arith.constant 0 : i32
    %c0_i32_1 = arith.constant 0 : i32
    return %c0_i32, %c0_i32_0 : i32, i32
  }
  func.func @transform_10(%arg0: i32) -> (i32, i32) {
    %c0_i32 = arith.constant 0 : i32
    %c0_i32_0 = arith.constant 0 : i32
    %c0_i32_1 = arith.constant 0 : i32
    return %c0_i32, %c0_i32_0 : i32, i32
  }
  func.func @transform_11(%arg0: i32) -> (i32, i32) {
    %c0_i32 = arith.constant 0 : i32
    %c0_i32_0 = arith.constant 0 : i32
    %c0_i32_1 = arith.constant 0 : i32
    return %c0_i32, %c0_i32_0 : i32, i32
  }
  func.func @transform_12(%arg0: i32) -> (i32, i32) {
    %c0_i32 = arith.constant 0 : i32
    %c0_i32_0 = arith.constant 0 : i32
    %c0_i32_1 = arith.constant 0 : i32
    return %c0_i32, %c0_i32_0 : i32, i32
  }
  func.func @transform_13(%arg0: i32) -> (i32, i32) {
    %c0_i32 = arith.constant 0 : i32
    %c0_i32_0 = arith.constant 0 : i32
    %c0_i32_1 = arith.constant 0 : i32
    return %c0_i32, %c0_i32_0 : i32, i32
  }
  func.func @transform_14(%arg0: i32) -> (i32, i32) {
    %c0_i32 = arith.constant 0 : i32
    %c0_i32_0 = arith.constant 0 : i32
    %c0_i32_1 = arith.constant 0 : i32
    return %c0_i32, %c0_i32_0 : i32, i32
  }
  func.func @transform_15(%arg0: i32) -> (i32, i32) {
    %c0_i32 = arith.constant 0 : i32
    %c0_i32_0 = arith.constant 0 : i32
    %c0_i32_1 = arith.constant 0 : i32
    return %c0_i32, %c0_i32_0 : i32, i32
  }
  func.func @transform_16(%arg0: i32) -> (i32, i32) {
    %c0_i32 = arith.constant 0 : i32
    %c0_i32_0 = arith.constant 0 : i32
    %c0_i32_1 = arith.constant 0 : i32
    return %c0_i32, %c0_i32_0 : i32, i32
  }
  func.func @transform_17(%arg0: i32) -> (i32, i32) {
    %c0_i32 = arith.constant 0 : i32
    %c0_i32_0 = arith.constant 0 : i32
    %c0_i32_1 = arith.constant 0 : i32
    return %c0_i32, %c0_i32_0 : i32, i32
  }
}

</mosaic_0001>

<llo_original>
// kernel: esim_forward.1
$region0: #{esim_forward.1}
  #allocation0 [shape = 'u32[]', space=smem, size = 0x4, offset = 0x4, fixed_abs, tag = 'smem constant byte address 0x4 - core index']
  #allocation1 [shape = 'u32[144,128]{1,0:T(1,128)}', space=vmem, size = 0x12000, scoped, tag = 'internal scratch']
  #allocation2 [shape = 'f32[64,256]{1,0:T(8,128)}', space=vmem, size = 0x10000, scoped, tag = 'scratch operand']
  #allocation3 [shape = 'f32[8,8,64]{2,1,0:T(8,128)}', space=vmem, size = 0x8000, scoped, tag = 'scratch operand']
  #allocation4 [shape = 'f32[8,8,256]{2,1,0:T(8,128)}', space=vmem, size = 0x10000, scoped, tag = 'scratch operand']
  #allocation5 [shape = 'f32[8,8,64]{2,1,0:T(8,128)}', space=vmem, size = 0x8000, scoped, tag = 'scratch operand']
  %s0 = inlined_call_operand.vmem [shape: f32[64,64], index: 0, kind: input, shape index: {}]
  %s1 = inlined_call_operand.vmem [shape: f32[2,8], index: 1, kind: input, shape index: {}]
  %s2 = inlined_call_operand.vmem [shape: f32[2,8], index: 2, kind: input, shape index: {}]
  %s3 = inlined_call_operand.vmem [shape: bf16[64,256], index: 3, kind: input, shape index: {}]
  %s4 = inlined_call_operand.hbm [shape: bf16[64,256], index: 4, kind: input, shape index: {}]
  %s5 = inlined_call_operand.vmem [shape: f32[1,256], index: 5, kind: input, shape index: {}]
  %s6 = inlined_call_operand.hbm [shape: bf16[256,256], index: 6, kind: input, shape index: {}]
  %s7 = inlined_call_operand.hbm [shape: bf16[64,256], index: 7, kind: input, shape index: {}]
  %s8 = inlined_call_operand.vmem [shape: f32[1,256], index: 8, kind: input, shape index: {}]
  %s9 = inlined_call_operand.vmem [shape: f32[1,256], index: 9, kind: input, shape index: {}]
  %s10 = inlined_call_operand.vmem [shape: f32[1,256], index: 10, kind: input, shape index: {}]
  %s11 = inlined_call_operand.vmem [shape: bf16[256,128], index: 11, kind: input, shape index: {}]
  %s12 = inlined_call_operand.vmem [shape: f32[1,128], index: 12, kind: input, shape index: {}]
  %s13 = inlined_call_operand.vmem [shape: f32[1,128], index: 13, kind: input, shape index: {}]
  %s14 = inlined_call_operand.vmem [shape: f32[1,128], index: 14, kind: input, shape index: {}]
  %s15 = inlined_call_operand.hbm [shape: bf16[128,128], index: 15, kind: input, shape index: {}]
  %s16 = inlined_call_operand.vmem [shape: f32[1,128], index: 16, kind: input, shape index: {}]
  %s17 = inlined_call_operand.hbm [shape: f32[2,128], index: 17, kind: output, shape index: {}]
  %s18 = sld [smem:[#allocation0]]
  $region94: #{esim_forward.1} parent=0
    _
  %s20 = ssub.s32 1, %s18
  %s21 = scalar_select 0, %s20, %s18
  $region1: #{esim_forward.1} parent=0
    #allocation6 [shape = 'u8[32768]{0}', space=vmem, size = 0x8000, scoped, tag = 'input window, operand 4, single buffered']
    #allocation7 [shape = 's32[1]{0}', space=sflag, size = 0x4, scoped, tag = 'scoped memory for esim_forward.1']
    #allocation8 [shape = 's32[1]{0}', space=sflag, size = 0x4, scoped, tag = 'scoped memory for esim_forward.1']
    #allocation9 [shape = 'u8[131072]{0}', space=vmem, size = 0x20000, scoped, tag = 'input window, operand 6, single buffered']
    #allocation10 [shape = 's32[1]{0}', space=sflag, size = 0x4, scoped, tag = 'scoped memory for esim_forward.1']
    #allocation11 [shape = 'u8[32768]{0}', space=vmem, size = 0x8000, scoped, tag = 'input window, operand 7, single buffered']
    #allocation12 [shape = 'u8[32768]{0}', space=vmem, size = 0x8000, scoped, tag = 'input window, operand 15, single buffered']
    #allocation13 [shape = 's32[1]{0}', space=sflag, size = 0x4, scoped, tag = 'scoped memory for esim_forward.1']
    #allocation14 [shape = 'u8[1024]{0}', space=vmem, size = 0x400, scoped, tag = 'output window, operand 0, single buffered']
    %22 = vsyncpa [#allocation7], 0
    %23 = vsyncpa [#allocation10], 0
    %24 = vsyncpa [#allocation13], 0
    %25 = vsyncpa [#allocation8], 0
    // Predicated region
    $region2: #{esim_forward.1} parent=1 // pred_check
      _
    $region3: #{esim_forward.1} parent=1 // pred_check_branch
      %27 = sbr.rel (0) target = $region5
    $region4: #{esim_forward.1} parent=1 // pred_region
      _
    $region5: #{esim_forward.1} parent=1 // pred_fallthru
      _
    // Predicated region
    $region6: #{esim_forward.1} parent=1 // pred_check
      _
    $region7: #{esim_forward.1} parent=1 // pred_check_branch
      %29 = sbr.rel (0) target = $region9
    $region8: #{esim_forward.1} parent=1 // pred_region
      _
    $region9: #{esim_forward.1} parent=1 // pred_fallthru
      _
    // Predicated region
    $region10: #{esim_forward.1} parent=1 // pred_check
      _
    $region11: #{esim_forward.1} parent=1 // pred_check_branch
      %31 = sbr.rel (0) target = $region13
    $region12: #{esim_forward.1} parent=1 // pred_region
      _
    $region13: #{esim_forward.1} parent=1 // pred_fallthru
      _
    // Predicated region
    $region14: #{esim_forward.1} parent=1 // pred_check
      _
    $region15: #{esim_forward.1} parent=1 // pred_check_branch
      %33 = sbr.rel (0) target = $region17
    $region16: #{esim_forward.1} parent=1 // pred_region
      _
    $region17: #{esim_forward.1} parent=1 // pred_fallthru
      _
    // Predicated region
    $region18: #{esim_forward.1} parent=1 // pred_check
      _
    $region19: #{esim_forward.1} parent=1 // pred_check_branch
      %35 = sbr.rel (0) target = $region21
    $region20: #{esim_forward.1} parent=1 // pred_region
      %s37 = ssub.s32 1024, 1024
      %38 = vsyncadd [#allocation7], %s37
      %s39 = sshll.u32 [#allocation6], 4
      %s40 = int_to_ptr.vmem [resolvable:$true] %s39
      %45 = dma.hbm_to_vmem [thread:$0]  %s4, 1024, %s40, [#allocation7], 128, 128, 8
    $region21: #{esim_forward.1} parent=1 // pred_fallthru
      _
    // Predicated region
    $region22: #{esim_forward.1} parent=1 // pred_check
      _
    $region23: #{esim_forward.1} parent=1 // pred_check_branch
      %47 = sbr.rel (0) target = $region25
    $region24: #{esim_forward.1} parent=1 // pred_region
      _
    $region25: #{esim_forward.1} parent=1 // pred_fallthru
      _
    // Predicated region
    $region26: #{esim_forward.1} parent=1 // pred_check
      _
    $region27: #{esim_forward.1} parent=1 // pred_check_branch
      %49 = sbr.rel (0) target = $region29
    $region28: #{esim_forward.1} parent=1 // pred_region
      %s51 = ssub.s32 4096, 4096
      %52 = vsyncadd [#allocation10], %s51
      %s53 = sshll.u32 [#allocation9], 4
      %s54 = int_to_ptr.vmem [resolvable:$true] %s53
      %59 = dma.hbm_to_vmem [thread:$0]  %s6, 4096, %s54, [#allocation10], 128, 128, 8
    $region29: #{esim_forward.1} parent=1 // pred_fallthru
      _
    // Predicated region
    $region30: #{esim_forward.1} parent=1 // pred_check
      _
    $region31: #{esim_forward.1} parent=1 // pred_check_branch
      %61 = sbr.rel (0) target = $region33
    $region32: #{esim_forward.1} parent=1 // pred_region
      %s63 = ssub.s32 1024, 1024
      %64 = vsyncadd [#allocation10], %s63
      %s65 = sshll.u32 [#allocation11], 4
      %s66 = int_to_ptr.vmem [resolvable:$true] %s65
      %71 = dma.hbm_to_vmem [thread:$0]  %s7, 1024, %s66, [#allocation10], 128, 128, 8
    $region33: #{esim_forward.1} parent=1 // pred_fallthru
      _
    // Predicated region
    $region34: #{esim_forward.1} parent=1 // pred_check
      _
    $region35: #{esim_forward.1} parent=1 // pred_check_branch
      %73 = sbr.rel (0) target = $region37
    $region36: #{esim_forward.1} parent=1 // pred_region
      _
    $region37: #{esim_forward.1} parent=1 // pred_fallthru
      _
    // Predicated region
    $region38: #{esim_forward.1} parent=1 // pred_check
      _
    $region39: #{esim_forward.1} parent=1 // pred_check_branch
      %75 = sbr.rel (0) target = $region41
    $region40: #{esim_forward.1} parent=1 // pred_region
      _
    $region41: #{esim_forward.1} parent=1 // pred_fallthru
      _
    // Predicated region
    $region42: #{esim_forward.1} parent=1 // pred_check
      _
    $region43: #{esim_forward.1} parent=1 // pred_check_branch
      %77 = sbr.rel (0) target = $region45
    $region44: #{esim_forward.1} parent=1 // pred_region
      _
    $region45: #{esim_forward.1} parent=1 // pred_fallthru
      _
    // Predicated region
    $region46: #{esim_forward.1} parent=1 // pred_check
      _
    $region47: #{esim_forward.1} parent=1 // pred_check_branch
      %79 = sbr.rel (0) target = $region49
    $region48: #{esim_forward.1} parent=1 // pred_region
      _
    $region49: #{esim_forward.1} parent=1 // pred_fallthru
      _
    // Predicated region
    $region50: #{esim_forward.1} parent=1 // pred_check
      _
    $region51: #{esim_forward.1} parent=1 // pred_check_branch
      %81 = sbr.rel (0) target = $region53
    $region52: #{esim_forward.1} parent=1 // pred_region
      _
    $region53: #{esim_forward.1} parent=1 // pred_fallthru
      _
    // Predicated region
    $region54: #{esim_forward.1} parent=1 // pred_check
      _
    $region55: #{esim_forward.1} parent=1 // pred_check_branch
      %83 = sbr.rel (0) target = $region57
    $region56: #{esim_forward.1} parent=1 // pred_region
      _
    $region57: #{esim_forward.1} parent=1 // pred_fallthru
      _
    // Predicated region
    $region58: #{esim_forward.1} parent=1 // pred_check
      _
    $region59: #{esim_forward.1} parent=1 // pred_check_branch
      %85 = sbr.rel (0) target = $region61
    $region60: #{esim_forward.1} parent=1 // pred_region
      _
    $region61: #{esim_forward.1} parent=1 // pred_fallthru
      _
    // Predicated region
    $region62: #{esim_forward.1} parent=1 // pred_check
      _
    $region63: #{esim_forward.1} parent=1 // pred_check_branch
      %87 = sbr.rel (0) target = $region65
    $region64: #{esim_forward.1} parent=1 // pred_region
      %s89 = ssub.s32 1024, 1024
      %90 = vsyncadd [#allocation13], %s89
      %s91 = sshll.u32 [#allocation12], 4
      %s92 = int_to_ptr.vmem [resolvable:$true] %s91
      %97 = dma.hbm_to_vmem [thread:$0]  %s15, 1024, %s92, [#allocation13], 64, 64, 4
    $region65: #{esim_forward.1} parent=1 // pred_fallthru
      _
    // Predicated region
    $region66: #{esim_forward.1} parent=1 // pred_check
      _
    $region67: #{esim_forward.1} parent=1 // pred_check_branch
      %99 = sbr.rel (0) target = $region69
    $region68: #{esim_forward.1} parent=1 // pred_region
      _
    $region69: #{esim_forward.1} parent=1 // pred_fallthru
      _
    // Predicated region
    $region70: #{esim_forward.1} parent=1 // pred_check
      _
    $region71: #{esim_forward.1} parent=1 // pred_check_branch
      %101 = sbr.rel (0) target = $region73
    $region72: #{esim_forward.1} parent=1 // pred_region
      %102 = dma.done [#allocation7], 1024
    $region73: #{esim_forward.1} parent=1 // pred_fallthru
      _
    // Predicated region
    $region74: #{esim_forward.1} parent=1 // pred_check
      _
    $region75: #{esim_forward.1} parent=1 // pred_check_branch
      %104 = sbr.rel (0) target = $region77
    $region76: #{esim_forward.1} parent=1 // pred_region
      %105 = dma.done [#allocation10], 4096
    $region77: #{esim_forward.1} parent=1 // pred_fallthru
      _
    // Predicated region
    $region78: #{esim_forward.1} parent=1 // pred_check
      _
    $region79: #{esim_forward.1} parent=1 // pred_check_branch
      %107 = sbr.rel (0) target = $region81
    $region80: #{esim_forward.1} parent=1 // pred_region
      %108 = dma.done [#allocation10], 1024
    $region81: #{esim_forward.1} parent=1 // pred_fallthru
      _
    // Predicated region
    $region82: #{esim_forward.1} parent=1 // pred_check
      _
    $region83: #{esim_forward.1} parent=1 // pred_check_branch
      %110 = sbr.rel (0) target = $region85
    $region84: #{esim_forward.1} parent=1 // pred_region
      %111 = dma.done [#allocation13], 1024
    $region85: #{esim_forward.1} parent=1 // pred_fallthru
      _
    %v113 = vld [vmem:[%s0] sm:$0xff]
    %v114 = vld [vmem:[%s0 + $0x8] sm:$0xff]
    %v115 = vld [vmem:[%s0 + $0x10] sm:$0xff]
    %v116 = vld [vmem:[%s0 + $0x18] sm:$0xff]
    %v117 = vld [vmem:[%s0 + $0x20] sm:$0xff]
    %v118 = vld [vmem:[%s0 + $0x28] sm:$0xff]
    %v119 = vld [vmem:[%s0 + $0x30] sm:$0xff]
    %v120 = vld [vmem:[%s0 + $0x38] sm:$0xff]
    %v121 = vpack.c.bf16 %v114, %v113
    %v122 = vpack.c.bf16 %v116, %v115
    %v123 = vpack.c.bf16 %v118, %v117
    %v124 = vpack.c.bf16 %v120, %v119
    %v125 = vld [vmem:[%s3] sm:$0xff]
    %v126 = vld [vmem:[%s3 + $0x8] sm:$0xff]
    %v127 = vld [vmem:[%s3 + $0x10] sm:$0xff]
    %v128 = vld [vmem:[%s3 + $0x18] sm:$0xff]
    %v129 = vld [vmem:[%s3 + $0x20] sm:$0xff]
    %v130 = vld [vmem:[%s3 + $0x28] sm:$0xff]
    %v131 = vld [vmem:[%s3 + $0x30] sm:$0xff]
    %v132 = vld [vmem:[%s3 + $0x38] sm:$0xff]
    %v133 = vld [vmem:[%s5] sm:$0x3]
    %v135 = vlaneseq
    %v136 = vshrl.u32 %v135, 7
    %v137 = vsub.s32 0, %v136
    %v138 = vrot.slane %v133, %v137
    %v139 = vlaneseq
    %v140 = vshrl.u32 %v139, 7
    %v141 = vsub.s32 1, %v140
    %v142 = vrot.slane %v133, %v141
    %v153 = vunpack.c.l.b16 %v125
    %v154 = vunpack.c.h.b16 %v125
    %v155 = vunpack.c.l.b16 %v126
    %v156 = vunpack.c.h.b16 %v126
    %v157 = vunpack.c.l.b16 %v127
    %v158 = vunpack.c.h.b16 %v127
    %v159 = vunpack.c.l.b16 %v128
    %v160 = vunpack.c.h.b16 %v128
    %v161 = vunpack.c.l.b16 %v129
    %v162 = vunpack.c.h.b16 %v129
    %v163 = vunpack.c.l.b16 %v130
    %v164 = vunpack.c.h.b16 %v130
    %v165 = vunpack.c.l.b16 %v131
    %v166 = vunpack.c.h.b16 %v131
    %v167 = vunpack.c.l.b16 %v132
    %v168 = vunpack.c.h.b16 %v132
    %v169 = vpack.c.b16 %v155, %v153
    %v170 = vpack.c.b16 %v156, %v154
    %v171 = vpack.c.b16 %v159, %v157
    %v172 = vpack.c.b16 %v160, %v158
    %v173 = vpack.c.b16 %v163, %v161
    %v174 = vpack.c.b16 %v164, %v162
    %v175 = vpack.c.b16 %v167, %v165
    %v176 = vpack.c.b16 %v168, %v166
    %vm185 = vcmask 523264
    %v187 = vsel %vm185, %v121, 0
    %v190 = vsel %vm185, %v122, 0
    %v193 = vsel %vm185, %v123, 0
    %v196 = vsel %vm185, %v124, 0
    %198 = vmatprep.subr.bf16.mxu0 0
    %199 = vmatpush1.bf16.msra.mxu0 0
    %200 = vmatprep.subr.bf16.mxu0 0
    %201 = vmatpush1.bf16.msra.mxu0 0
    %202 = vmatprep.subr.bf16.mxu0 0
    %203 = vmatpush1.bf16.msra.mxu0 0
    %204 = vmatprep.subr.bf16.mxu0 0
    %205 = vmatpush1.bf16.msra.mxu0 0
    %206 = vmatprep.subr.bf16.mxu0 %v176
    %207 = vmatpush1.bf16.msra.mxu0 %v175
    %208 = vmatprep.subr.bf16.mxu0 %v174
    %209 = vmatpush1.bf16.msra.mxu0 %v173
    %210 = vmatprep.subr.bf16.mxu0 %v172
    %211 = vmatpush1.bf16.msra.mxu0 %v171
    %212 = vmatprep.subr.bf16.mxu0 %v170
    %213 = vmatpush1.bf16.msra.mxu0 %v169
    %214 = vmatprep.subr.bf16.mxu0 0
    %215 = vmatpush2.bf16.msra.mxu0 0
    %216 = vmatprep.subr.bf16.mxu0 0
    %217 = vmatpush2.bf16.msra.mxu0 0
    %218 = vmatprep.subr.bf16.mxu0 0
    %219 = vmatpush2.bf16.msra.mxu0 0
    %220 = vmatprep.subr.bf16.mxu0 0
    %221 = vmatpush2.bf16.msra.mxu0 0
    %222 = vmatprep.subr.bf16.mxu0 0
    %223 = vmatpush2.bf16.msra.mxu0 0
    %224 = vmatprep.subr.bf16.mxu0 0
    %225 = vmatpush2.bf16.msra.mxu0 0
    %226 = vmatprep.subr.bf16.mxu0 0
    %227 = vmatpush2.bf16.msra.mxu0 0
    %228 = vmatprep.subr.bf16.mxu0 0
    %229 = vmatpush2.bf16.msra.mxu0 0
    %230 = vmatprep.mubr.bf16.mxu0 0
    %231 = vmatmul.mubr.bf16.gmra.mxu0 %v187
    %v232 = vpop.f32.mrf.mxu0
    %v233 = vadd.f32 %v138, %v232
    %v234 = vpop.f32.mrf.mxu0
    %v235 = vadd.f32 %v142, %v234
    %v236 = vpop.f32.mrf.mxu0
    %v237 = vadd.f32 %v138, %v236
    %v238 = vpop.f32.mrf.mxu0
    %v239 = vadd.f32 %v142, %v238
    %240 = vmatprep.mubr.bf16.mxu0 0
    %241 = vmatmul.mubr.bf16.gmra.mxu0 %v190
    %v242 = vpop.f32.mrf.mxu0
    %v243 = vadd.f32 %v138, %v242
    %v244 = vpop.f32.mrf.mxu0
    %v245 = vadd.f32 %v142, %v244
    %v246 = vpop.f32.mrf.mxu0
    %v247 = vadd.f32 %v138, %v246
    %v248 = vpop.f32.mrf.mxu0
    %v249 = vadd.f32 %v142, %v248
    %250 = vmatprep.mubr.bf16.mxu0 0
    %251 = vmatmul.mubr.bf16.gmra.mxu0 %v193
    %v252 = vpop.f32.mrf.mxu0
    %v253 = vadd.f32 %v138, %v252
    %v254 = vpop.f32.mrf.mxu0
    %v255 = vadd.f32 %v142, %v254
    %v256 = vpop.f32.mrf.mxu0
    %v257 = vadd.f32 %v138, %v256
    %v258 = vpop.f32.mrf.mxu0
    %v259 = vadd.f32 %v142, %v258
    %260 = vmatprep.mubr.bf16.mxu0 0
    %261 = vmatmul.mubr.bf16.gmra.mxu0 %v196
    %v262 = vpop.f32.mrf.mxu0
    %v263 = vadd.f32 %v138, %v262
    %v264 = vpop.f32.mrf.mxu0
    %v265 = vadd.f32 %v142, %v264
    %v266 = vpop.f32.mrf.mxu0
    %v267 = vadd.f32 %v138, %v266
    %v268 = vpop.f32.mrf.mxu0
    %v269 = vadd.f32 %v142, %v268
    %270 = vdwg.mxu0
    %271 = vst [vmem:[#allocation2] sm:$0xff] %v233
    %272 = vst [vmem:[#allocation2 + $0x8] sm:$0xff] %v235
    %273 = vst [vmem:[#allocation2 + $0x10] sm:$0xff] %v237
    %274 = vst [vmem:[#allocation2 + $0x18] sm:$0xff] %v239
    %275 = vst [vmem:[#allocation2 + $0x20] sm:$0xff] %v243
    %276 = vst [vmem:[#allocation2 + $0x28] sm:$0xff] %v245
    %277 = vst [vmem:[#allocation2 + $0x30] sm:$0xff] %v247
    %278 = vst [vmem:[#allocation2 + $0x38] sm:$0xff] %v249
    %279 = vst [vmem:[#allocation2 + $0x40] sm:$0xff] %v253
    %280 = vst [vmem:[#allocation2 + $0x48] sm:$0xff] %v255
    %281 = vst [vmem:[#allocation2 + $0x50] sm:$0xff] %v257
    %282 = vst [vmem:[#allocation2 + $0x58] sm:$0xff] %v259
    %283 = vst [vmem:[#allocation2 + $0x60] sm:$0xff] %v263
    %284 = vst [vmem:[#allocation2 + $0x68] sm:$0xff] %v265
    %285 = vst [vmem:[#allocation2 + $0x70] sm:$0xff] %v267
    %286 = vst [vmem:[#allocation2 + $0x78] sm:$0xff] %v269
    %v287 = vld [vmem:[#allocation6] sm:$0xff]
    %v288 = vld [vmem:[#allocation6 + $0x8] sm:$0xff]
    %v289 = vld [vmem:[#allocation6 + $0x10] sm:$0xff]
    %v290 = vld [vmem:[#allocation6 + $0x18] sm:$0xff]
    %v291 = vld [vmem:[#allocation6 + $0x20] sm:$0xff]
    %v292 = vld [vmem:[#allocation6 + $0x28] sm:$0xff]
    %v293 = vld [vmem:[#allocation6 + $0x30] sm:$0xff]
    %v294 = vld [vmem:[#allocation6 + $0x38] sm:$0xff]
    %v303 = vunpack.c.l.b16 %v287
    %v304 = vunpack.c.h.b16 %v287
    %v305 = vunpack.c.l.b16 %v288
    %v306 = vunpack.c.h.b16 %v288
    %v307 = vunpack.c.l.b16 %v289
    %v308 = vunpack.c.h.b16 %v289
    %v309 = vunpack.c.l.b16 %v290
    %v310 = vunpack.c.h.b16 %v290
    %v311 = vunpack.c.l.b16 %v291
    %v312 = vunpack.c.h.b16 %v291
    %v313 = vunpack.c.l.b16 %v292
    %v314 = vunpack.c.h.b16 %v292
    %v315 = vunpack.c.l.b16 %v293
    %v316 = vunpack.c.h.b16 %v293
    %v317 = vunpack.c.l.b16 %v294
    %v318 = vunpack.c.h.b16 %v294
    %v319 = vpack.c.b16 %v305, %v303
    %v320 = vpack.c.b16 %v306, %v304
    %v321 = vpack.c.b16 %v309, %v307
    %v322 = vpack.c.b16 %v310, %v308
    %v323 = vpack.c.b16 %v313, %v311
    %v324 = vpack.c.b16 %v314, %v312
    %v325 = vpack.c.b16 %v317, %v315
    %v326 = vpack.c.b16 %v318, %v316
    %v336 = vsel %vm185, 0, 0
    %338 = vmatprep.subr.bf16.mxu0 0
    %339 = vmatpush1.bf16.msra.mxu0 0
    %340 = vmatprep.subr.bf16.mxu0 0
    %341 = vmatpush1.bf16.msra.mxu0 0
    %342 = vmatprep.subr.bf16.mxu0 0
    %343 = vmatpush1.bf16.msra.mxu0 0
    %344 = vmatprep.subr.bf16.mxu0 0
    %345 = vmatpush1.bf16.msra.mxu0 0
    %346 = vmatprep.subr.bf16.mxu0 %v326
    %347 = vmatpush1.bf16.msra.mxu0 %v325
    %348 = vmatprep.subr.bf16.mxu0 %v324
    %349 = vmatpush1.bf16.msra.mxu0 %v323
    %350 = vmatprep.subr.bf16.mxu0 %v322
    %351 = vmatpush1.bf16.msra.mxu0 %v321
    %352 = vmatprep.subr.bf16.mxu0 %v320
    %353 = vmatpush1.bf16.msra.mxu0 %v319
    %354 = vmatprep.subr.bf16.mxu0 0
    %355 = vmatpush2.bf16.msra.mxu0 0
    %356 = vmatprep.subr.bf16.mxu0 0
    %357 = vmatpush2.bf16.msra.mxu0 0
    %358 = vmatprep.subr.bf16.mxu0 0
    %359 = vmatpush2.bf16.msra.mxu0 0
    %360 = vmatprep.subr.bf16.mxu0 0
    %361 = vmatpush2.bf16.msra.mxu0 0
    %362 = vmatprep.subr.bf16.mxu0 0
    %363 = vmatpush2.bf16.msra.mxu0 0
    %364 = vmatprep.subr.bf16.mxu0 0
    %365 = vmatpush2.bf16.msra.mxu0 0
    %366 = vmatprep.subr.bf16.mxu0 0
    %367 = vmatpush2.bf16.msra.mxu0 0
    %368 = vmatprep.subr.bf16.mxu0 0
    %369 = vmatpush2.bf16.msra.mxu0 0
    %370 = vmatprep.mubr.bf16.mxu0 0
    %371 = vmatmul.mubr.bf16.gmra.mxu0 %v336
    %v372 = vpop.f32.mrf.mxu0
    %v373 = vadd.f32 0.0, %v372
    %v374 = vpop.f32.mrf.mxu0
    %v375 = vadd.f32 0.0, %v374
    %v376 = vpop.f32.mrf.mxu0
    %v377 = vpop.f32.mrf.mxu0
    %378 = vdwg.mxu0
    %s379 = smul.u32 0, 2
    %s380 = smul.addr %s379, 8
    %s381 = scalar_lea.vmem [#allocation2], %s380
    %v382 = vld [vmem:[%s381] sm:$0xff]
    %v383 = vadd.f32 %v382, %v373
    %s384 = smul.u32 7, 2
    %s385 = smul.addr %s384, 8
    %s386 = scalar_lea.vmem [#allocation2], %s385
    %v387 = vld [vmem:[%s386 + $0x8] sm:$0xff]
    %v388 = vadd.f32 %v387, %v375
    %v389 = vxor.u32 %v383, 2147483648
    %v390 = vxor.u32 %v388, 2147483648
    %v391 = vmul.f32 %v389, 1.442695
    %v392 = vpow.pop %v391
    %v393 = vmul.f32 %v390, 1.442695
    %v394 = vpow.pop %v393
    %v395 = vadd.f32 %v392, 1.0
    %v396 = vadd.f32 %v394, 1.0
    %v397 = vrcp.pop %v395
    %v398 = vmul.f32 1.0, %v397
    %v399 = vrcp.pop %v396
    %v400 = vmul.f32 1.0, %v399
    %v401 = vtanh.pop %v383
    %v402 = vtanh.pop %v388
    %v403 = vmul.f32 %v398, 0.0
    %405 = vrot.lane.b32.xlu0 %v401, 64
    %v406 = vpop.permute.xlu0 %405
    %v408 = vmul.f32 %v398, %v406
    %410 = vrot.lane.b32.xlu0 %v408, 32
    %v411 = vpop.permute.xlu0 %410
    %v413 = vadd.f32 %v403, %v411
    %v414 = vtanh.pop %v413
    %416 = vrot.lane.b32.xlu0 %v414, 64
    %v417 = vpop.permute.xlu0 %416
    %v419 = vmul.f32 %v398, %v417
    %v420 = vmul.f32 %v400, 0.0
    %422 = vrot.lane.b32.xlu0 %v402, 64
    %v423 = vpop.permute.xlu0 %422
    %v425 = vmul.f32 %v400, %v423
    %427 = vrot.lane.b32.xlu0 %v425, 32
    %v428 = vpop.permute.xlu0 %427
    %v430 = vadd.f32 %v420, %v428
    %v431 = vtanh.pop %v430
    %433 = vrot.lane.b32.xlu0 %v431, 64
    %v434 = vpop.permute.xlu0 %433
    %v436 = vmul.f32 %v400, %v434
    %438 = vrot.lane.b32.xlu0 %v419, 32
    %v439 = vpop.permute.xlu0 %438
    %vm441 = vcmask 261120
    %442 = vst.msk [vmem:[#allocation3] sm:$0xff] %vm441, %v439
    %444 = vrot.lane.b32.xlu0 %v436, 64
    %v445 = vpop.permute.xlu0 %444
    %s447 = scalar_lea.vmem [#allocation3], 56
    %vm448 = vcmask 523520
    %449 = vst.msk [vmem:[%s447] sm:$0xff] %vm448, %v445
    %v450 = vsel %vm441, %v439, %v445
    %v451 = vpack.c.bf16 %v450, %v450
    %v453 = vsel %vm185, %v451, 0
    %455 = vmatprep.subr.bf16.mxu0 0
    %456 = vmatpush1.bf16.msra.mxu0 0
    %457 = vmatprep.subr.bf16.mxu0 0
    %458 = vmatpush1.bf16.msra.mxu0 0
    %459 = vmatprep.subr.bf16.mxu0 0
    %460 = vmatpush1.bf16.msra.mxu0 0
    %461 = vmatprep.subr.bf16.mxu0 0
    %462 = vmatpush1.bf16.msra.mxu0 0
    %463 = vmatprep.subr.bf16.mxu0 %v326
    %464 = vmatpush1.bf16.msra.mxu0 %v325
    %465 = vmatprep.subr.bf16.mxu0 %v324
    %466 = vmatpush1.bf16.msra.mxu0 %v323
    %467 = vmatprep.subr.bf16.mxu0 %v322
    %468 = vmatpush1.bf16.msra.mxu0 %v321
    %469 = vmatprep.subr.bf16.mxu0 %v320
    %470 = vmatpush1.bf16.msra.mxu0 %v319
    %471 = vmatprep.subr.bf16.mxu0 0
    %472 = vmatpush2.bf16.msra.mxu0 0
    %473 = vmatprep.subr.bf16.mxu0 0
    %474 = vmatpush2.bf16.msra.mxu0 0
    %475 = vmatprep.subr.bf16.mxu0 0
    %476 = vmatpush2.bf16.msra.mxu0 0
    %477 = vmatprep.subr.bf16.mxu0 0
    %478 = vmatpush2.bf16.msra.mxu0 0
    %479 = vmatprep.subr.bf16.mxu0 0
    %480 = vmatpush2.bf16.msra.mxu0 0
    %481 = vmatprep.subr.bf16.mxu0 0
    %482 = vmatpush2.bf16.msra.mxu0 0
    %483 = vmatprep.subr.bf16.mxu0 0
    %484 = vmatpush2.bf16.msra.mxu0 0
    %485 = vmatprep.subr.bf16.mxu0 0
    %486 = vmatpush2.bf16.msra.mxu0 0
    %487 = vmatprep.mubr.bf16.mxu0 0
    %488 = vmatmul.mubr.bf16.gmra.mxu0 %v453
    %v489 = vpop.f32.mrf.mxu0
    %v490 = vadd.f32 0.0, %v489
    %v491 = vpop.f32.mrf.mxu0
    %v492 = vadd.f32 0.0, %v491
    %v493 = vpop.f32.mrf.mxu0
    %v494 = vpop.f32.mrf.mxu0
    %495 = vdwg.mxu0
    %s496 = smul.u32 1, 2
    %s497 = smul.addr %s496, 8
    %s498 = scalar_lea.vmem [#allocation2], %s497
    %v499 = vld [vmem:[%s498] sm:$0xff]
    %v500 = vadd.f32 %v499, %v490
    %s501 = smul.u32 6, 2
    %s502 = smul.addr %s501, 8
    %s503 = scalar_lea.vmem [#allocation2], %s502
    %v504 = vld [vmem:[%s503 + $0x8] sm:$0xff]
    %v505 = vadd.f32 %v504, %v492
    %v506 = vxor.u32 %v500, 2147483648
    %v507 = vxor.u32 %v505, 2147483648
    %v508 = vmul.f32 %v506, 1.442695
    %v509 = vpow.pop %v508
    %v510 = vmul.f32 %v507, 1.442695
    %v511 = vpow.pop %v510
    %v512 = vadd.f32 %v509, 1.0
    %v513 = vadd.f32 %v511, 1.0
    %v514 = vrcp.pop %v512
    %v515 = vmul.f32 1.0, %v514
    %v516 = vrcp.pop %v513
    %v517 = vmul.f32 1.0, %v516
    %v518 = vtanh.pop %v500
    %v519 = vtanh.pop %v505
    %v520 = vmul.f32 %v515, %v413
    %522 = vrot.lane.b32.xlu0 %v518, 64
    %v523 = vpop.permute.xlu0 %522
    %v525 = vmul.f32 %v515, %v523
    %527 = vrot.lane.b32.xlu0 %v525, 32
    %v528 = vpop.permute.xlu0 %527
    %v530 = vadd.f32 %v520, %v528
    %v531 = vtanh.pop %v530
    %533 = vrot.lane.b32.xlu0 %v531, 64
    %v534 = vpop.permute.xlu0 %533
    %v536 = vmul.f32 %v515, %v534
    %v537 = vmul.f32 %v517, %v430
    %539 = vrot.lane.b32.xlu0 %v519, 64
    %v540 = vpop.permute.xlu0 %539
    %v542 = vmul.f32 %v517, %v540
    %544 = vrot.lane.b32.xlu0 %v542, 32
    %v545 = vpop.permute.xlu0 %544
    %v547 = vadd.f32 %v537, %v545
    %v548 = vtanh.pop %v547
    %550 = vrot.lane.b32.xlu0 %v548, 64
    %v551 = vpop.permute.xlu0 %550
    %v553 = vmul.f32 %v517, %v551
    %555 = vrot.lane.b32.xlu0 %v536, 32
    %v556 = vpop.permute.xlu0 %555
    %s558 = scalar_lea.vmem [#allocation3], 8
    %559 = vst.msk [vmem:[%s558] sm:$0xff] %vm441, %v556
    %561 = vrot.lane.b32.xlu0 %v553, 64
    %v562 = vpop.permute.xlu0 %561
    %s564 = scalar_lea.vmem [#allocation3], 48
    %565 = vst.msk [vmem:[%s564] sm:$0xff] %vm448, %v562
    %v566 = vsel %vm441, %v556, %v562
    %v567 = vpack.c.bf16 %v566, %v566
    %v569 = vsel %vm185, %v567, 0
    %571 = vmatprep.subr.bf16.mxu0 0
    %572 = vmatpush1.bf16.msra.mxu0 0
    %573 = vmatprep.subr.bf16.mxu0 0
    %574 = vmatpush1.bf16.msra.mxu0 0
    %575 = vmatprep.subr.bf16.mxu0 0
    %576 = vmatpush1.bf16.msra.mxu0 0
    %577 = vmatprep.subr.bf16.mxu0 0
    %578 = vmatpush1.bf16.msra.mxu0 0
    %579 = vmatprep.subr.bf16.mxu0 %v326
    %580 = vmatpush1.bf16.msra.mxu0 %v325
    %581 = vmatprep.subr.bf16.mxu0 %v324
    %582 = vmatpush1.bf16.msra.mxu0 %v323
    %583 = vmatprep.subr.bf16.mxu0 %v322
    %584 = vmatpush1.bf16.msra.mxu0 %v321
    %585 = vmatprep.subr.bf16.mxu0 %v320
    %586 = vmatpush1.bf16.msra.mxu0 %v319
    %587 = vmatprep.subr.bf16.mxu0 0
    %588 = vmatpush2.bf16.msra.mxu0 0
    %589 = vmatprep.subr.bf16.mxu0 0
    %590 = vmatpush2.bf16.msra.mxu0 0
    %591 = vmatprep.subr.bf16.mxu0 0
    %592 = vmatpush2.bf16.msra.mxu0 0
    %593 = vmatprep.subr.bf16.mxu0 0
    %594 = vmatpush2.bf16.msra.mxu0 0
    %595 = vmatprep.subr.bf16.mxu0 0
    %596 = vmatpush2.bf16.msra.mxu0 0
    %597 = vmatprep.subr.bf16.mxu0 0
    %598 = vmatpush2.bf16.msra.mxu0 0
    %599 = vmatprep.subr.bf16.mxu0 0
    %600 = vmatpush2.bf16.msra.mxu0 0
    %601 = vmatprep.subr.bf16.mxu0 0
    %602 = vmatpush2.bf16.msra.mxu0 0
    %603 = vmatprep.mubr.bf16.mxu0 0
    %604 = vmatmul.mubr.bf16.gmra.mxu0 %v569
    %v605 = vpop.f32.mrf.mxu0
    %v606 = vadd.f32 0.0, %v605
    %v607 = vpop.f32.mrf.mxu0
    %v608 = vadd.f32 0.0, %v607
    %v609 = vpop.f32.mrf.mxu0
    %v610 = vpop.f32.mrf.mxu0
    %611 = vdwg.mxu0
    %s612 = smul.u32 2, 2
    %s613 = smul.addr %s612, 8
    %s614 = scalar_lea.vmem [#allocation2], %s613
    %v615 = vld [vmem:[%s614] sm:$0xff]
    %v616 = vadd.f32 %v615, %v606
    %s617 = smul.u32 5, 2
    %s618 = smul.addr %s617, 8
    %s619 = scalar_lea.vmem [#allocation2], %s618
    %v620 = vld [vmem:[%s619 + $0x8] sm:$0xff]
    %v621 = vadd.f32 %v620, %v608
    %v622 = vxor.u32 %v616, 2147483648
    %v623 = vxor.u32 %v621, 2147483648
    %v624 = vmul.f32 %v622, 1.442695
    %v625 = vpow.pop %v624
    %v626 = vmul.f32 %v623, 1.442695
    %v627 = vpow.pop %v626
    %v628 = vadd.f32 %v625, 1.0
    %v629 = vadd.f32 %v627, 1.0
    %v630 = vrcp.pop %v628
    %v631 = vmul.f32 1.0, %v630
    %v632 = vrcp.pop %v629
    %v633 = vmul.f32 1.0, %v632
    %v634 = vtanh.pop %v616
    %v635 = vtanh.pop %v621
    %v636 = vmul.f32 %v631, %v530
    %638 = vrot.lane.b32.xlu0 %v634, 64
    %v639 = vpop.permute.xlu0 %638
    %v641 = vmul.f32 %v631, %v639
    %643 = vrot.lane.b32.xlu0 %v641, 32
    %v644 = vpop.permute.xlu0 %643
    %v646 = vadd.f32 %v636, %v644
    %v647 = vtanh.pop %v646
    %649 = vrot.lane.b32.xlu0 %v647, 64
    %v650 = vpop.permute.xlu0 %649
    %v652 = vmul.f32 %v631, %v650
    %v653 = vmul.f32 %v633, %v547
    %655 = vrot.lane.b32.xlu0 %v635, 64
    %v656 = vpop.permute.xlu0 %655
    %v658 = vmul.f32 %v633, %v656
    %660 = vrot.lane.b32.xlu0 %v658, 32
    %v661 = vpop.permute.xlu0 %660
    %v663 = vadd.f32 %v653, %v661
    %v664 = vtanh.pop %v663
    %666 = vrot.lane.b32.xlu0 %v664, 64
    %v667 = vpop.permute.xlu0 %666
    %v669 = vmul.f32 %v633, %v667
    %671 = vrot.lane.b32.xlu0 %v652, 32
    %v672 = vpop.permute.xlu0 %671
    %s674 = scalar_lea.vmem [#allocation3], 16
    %675 = vst.msk [vmem:[%s674] sm:$0xff] %vm441, %v672
    %677 = vrot.lane.b32.xlu0 %v669, 64
    %v678 = vpop.permute.xlu0 %677
    %s680 = scalar_lea.vmem [#allocation3], 40
    %681 = vst.msk [vmem:[%s680] sm:$0xff] %vm448, %v678
    %v682 = vsel %vm441, %v672, %v678
    %v683 = vpack.c.bf16 %v682, %v682
    %v685 = vsel %vm185, %v683, 0
    %687 = vmatprep.subr.bf16.mxu0 0
    %688 = vmatpush1.bf16.msra.mxu0 0
    %689 = vmatprep.subr.bf16.mxu0 0
    %690 = vmatpush1.bf16.msra.mxu0 0
    %691 = vmatprep.subr.bf16.mxu0 0
    %692 = vmatpush1.bf16.msra.mxu0 0
    %693 = vmatprep.subr.bf16.mxu0 0
    %694 = vmatpush1.bf16.msra.mxu0 0
    %695 = vmatprep.subr.bf16.mxu0 %v326
    %696 = vmatpush1.bf16.msra.mxu0 %v325
    %697 = vmatprep.subr.bf16.mxu0 %v324
    %698 = vmatpush1.bf16.msra.mxu0 %v323
    %699 = vmatprep.subr.bf16.mxu0 %v322
    %700 = vmatpush1.bf16.msra.mxu0 %v321
    %701 = vmatprep.subr.bf16.mxu0 %v320
    %702 = vmatpush1.bf16.msra.mxu0 %v319
    %703 = vmatprep.subr.bf16.mxu0 0
    %704 = vmatpush2.bf16.msra.mxu0 0
    %705 = vmatprep.subr.bf16.mxu0 0
    %706 = vmatpush2.bf16.msra.mxu0 0
    %707 = vmatprep.subr.bf16.mxu0 0
    %708 = vmatpush2.bf16.msra.mxu0 0
    %709 = vmatprep.subr.bf16.mxu0 0
    %710 = vmatpush2.bf16.msra.mxu0 0
    %711 = vmatprep.subr.bf16.mxu0 0
    %712 = vmatpush2.bf16.msra.mxu0 0
    %713 = vmatprep.subr.bf16.mxu0 0
    %714 = vmatpush2.bf16.msra.mxu0 0
    %715 = vmatprep.subr.bf16.mxu0 0
    %716 = vmatpush2.bf16.msra.mxu0 0
    %717 = vmatprep.subr.bf16.mxu0 0
    %718 = vmatpush2.bf16.msra.mxu0 0
    %719 = vmatprep.mubr.bf16.mxu0 0
    %720 = vmatmul.mubr.bf16.gmra.mxu0 %v685
    %v721 = vpop.f32.mrf.mxu0
    %v722 = vadd.f32 0.0, %v721
    %v723 = vpop.f32.mrf.mxu0
    %v724 = vadd.f32 0.0, %v723
    %v725 = vpop.f32.mrf.mxu0
    %v726 = vpop.f32.mrf.mxu0
    %727 = vdwg.mxu0
    %s728 = smul.u32 3, 2
    %s729 = smul.addr %s728, 8
    %s730 = scalar_lea.vmem [#allocation2], %s729
    %v731 = vld [vmem:[%s730] sm:$0xff]
    %v732 = vadd.f32 %v731, %v722
    %s733 = smul.u32 4, 2
    %s734 = smul.addr %s733, 8
    %s735 = scalar_lea.vmem [#allocation2], %s734
    %v736 = vld [vmem:[%s735 + $0x8] sm:$0xff]
    %v737 = vadd.f32 %v736, %v724
    %v738 = vxor.u32 %v732, 2147483648
    %v739 = vxor.u32 %v737, 2147483648
    %v740 = vmul.f32 %v738, 1.442695
    %v741 = vpow.pop %v740
    %v742 = vmul.f32 %v739, 1.442695
    %v743 = vpow.pop %v742
    %v744 = vadd.f32 %v741, 1.0
    %v745 = vadd.f32 %v743, 1.0
    %v746 = vrcp.pop %v744
    %v747 = vmul.f32 1.0, %v746
    %v748 = vrcp.pop %v745
    %v749 = vmul.f32 1.0, %v748
    %v750 = vtanh.pop %v732
    %v751 = vtanh.pop %v737
    %v752 = vmul.f32 %v747, %v646
    %754 = vrot.lane.b32.xlu0 %v750, 64
    %v755 = vpop.permute.xlu0 %754
    %v757 = vmul.f32 %v747, %v755
    %759 = vrot.lane.b32.xlu0 %v757, 32
    %v760 = vpop.permute.xlu0 %759
    %v762 = vadd.f32 %v752, %v760
    %v763 = vtanh.pop %v762
    %765 = vrot.lane.b32.xlu0 %v763, 64
    %v766 = vpop.permute.xlu0 %765
    %v768 = vmul.f32 %v747, %v766
    %v769 = vmul.f32 %v749, %v663
    %771 = vrot.lane.b32.xlu0 %v751, 64
    %v772 = vpop.permute.xlu0 %771
    %v774 = vmul.f32 %v749, %v772
    %776 = vrot.lane.b32.xlu0 %v774, 32
    %v777 = vpop.permute.xlu0 %776
    %v779 = vadd.f32 %v769, %v777
    %v780 = vtanh.pop %v779
    %782 = vrot.lane.b32.xlu0 %v780, 64
    %v783 = vpop.permute.xlu0 %782
    %v785 = vmul.f32 %v749, %v783
    %787 = vrot.lane.b32.xlu0 %v768, 32
    %v788 = vpop.permute.xlu0 %787
    %s790 = scalar_lea.vmem [#allocation3], 24
    %791 = vst.msk [vmem:[%s790] sm:$0xff] %vm441, %v788
    %793 = vrot.lane.b32.xlu0 %v785, 64
    %v794 = vpop.permute.xlu0 %793
    %s796 = scalar_lea.vmem [#allocation3], 32
    %797 = vst.msk [vmem:[%s796] sm:$0xff] %vm448, %v794
    %v798 = vsel %vm441, %v788, %v794
    %v799 = vpack.c.bf16 %v798, %v798
    %v801 = vsel %vm185, %v799, 0
    %803 = vmatprep.subr.bf16.mxu0 0
    %804 = vmatpush1.bf16.msra.mxu0 0
    %805 = vmatprep.subr.bf16.mxu0 0
    %806 = vmatpush1.bf16.msra.mxu0 0
    %807 = vmatprep.subr.bf16.mxu0 0
    %808 = vmatpush1.bf16.msra.mxu0 0
    %809 = vmatprep.subr.bf16.mxu0 0
    %810 = vmatpush1.bf16.msra.mxu0 0
    %811 = vmatprep.subr.bf16.mxu0 %v326
    %812 = vmatpush1.bf16.msra.mxu0 %v325
    %813 = vmatprep.subr.bf16.mxu0 %v324
    %814 = vmatpush1.bf16.msra.mxu0 %v323
    %815 = vmatprep.subr.bf16.mxu0 %v322
    %816 = vmatpush1.bf16.msra.mxu0 %v321
    %817 = vmatprep.subr.bf16.mxu0 %v320
    %818 = vmatpush1.bf16.msra.mxu0 %v319
    %819 = vmatprep.subr.bf16.mxu0 0
    %820 = vmatpush2.bf16.msra.mxu0 0
    %821 = vmatprep.subr.bf16.mxu0 0
    %822 = vmatpush2.bf16.msra.mxu0 0
    %823 = vmatprep.subr.bf16.mxu0 0
    %824 = vmatpush2.bf16.msra.mxu0 0
    %825 = vmatprep.subr.bf16.mxu0 0
    %826 = vmatpush2.bf16.msra.mxu0 0
    %827 = vmatprep.subr.bf16.mxu0 0
    %828 = vmatpush2.bf16.msra.mxu0 0
    %829 = vmatprep.subr.bf16.mxu0 0
    %830 = vmatpush2.bf16.msra.mxu0 0
    %831 = vmatprep.subr.bf16.mxu0 0
    %832 = vmatpush2.bf16.msra.mxu0 0
    %833 = vmatprep.subr.bf16.mxu0 0
    %834 = vmatpush2.bf16.msra.mxu0 0
    %835 = vmatprep.mubr.bf16.mxu0 0
    %836 = vmatmul.mubr.bf16.gmra.mxu0 %v801
    %v837 = vpop.f32.mrf.mxu0
    %v838 = vadd.f32 0.0, %v837
    %v839 = vpop.f32.mrf.mxu0
    %v840 = vadd.f32 0.0, %v839
    %v841 = vpop.f32.mrf.mxu0
    %v842 = vpop.f32.mrf.mxu0
    %843 = vdwg.mxu0
    %v844 = vld [vmem:[%s735] sm:$0xff]
    %v845 = vadd.f32 %v844, %v838
    %v846 = vld [vmem:[%s730 + $0x8] sm:$0xff]
    %v847 = vadd.f32 %v846, %v840
    %v848 = vxor.u32 %v845, 2147483648
    %v849 = vxor.u32 %v847, 2147483648
    %v850 = vmul.f32 %v848, 1.442695
    %v851 = vpow.pop %v850
    %v852 = vmul.f32 %v849, 1.442695
    %v853 = vpow.pop %v852
    %v854 = vadd.f32 %v851, 1.0
    %v855 = vadd.f32 %v853, 1.0
    %v856 = vrcp.pop %v854
    %v857 = vmul.f32 1.0, %v856
    %v858 = vrcp.pop %v855
    %v859 = vmul.f32 1.0, %v858
    %v860 = vtanh.pop %v845
    %v861 = vtanh.pop %v847
    %v862 = vmul.f32 %v857, %v762
    %864 = vrot.lane.b32.xlu0 %v860, 64
    %v865 = vpop.permute.xlu0 %864
    %v867 = vmul.f32 %v857, %v865
    %869 = vrot.lane.b32.xlu0 %v867, 32
    %v870 = vpop.permute.xlu0 %869
    %v872 = vadd.f32 %v862, %v870
    %v873 = vtanh.pop %v872
    %875 = vrot.lane.b32.xlu0 %v873, 64
    %v876 = vpop.permute.xlu0 %875
    %v878 = vmul.f32 %v857, %v876
    %v879 = vmul.f32 %v859, %v779
    %881 = vrot.lane.b32.xlu0 %v861, 64
    %v882 = vpop.permute.xlu0 %881
    %v884 = vmul.f32 %v859, %v882
    %886 = vrot.lane.b32.xlu0 %v884, 32
    %v887 = vpop.permute.xlu0 %886
    %v889 = vadd.f32 %v879, %v887
    %v890 = vtanh.pop %v889
    %892 = vrot.lane.b32.xlu0 %v890, 64
    %v893 = vpop.permute.xlu0 %892
    %v895 = vmul.f32 %v859, %v893
    %897 = vrot.lane.b32.xlu0 %v878, 32
    %v898 = vpop.permute.xlu0 %897
    %900 = vst.msk [vmem:[%s796] sm:$0xff] %vm441, %v898
    %902 = vrot.lane.b32.xlu0 %v895, 64
    %v903 = vpop.permute.xlu0 %902
    %905 = vst.msk [vmem:[%s790] sm:$0xff] %vm448, %v903
    %v906 = vsel %vm441, %v898, %v903
    %v907 = vpack.c.bf16 %v906, %v906
    %v909 = vsel %vm185, %v907, 0
    %911 = vmatprep.subr.bf16.mxu0 0
    %912 = vmatpush1.bf16.msra.mxu0 0
    %913 = vmatprep.subr.bf16.mxu0 0
    %914 = vmatpush1.bf16.msra.mxu0 0
    %915 = vmatprep.subr.bf16.mxu0 0
    %916 = vmatpush1.bf16.msra.mxu0 0
    %917 = vmatprep.subr.bf16.mxu0 0
    %918 = vmatpush1.bf16.msra.mxu0 0
    %919 = vmatprep.subr.bf16.mxu0 %v326
    %920 = vmatpush1.bf16.msra.mxu0 %v325
    %921 = vmatprep.subr.bf16.mxu0 %v324
    %922 = vmatpush1.bf16.msra.mxu0 %v323
    %923 = vmatprep.subr.bf16.mxu0 %v322
    %924 = vmatpush1.bf16.msra.mxu0 %v321
    %925 = vmatprep.subr.bf16.mxu0 %v320
    %926 = vmatpush1.bf16.msra.mxu0 %v319
    %927 = vmatprep.subr.bf16.mxu0 0
    %928 = vmatpush2.bf16.msra.mxu0 0
    %929 = vmatprep.subr.bf16.mxu0 0
    %930 = vmatpush2.bf16.msra.mxu0 0
    %931 = vmatprep.subr.bf16.mxu0 0
    %932 = vmatpush2.bf16.msra.mxu0 0
    %933 = vmatprep.subr.bf16.mxu0 0
    %934 = vmatpush2.bf16.msra.mxu0 0
    %935 = vmatprep.subr.bf16.mxu0 0
    %936 = vmatpush2.bf16.msra.mxu0 0
    %937 = vmatprep.subr.bf16.mxu0 0
    %938 = vmatpush2.bf16.msra.mxu0 0
    %939 = vmatprep.subr.bf16.mxu0 0
    %940 = vmatpush2.bf16.msra.mxu0 0
    %941 = vmatprep.subr.bf16.mxu0 0
    %942 = vmatpush2.bf16.msra.mxu0 0
    %943 = vmatprep.mubr.bf16.mxu0 0
    %944 = vmatmul.mubr.bf16.gmra.mxu0 %v909
    %v945 = vpop.f32.mrf.mxu0
    %v946 = vadd.f32 0.0, %v945
    %v947 = vpop.f32.mrf.mxu0
    %v948 = vadd.f32 0.0, %v947
    %v949 = vpop.f32.mrf.mxu0
    %v950 = vpop.f32.mrf.mxu0
    %951 = vdwg.mxu0
    %v952 = vld [vmem:[%s619] sm:$0xff]
    %v953 = vadd.f32 %v952, %v946
    %v954 = vld [vmem:[%s614 + $0x8] sm:$0xff]
    %v955 = vadd.f32 %v954, %v948
    %v956 = vxor.u32 %v953, 2147483648
    %v957 = vxor.u32 %v955, 2147483648
    %v958 = vmul.f32 %v956, 1.442695
    %v959 = vpow.pop %v958
    %v960 = vmul.f32 %v957, 1.442695
    %v961 = vpow.pop %v960
    %v962 = vadd.f32 %v959, 1.0
    %v963 = vadd.f32 %v961, 1.0
    %v964 = vrcp.pop %v962
    %v965 = vmul.f32 1.0, %v964
    %v966 = vrcp.pop %v963
    %v967 = vmul.f32 1.0, %v966
    %v968 = vtanh.pop %v953
    %v969 = vtanh.pop %v955
    %v970 = vmul.f32 %v965, %v872
    %972 = vrot.lane.b32.xlu0 %v968, 64
    %v973 = vpop.permute.xlu0 %972
    %v975 = vmul.f32 %v965, %v973
    %977 = vrot.lane.b32.xlu0 %v975, 32
    %v978 = vpop.permute.xlu0 %977
    %v980 = vadd.f32 %v970, %v978
    %v981 = vtanh.pop %v980
    %983 = vrot.lane.b32.xlu0 %v981, 64
    %v984 = vpop.permute.xlu0 %983
    %v986 = vmul.f32 %v965, %v984
    %v987 = vmul.f32 %v967, %v889
    %989 = vrot.lane.b32.xlu0 %v969, 64
    %v990 = vpop.permute.xlu0 %989
    %v992 = vmul.f32 %v967, %v990
    %994 = vrot.lane.b32.xlu0 %v992, 32
    %v995 = vpop.permute.xlu0 %994
    %v997 = vadd.f32 %v987, %v995
    %v998 = vtanh.pop %v997
    %1000 = vrot.lane.b32.xlu0 %v998, 64
    %v1001 = vpop.permute.xlu0 %1000
    %v1003 = vmul.f32 %v967, %v1001
    %1005 = vrot.lane.b32.xlu0 %v986, 32
    %v1006 = vpop.permute.xlu0 %1005
    %1008 = vst.msk [vmem:[%s680] sm:$0xff] %vm441, %v1006
    %1010 = vrot.lane.b32.xlu0 %v1003, 64
    %v1011 = vpop.permute.xlu0 %1010
    %1013 = vst.msk [vmem:[%s674] sm:$0xff] %vm448, %v1011
    %v1014 = vsel %vm441, %v1006, %v1011
    %v1015 = vpack.c.bf16 %v1014, %v1014
    %v1017 = vsel %vm185, %v1015, 0
    %1019 = vmatprep.subr.bf16.mxu0 0
    %1020 = vmatpush1.bf16.msra.mxu0 0
    %1021 = vmatprep.subr.bf16.mxu0 0
    %1022 = vmatpush1.bf16.msra.mxu0 0
    %1023 = vmatprep.subr.bf16.mxu0 0
    %1024 = vmatpush1.bf16.msra.mxu0 0
    %1025 = vmatprep.subr.bf16.mxu0 0
    %1026 = vmatpush1.bf16.msra.mxu0 0
    %1027 = vmatprep.subr.bf16.mxu0 %v326
    %1028 = vmatpush1.bf16.msra.mxu0 %v325
    %1029 = vmatprep.subr.bf16.mxu0 %v324
    %1030 = vmatpush1.bf16.msra.mxu0 %v323
    %1031 = vmatprep.subr.bf16.mxu0 %v322
    %1032 = vmatpush1.bf16.msra.mxu0 %v321
    %1033 = vmatprep.subr.bf16.mxu0 %v320
    %1034 = vmatpush1.bf16.msra.mxu0 %v319
    %1035 = vmatprep.subr.bf16.mxu0 0
    %1036 = vmatpush2.bf16.msra.mxu0 0
    %1037 = vmatprep.subr.bf16.mxu0 0
    %1038 = vmatpush2.bf16.msra.mxu0 0
    %1039 = vmatprep.subr.bf16.mxu0 0
    %1040 = vmatpush2.bf16.msra.mxu0 0
    %1041 = vmatprep.subr.bf16.mxu0 0
    %1042 = vmatpush2.bf16.msra.mxu0 0
    %1043 = vmatprep.subr.bf16.mxu0 0
    %1044 = vmatpush2.bf16.msra.mxu0 0
    %1045 = vmatprep.subr.bf16.mxu0 0
    %1046 = vmatpush2.bf16.msra.mxu0 0
    %1047 = vmatprep.subr.bf16.mxu0 0
    %1048 = vmatpush2.bf16.msra.mxu0 0
    %1049 = vmatprep.subr.bf16.mxu0 0
    %1050 = vmatpush2.bf16.msra.mxu0 0
    %1051 = vmatprep.mubr.bf16.mxu0 0
    %1052 = vmatmul.mubr.bf16.gmra.mxu0 %v1017
    %v1053 = vpop.f32.mrf.mxu0
    %v1054 = vadd.f32 0.0, %v1053
    %v1055 = vpop.f32.mrf.mxu0
    %v1056 = vadd.f32 0.0, %v1055
    %v1057 = vpop.f32.mrf.mxu0
    %v1058 = vpop.f32.mrf.mxu0
    %1059 = vdwg.mxu0
    %v1060 = vld [vmem:[%s503] sm:$0xff]
    %v1061 = vadd.f32 %v1060, %v1054
    %v1062 = vld [vmem:[%s498 + $0x8] sm:$0xff]
    %v1063 = vadd.f32 %v1062, %v1056
    %v1064 = vxor.u32 %v1061, 2147483648
    %v1065 = vxor.u32 %v1063, 2147483648
    %v1066 = vmul.f32 %v1064, 1.442695
    %v1067 = vpow.pop %v1066
    %v1068 = vmul.f32 %v1065, 1.442695
    %v1069 = vpow.pop %v1068
    %v1070 = vadd.f32 %v1067, 1.0
    %v1071 = vadd.f32 %v1069, 1.0
    %v1072 = vrcp.pop %v1070
    %v1073 = vmul.f32 1.0, %v1072
    %v1074 = vrcp.pop %v1071
    %v1075 = vmul.f32 1.0, %v1074
    %v1076 = vtanh.pop %v1061
    %v1077 = vtanh.pop %v1063
    %v1078 = vmul.f32 %v1073, %v980
    %1080 = vrot.lane.b32.xlu0 %v1076, 64
    %v1081 = vpop.permute.xlu0 %1080
    %v1083 = vmul.f32 %v1073, %v1081
    %1085 = vrot.lane.b32.xlu0 %v1083, 32
    %v1086 = vpop.permute.xlu0 %1085
    %v1088 = vadd.f32 %v1078, %v1086
    %v1089 = vtanh.pop %v1088
    %1091 = vrot.lane.b32.xlu0 %v1089, 64
    %v1092 = vpop.permute.xlu0 %1091
    %v1094 = vmul.f32 %v1073, %v1092
    %v1095 = vmul.f32 %v1075, %v997
    %1097 = vrot.lane.b32.xlu0 %v1077, 64
    %v1098 = vpop.permute.xlu0 %1097
    %v1100 = vmul.f32 %v1075, %v1098
    %1102 = vrot.lane.b32.xlu0 %v1100, 32
    %v1103 = vpop.permute.xlu0 %1102
    %v1105 = vadd.f32 %v1095, %v1103
    %v1106 = vtanh.pop %v1105
    %1108 = vrot.lane.b32.xlu0 %v1106, 64
    %v1109 = vpop.permute.xlu0 %1108
    %v1111 = vmul.f32 %v1075, %v1109
    %1113 = vrot.lane.b32.xlu0 %v1094, 32
    %v1114 = vpop.permute.xlu0 %1113
    %1116 = vst.msk [vmem:[%s564] sm:$0xff] %vm441, %v1114
    %1118 = vrot.lane.b32.xlu0 %v1111, 64
    %v1119 = vpop.permute.xlu0 %1118
    %1121 = vst.msk [vmem:[%s558] sm:$0xff] %vm448, %v1119
    %v1122 = vsel %vm441, %v1114, %v1119
    %v1123 = vpack.c.bf16 %v1122, %v1122
    %v1125 = vsel %vm185, %v1123, 0
    %1127 = vmatprep.subr.bf16.mxu0 0
    %1128 = vmatpush1.bf16.msra.mxu0 0
    %1129 = vmatprep.subr.bf16.mxu0 0
    %1130 = vmatpush1.bf16.msra.mxu0 0
    %1131 = vmatprep.subr.bf16.mxu0 0
    %1132 = vmatpush1.bf16.msra.mxu0 0
    %1133 = vmatprep.subr.bf16.mxu0 0
    %1134 = vmatpush1.bf16.msra.mxu0 0
    %1135 = vmatprep.subr.bf16.mxu0 %v326
    %1136 = vmatpush1.bf16.msra.mxu0 %v325
    %1137 = vmatprep.subr.bf16.mxu0 %v324
    %1138 = vmatpush1.bf16.msra.mxu0 %v323
    %1139 = vmatprep.subr.bf16.mxu0 %v322
    %1140 = vmatpush1.bf16.msra.mxu0 %v321
    %1141 = vmatprep.subr.bf16.mxu0 %v320
    %1142 = vmatpush1.bf16.msra.mxu0 %v319
    %1143 = vmatprep.subr.bf16.mxu0 0
    %1144 = vmatpush2.bf16.msra.mxu0 0
    %1145 = vmatprep.subr.bf16.mxu0 0
    %1146 = vmatpush2.bf16.msra.mxu0 0
    %1147 = vmatprep.subr.bf16.mxu0 0
    %1148 = vmatpush2.bf16.msra.mxu0 0
    %1149 = vmatprep.subr.bf16.mxu0 0
    %1150 = vmatpush2.bf16.msra.mxu0 0
    %1151 = vmatprep.subr.bf16.mxu0 0
    %1152 = vmatpush2.bf16.msra.mxu0 0
    %1153 = vmatprep.subr.bf16.mxu0 0
    %1154 = vmatpush2.bf16.msra.mxu0 0
    %1155 = vmatprep.subr.bf16.mxu0 0
    %1156 = vmatpush2.bf16.msra.mxu0 0
    %1157 = vmatprep.subr.bf16.mxu0 0
    %1158 = vmatpush2.bf16.msra.mxu0 0
    %1159 = vmatprep.mubr.bf16.mxu0 0
    %1160 = vmatmul.mubr.bf16.gmra.mxu0 %v1125
    %v1161 = vpop.f32.mrf.mxu0
    %v1162 = vadd.f32 0.0, %v1161
    %v1163 = vpop.f32.mrf.mxu0
    %v1164 = vadd.f32 0.0, %v1163
    %v1165 = vpop.f32.mrf.mxu0
    %v1166 = vpop.f32.mrf.mxu0
    %1167 = vdwg.mxu0
    %v1168 = vld [vmem:[%s386] sm:$0xff]
    %v1169 = vadd.f32 %v1168, %v1162
    %v1170 = vld [vmem:[%s381 + $0x8] sm:$0xff]
    %v1171 = vadd.f32 %v1170, %v1164
    %v1172 = vxor.u32 %v1169, 2147483648
    %v1173 = vxor.u32 %v1171, 2147483648
    %v1174 = vmul.f32 %v1172, 1.442695
    %v1175 = vpow.pop %v1174
    %v1176 = vmul.f32 %v1173, 1.442695
    %v1177 = vpow.pop %v1176
    %v1178 = vadd.f32 %v1175, 1.0
    %v1179 = vadd.f32 %v1177, 1.0
    %v1180 = vrcp.pop %v1178
    %v1181 = vmul.f32 1.0, %v1180
    %v1182 = vrcp.pop %v1179
    %v1183 = vmul.f32 1.0, %v1182
    %v1184 = vtanh.pop %v1169
    %v1185 = vtanh.pop %v1171
    %v1186 = vmul.f32 %v1181, %v1088
    %1188 = vrot.lane.b32.xlu0 %v1184, 64
    %v1189 = vpop.permute.xlu0 %1188
    %v1191 = vmul.f32 %v1181, %v1189
    %1193 = vrot.lane.b32.xlu0 %v1191, 32
    %v1194 = vpop.permute.xlu0 %1193
    %v1196 = vadd.f32 %v1186, %v1194
    %v1197 = vtanh.pop %v1196
    %1199 = vrot.lane.b32.xlu0 %v1197, 64
    %v1200 = vpop.permute.xlu0 %1199
    %v1202 = vmul.f32 %v1181, %v1200
    %v1203 = vmul.f32 %v1183, %v1105
    %1205 = vrot.lane.b32.xlu0 %v1185, 64
    %v1206 = vpop.permute.xlu0 %1205
    %v1208 = vmul.f32 %v1183, %v1206
    %1210 = vrot.lane.b32.xlu0 %v1208, 32
    %v1211 = vpop.permute.xlu0 %1210
    %v1213 = vadd.f32 %v1203, %v1211
    %v1214 = vtanh.pop %v1213
    %1216 = vrot.lane.b32.xlu0 %v1214, 64
    %v1217 = vpop.permute.xlu0 %1216
    %v1219 = vmul.f32 %v1183, %v1217
    %1221 = vrot.lane.b32.xlu0 %v1202, 32
    %v1222 = vpop.permute.xlu0 %1221
    %1224 = vst.msk [vmem:[%s447] sm:$0xff] %vm441, %v1222
    %1226 = vrot.lane.b32.xlu0 %v1219, 64
    %v1227 = vpop.permute.xlu0 %1226
    %1229 = vst.msk [vmem:[#allocation3] sm:$0xff] %vm448, %v1227
    %v1230 = vld [vmem:[#allocation3] sm:$0xff]
    %v1231 = vld [vmem:[#allocation3 + $0x8] sm:$0xff]
    %v1232 = vld [vmem:[#allocation3 + $0x10] sm:$0xff]
    %v1233 = vld [vmem:[#allocation3 + $0x18] sm:$0xff]
    %v1234 = vld [vmem:[#allocation3 + $0x20] sm:$0xff]
    %v1235 = vld [vmem:[#allocation3 + $0x28] sm:$0xff]
    %v1236 = vld [vmem:[#allocation3 + $0x30] sm:$0xff]
    %v1237 = vld [vmem:[#allocation3 + $0x38] sm:$0xff]
    %v1238 = vld [vmem:[%s1] sm:$0x3]
    %v1239 = vld [vmem:[%s2] sm:$0x3]
    %v1240 = vpack.c.bf16 %v1230, %v1230
    %v1241 = vpack.c.bf16 %v1231, %v1231
    %v1242 = vpack.c.bf16 %v1232, %v1232
    %v1243 = vpack.c.bf16 %v1233, %v1233
    %v1244 = vpack.c.bf16 %v1234, %v1234
    %v1245 = vpack.c.bf16 %v1235, %v1235
    %v1246 = vpack.c.bf16 %v1236, %v1236
    %v1247 = vpack.c.bf16 %v1237, %v1237
    %v1256 = vunpack.c.l.b16 %v1240
    %v1257 = vunpack.c.l.b16 %v1241
    %v1258 = vunpack.c.l.b16 %v1242
    %v1259 = vunpack.c.l.b16 %v1243
    %v1260 = vunpack.c.l.b16 %v1244
    %v1261 = vunpack.c.l.b16 %v1245
    %v1262 = vunpack.c.l.b16 %v1246
    %v1263 = vunpack.c.l.b16 %v1247
    %v1264 = vrot.slane %v1257, 7
    %vm1265 = vcmask 1041409
    %v1266 = vsel %vm1265, %v1264, %v1256
    %v1267 = vrot.slane %v1258, 6
    %vm1268 = vcmask 1042434
    %v1269 = vsel %vm1268, %v1267, %v1266
    %v1270 = vrot.slane %v1259, 5
    %vm1271 = vcmask 1043459
    %v1272 = vsel %vm1271, %v1270, %v1269
    %v1273 = vrot.slane %v1260, 4
    %vm1274 = vcmask 1044484
    %v1275 = vsel %vm1274, %v1273, %v1272
    %v1276 = vrot.slane %v1261, 3
    %vm1277 = vcmask 1045509
    %v1278 = vsel %vm1277, %v1276, %v1275
    %v1279 = vrot.slane %v1262, 2
    %vm1280 = vcmask 1046534
    %v1281 = vsel %vm1280, %v1279, %v1278
    %v1282 = vrot.slane %v1263, 1
    %vm1283 = vcmask 1047559
    %v1284 = vsel %vm1283, %v1282, %v1281
    %v1285 = vpack.c.b16 %v1284, %v1284
    %v1286 = vrot.slane %v1256, 2
    %v1287 = vrot.slane %v1257, 1
    %v1288 = vsel %vm1265, %v1287, %v1286
    %v1289 = vsel %vm1268, %v1258, %v1288
    %v1290 = vrot.slane %v1259, 7
    %v1291 = vsel %vm1271, %v1290, %v1289
    %v1292 = vrot.slane %v1260, 6
    %v1293 = vsel %vm1274, %v1292, %v1291
    %v1294 = vrot.slane %v1261, 5
    %v1295 = vsel %vm1277, %v1294, %v1293
    %v1296 = vrot.slane %v1262, 4
    %v1297 = vsel %vm1280, %v1296, %v1295
    %v1298 = vrot.slane %v1263, 3
    %v1299 = vsel %vm1283, %v1298, %v1297
    %v1300 = vpack.c.b16 %v1299, %v1299
    %v1302 = vsel %vm185, %v1285, 0
    %v1305 = vsel %vm185, %v1300, 0
    %1307 = vmatprep.subr.bf16.mxu0 0
    %1308 = vmatpush1.bf16.xpose.msra.mxu0 0
    %1309 = vmatprep.subr.bf16.mxu0 0
    %1310 = vmatpush1.bf16.xpose.msra.mxu0 0
    %1311 = vmatprep.subr.bf16.mxu0 0
    %1312 = vmatpush1.bf16.xpose.msra.mxu0 0
    %1313 = vmatprep.subr.bf16.mxu0 0
    %1314 = vmatpush1.bf16.xpose.msra.mxu0 0
    %1315 = vmatprep.subr.bf16.mxu0 0
    %1316 = vmatpush1.bf16.xpose.msra.mxu0 0
    %1317 = vmatprep.subr.bf16.mxu0 0
    %1318 = vmatpush1.bf16.xpose.msra.mxu0 0
    %1319 = vmatprep.subr.bf16.mxu0 0
    %1320 = vmatpush1.bf16.xpose.msra.mxu0 0
    %1321 = vmatprep.subr.bf16.mxu0 0
    %1322 = vmatpush1.bf16.xpose.msra.mxu0 %v1305
    %1323 = vmatprep.subr.bf16.mxu0 0
    %1324 = vmatpush2.bf16.xpose.msra.mxu0 0
    %1325 = vmatprep.subr.bf16.mxu0 0
    %1326 = vmatpush2.bf16.xpose.msra.mxu0 0
    %1327 = vmatprep.subr.bf16.mxu0 0
    %1328 = vmatpush2.bf16.xpose.msra.mxu0 0
    %1329 = vmatprep.subr.bf16.mxu0 0
    %1330 = vmatpush2.bf16.xpose.msra.mxu0 0
    %1331 = vmatprep.subr.bf16.mxu0 0
    %1332 = vmatpush2.bf16.xpose.msra.mxu0 0
    %1333 = vmatprep.subr.bf16.mxu0 0
    %1334 = vmatpush2.bf16.xpose.msra.mxu0 0
    %1335 = vmatprep.subr.bf16.mxu0 0
    %1336 = vmatpush2.bf16.xpose.msra.mxu0 0
    %1337 = vmatprep.subr.bf16.mxu0 0
    %1338 = vmatpush2.bf16.xpose.msra.mxu0 0
    %1339 = vmatprep.mubr.bf16.mxu0 0
    %1340 = vmatmul.mubr.bf16.gmra.mxu0 %v1302
    %v1341 = vpop.f32.mrf.mxu0
    %v1342 = vadd.f32 0.0, %v1341
    %v1343 = vpop.f32.mrf.mxu0
    %v1344 = vpop.f32.mrf.mxu0
    %v1345 = vpop.f32.mrf.mxu0
    %1346 = vdwg.mxu0
    %v1347 = vlaneseq
    %v1348 = vshrl.u32 %v1347, 7
    %v1349 = vsub.s32 0, %v1348
    %v1350 = vrot.slane %v1239, %v1349
    %v1351 = vadd.f32 %v1342, %v1350
    %vm1352 = vcmask 64512
    %v1353 = vsel %vm1352, %v1351, -inf
    %1354 = vmax.xlane.f32.xlu0 %v1353
    %v1355 = vpop.xlane.xlu0 %1354
    %v1356 = vsub.f32 %v1351, %v1355
    %v1357 = vmul.f32 %v1356, 1.442695
    %v1358 = vpow.pop %v1357
    %v1359 = vsel %vm1352, %v1358, 0.0
    %1360 = vadd.xlane.f32.xlu0 %v1359
    %v1361 = vpop.xlane.xlu0 %1360
    %v1362 = vrcp.pop %v1361
    %v1363 = vmul.f32 %v1358, %v1362
    %1364 = vxpose.xlu0.b32.start [1/16] %v1342, 128
    %1365 = vxpose.xlu0.b32.cont [2/16] 0.0, 128
    %1366 = vxpose.xlu0.b32.cont [3/16] 0.0, 128
    %1367 = vxpose.xlu0.b32.cont [4/16] 0.0, 128
    %1368 = vxpose.xlu0.b32.cont [5/16] 0.0, 128
    %1369 = vxpose.xlu0.b32.cont [6/16] 0.0, 128
    %1370 = vxpose.xlu0.b32.cont [7/16] 0.0, 128
    %1371 = vxpose.xlu0.b32.cont [8/16] 0.0, 128
    %1372 = vxpose.xlu0.b32.cont [9/16] 0.0, 128
    %1373 = vxpose.xlu0.b32.cont [10/16] 0.0, 128
    %1374 = vxpose.xlu0.b32.cont [11/16] 0.0, 128
    %1375 = vxpose.xlu0.b32.cont [12/16] 0.0, 128
    %1376 = vxpose.xlu0.b32.cont [13/16] 0.0, 128
    %1377 = vxpose.xlu0.b32.cont [14/16] 0.0, 128
    %1378 = vxpose.xlu0.b32.cont [15/16] 0.0, 128
    %1379 = vxpose.xlu0.b32.end [16/16] 0.0, 128
    %v1380 = vpop.trf.xlu0
    %v1381 = vpop.trf.xlu0
    %v1382 = vpop.trf.xlu0
    %v1383 = vpop.trf.xlu0
    %v1384 = vpop.trf.xlu0
    %v1385 = vpop.trf.xlu0
    %v1386 = vpop.trf.xlu0
    %v1387 = vpop.trf.xlu0
    %v1388 = vpop.trf.xlu0
    %v1389 = vpop.trf.xlu0
    %v1390 = vpop.trf.xlu0
    %v1391 = vpop.trf.xlu0
    %v1392 = vpop.trf.xlu0
    %v1393 = vpop.trf.xlu0
    %v1394 = vpop.trf.xlu0
    %v1395 = vpop.trf.xlu0
    %v1396 = vlaneseq
    %v1397 = vshrl.u32 %v1396, 7
    %v1398 = vsub.s32 0, %v1397
    %v1399 = vrot.slane %v1238, %v1398
    %v1400 = vadd.f32 %v1380, %v1399
    %v1401 = vsel %vm1352, %v1400, -inf
    %1402 = vmax.xlane.f32.xlu0 %v1401
    %v1403 = vpop.xlane.xlu0 %1402
    %v1404 = vsub.f32 %v1400, %v1403
    %v1405 = vmul.f32 %v1404, 1.442695
    %v1406 = vpow.pop %v1405
    %v1407 = vsel %vm1352, %v1406, 0.0
    %1408 = vadd.xlane.f32.xlu0 %v1407
    %v1409 = vpop.xlane.xlu0 %1408
    %v1410 = vrcp.pop %v1409
    %v1411 = vmul.f32 %v1406, %v1410
    %v1412 = vpack.c.bf16 %v1363, %v1363
    %v1414 = vsel %vm1352, %v1412, 0
    %vm1416 = vcmask 1043456
    %v1417 = vsel %vm1416, %v1300, 0
    %1419 = vmatprep.subr.bf16.mxu0 0
    %1420 = vmatpush1.bf16.msra.mxu0 0
    %1421 = vmatprep.subr.bf16.mxu0 0
    %1422 = vmatpush1.bf16.msra.mxu0 0
    %1423 = vmatprep.subr.bf16.mxu0 0
    %1424 = vmatpush1.bf16.msra.mxu0 0
    %1425 = vmatprep.subr.bf16.mxu0 0
    %1426 = vmatpush1.bf16.msra.mxu0 0
    %1427 = vmatprep.subr.bf16.mxu0 0
    %1428 = vmatpush1.bf16.msra.mxu0 0
    %1429 = vmatprep.subr.bf16.mxu0 0
    %1430 = vmatpush1.bf16.msra.mxu0 0
    %1431 = vmatprep.subr.bf16.mxu0 0
    %1432 = vmatpush1.bf16.msra.mxu0 0
    %1433 = vmatprep.subr.bf16.mxu0 0
    %1434 = vmatpush1.bf16.msra.mxu0 %v1417
    %1435 = vmatprep.subr.bf16.mxu0 0
    %1436 = vmatpush2.bf16.msra.mxu0 0
    %1437 = vmatprep.subr.bf16.mxu0 0
    %1438 = vmatpush2.bf16.msra.mxu0 0
    %1439 = vmatprep.subr.bf16.mxu0 0
    %1440 = vmatpush2.bf16.msra.mxu0 0
    %1441 = vmatprep.subr.bf16.mxu0 0
    %1442 = vmatpush2.bf16.msra.mxu0 0
    %1443 = vmatprep.subr.bf16.mxu0 0
    %1444 = vmatpush2.bf16.msra.mxu0 0
    %1445 = vmatprep.subr.bf16.mxu0 0
    %1446 = vmatpush2.bf16.msra.mxu0 0
    %1447 = vmatprep.subr.bf16.mxu0 0
    %1448 = vmatpush2.bf16.msra.mxu0 0
    %1449 = vmatprep.subr.bf16.mxu0 0
    %1450 = vmatpush2.bf16.msra.mxu0 0
    %1451 = vmatprep.mubr.bf16.mxu0 0
    %1452 = vmatmul.mubr.bf16.gmra.mxu0 %v1414
    %v1453 = vpop.f32.mrf.mxu0
    %v1454 = vadd.f32 0.0, %v1453
    %v1455 = vpop.f32.mrf.mxu0
    %v1456 = vpop.f32.mrf.mxu0
    %v1457 = vpop.f32.mrf.mxu0
    %1458 = vdwg.mxu0
    %v1459 = vpack.c.bf16 %v1411, %v1411
    %v1461 = vsel %vm1352, %v1459, 0
    %v1463 = vsel %vm1416, %v1285, 0
    %1465 = vmatprep.subr.bf16.mxu0 0
    %1466 = vmatpush1.bf16.msra.mxu0 0
    %1467 = vmatprep.subr.bf16.mxu0 0
    %1468 = vmatpush1.bf16.msra.mxu0 0
    %1469 = vmatprep.subr.bf16.mxu0 0
    %1470 = vmatpush1.bf16.msra.mxu0 0
    %1471 = vmatprep.subr.bf16.mxu0 0
    %1472 = vmatpush1.bf16.msra.mxu0 0
    %1473 = vmatprep.subr.bf16.mxu0 0
    %1474 = vmatpush1.bf16.msra.mxu0 0
    %1475 = vmatprep.subr.bf16.mxu0 0
    %1476 = vmatpush1.bf16.msra.mxu0 0
    %1477 = vmatprep.subr.bf16.mxu0 0
    %1478 = vmatpush1.bf16.msra.mxu0 0
    %1479 = vmatprep.subr.bf16.mxu0 0
    %1480 = vmatpush1.bf16.msra.mxu0 %v1463
    %1481 = vmatprep.subr.bf16.mxu0 0
    %1482 = vmatpush2.bf16.msra.mxu0 0
    %1483 = vmatprep.subr.bf16.mxu0 0
    %1484 = vmatpush2.bf16.msra.mxu0 0
    %1485 = vmatprep.subr.bf16.mxu0 0
    %1486 = vmatpush2.bf16.msra.mxu0 0
    %1487 = vmatprep.subr.bf16.mxu0 0
    %1488 = vmatpush2.bf16.msra.mxu0 0
    %1489 = vmatprep.subr.bf16.mxu0 0
    %1490 = vmatpush2.bf16.msra.mxu0 0
    %1491 = vmatprep.subr.bf16.mxu0 0
    %1492 = vmatpush2.bf16.msra.mxu0 0
    %1493 = vmatprep.subr.bf16.mxu0 0
    %1494 = vmatpush2.bf16.msra.mxu0 0
    %1495 = vmatprep.subr.bf16.mxu0 0
    %1496 = vmatpush2.bf16.msra.mxu0 0
    %1497 = vmatprep.mubr.bf16.mxu0 0
    %1498 = vmatmul.mubr.bf16.gmra.mxu0 %v1461
    %v1499 = vpop.f32.mrf.mxu0
    %v1500 = vadd.f32 0.0, %v1499
    %v1501 = vpop.f32.mrf.mxu0
    %v1502 = vpop.f32.mrf.mxu0
    %v1503 = vpop.f32.mrf.mxu0
    %1504 = vdwg.mxu0
    %v1506 = vrot.slane %v1454, 1
    %v1507 = vrot.slane %v1454, 2
    %v1508 = vrot.slane %v1454, 3
    %v1509 = vrot.slane %v1454, 4
    %v1510 = vrot.slane %v1454, 5
    %v1511 = vrot.slane %v1454, 6
    %v1512 = vrot.slane %v1454, 7
    %v1521 = vsub.f32 %v1230, %v1454
    %v1522 = vsub.f32 %v1231, %v1506
    %v1523 = vsub.f32 %v1232, %v1507
    %v1524 = vsub.f32 %v1233, %v1508
    %v1525 = vsub.f32 %v1234, %v1509
    %v1526 = vsub.f32 %v1235, %v1510
    %v1527 = vsub.f32 %v1236, %v1511
    %v1528 = vsub.f32 %v1237, %v1512
    %v1529 = vmul.f32 %v1230, %v1454
    %v1530 = vmul.f32 %v1231, %v1506
    %v1531 = vmul.f32 %v1232, %v1507
    %v1532 = vmul.f32 %v1233, %v1508
    %v1533 = vmul.f32 %v1234, %v1509
    %v1534 = vmul.f32 %v1235, %v1510
    %v1535 = vmul.f32 %v1236, %v1511
    %v1536 = vmul.f32 %v1237, %v1512
    %v1545 = vrot.slane %v1231, 7
    %v1546 = vsel %vm1265, %v1545, %v1230
    %v1547 = vrot.slane %v1232, 6
    %v1548 = vsel %vm1268, %v1547, %v1546
    %v1549 = vrot.slane %v1233, 5
    %v1550 = vsel %vm1271, %v1549, %v1548
    %v1551 = vrot.slane %v1234, 4
    %v1552 = vsel %vm1274, %v1551, %v1550
    %v1553 = vrot.slane %v1235, 3
    %v1554 = vsel %vm1277, %v1553, %v1552
    %v1555 = vrot.slane %v1236, 2
    %v1556 = vsel %vm1280, %v1555, %v1554
    %v1557 = vrot.slane %v1237, 1
    %v1558 = vsel %vm1283, %v1557, %v1556
    %1560 = vrot.lane.b32.xlu0 %v1454, 64
    %v1561 = vpop.permute.xlu0 %1560
    %v1571 = vrot.slane %v1522, 7
    %v1572 = vsel %vm1265, %v1571, %v1521
    %v1573 = vrot.slane %v1523, 6
    %v1574 = vsel %vm1268, %v1573, %v1572
    %v1575 = vrot.slane %v1524, 5
    %v1576 = vsel %vm1271, %v1575, %v1574
    %v1577 = vrot.slane %v1525, 4
    %v1578 = vsel %vm1274, %v1577, %v1576
    %v1579 = vrot.slane %v1526, 3
    %v1580 = vsel %vm1277, %v1579, %v1578
    %v1581 = vrot.slane %v1527, 2
    %v1582 = vsel %vm1280, %v1581, %v1580
    %v1583 = vrot.slane %v1528, 1
    %v1584 = vsel %vm1283, %v1583, %v1582
    %v1594 = vrot.slane %v1530, 7
    %v1595 = vsel %vm1265, %v1594, %v1529
    %v1596 = vrot.slane %v1531, 6
    %v1597 = vsel %vm1268, %v1596, %v1595
    %v1598 = vrot.slane %v1532, 5
    %v1599 = vsel %vm1271, %v1598, %v1597
    %v1600 = vrot.slane %v1533, 4
    %v1601 = vsel %vm1274, %v1600, %v1599
    %v1602 = vrot.slane %v1534, 3
    %v1603 = vsel %vm1277, %v1602, %v1601
    %v1604 = vrot.slane %v1535, 2
    %v1605 = vsel %vm1280, %v1604, %v1603
    %v1606 = vrot.slane %v1536, 1
    %v1607 = vsel %vm1283, %v1606, %v1605
    %1608 = vrot.lane.b32.xlu0 %v1607, 64
    %v1609 = vpop.permute.xlu0 %1608
    %v1611 = vsel %vm185, %v1558, %v1561
    %v1612 = vsel %vm185, %v1584, %v1609
    %v1615 = vcombine.low %v1611, %v1612
    %v1616 = vcombine.high %v1611, %v1612
    %v1618 = vunpack.c.l.s4 1966171168
    %v1619 = vunpack.c.0.s8 %v1618
    %v1620 = vlaneseq
    %v1621 = vshrl.u32 %v1620, 7
    %v1622 = vsub.s32 %v1619, %v1621
    %v1623 = vrot.slane %v1615, %v1622
    %v1625 = vunpack.c.l.s4 1966171168
    %v1626 = vunpack.c.0.s8 %v1625
    %v1627 = vlaneseq
    %v1628 = vshrl.u32 %v1627, 7
    %v1629 = vsub.s32 %v1626, %v1628
    %v1630 = vrot.slane %v1616, %v1629
    %v1631 = vcombine.high %v1623, %v1623
    %v1632 = vcombine.high %v1630, %v1630
    %v1634 = vunpack.c.l.s4 1966171168
    %v1635 = vunpack.c.0.s8 %v1634
    %v1636 = vlaneseq
    %v1637 = vshrl.u32 %v1636, 7
    %v1638 = vsub.s32 %v1635, %v1637
    %v1639 = vrot.slane %v1623, %v1638
    %v1641 = vunpack.c.l.s4 1966171168
    %v1642 = vunpack.c.0.s8 %v1641
    %v1643 = vlaneseq
    %v1644 = vshrl.u32 %v1643, 7
    %v1645 = vsub.s32 %v1642, %v1644
    %v1646 = vrot.slane %v1630, %v1645
    %v1648 = vunpack.c.l.s4 1966171168
    %v1649 = vunpack.c.0.s8 %v1648
    %v1650 = vlaneseq
    %v1651 = vshrl.u32 %v1650, 7
    %v1652 = vsub.s32 %v1649, %v1651
    %v1653 = vrot.slane %v1631, %v1652
    %v1655 = vunpack.c.l.s4 1966171168
    %v1656 = vunpack.c.0.s8 %v1655
    %v1657 = vlaneseq
    %v1658 = vshrl.u32 %v1657, 7
    %v1659 = vsub.s32 %v1656, %v1658
    %v1660 = vrot.slane %v1632, %v1659
    %v1661 = vcombine.high %v1639, %v1639
    %v1662 = vcombine.high %v1646, %v1646
    %v1663 = vcombine.high %v1653, %v1653
    %v1664 = vcombine.high %v1660, %v1660
    %v1673 = vlaneseq
    %vm1674 = vcmp.ge.s32.totalorder %v1673, 0
    %vm1675 = vcmp.lt.s32.totalorder %v1673, 256
    %vm1676 = vmand %vm1674, %vm1675
    %1677 = vst.msk [vmem:[#allocation4] ss:$8 sm:$0x3] %vm1676, %v1639
    %1678 = vst.msk [vmem:[#allocation4] ss:$8 sm:$0x0] %vm1676, %v1639
    %s1679 = scalar_lea.vmem [#allocation4], 16
    %1680 = vst.msk [vmem:[%s1679] ss:$8 sm:$0x3] %vm1676, %v1653
    %1681 = vst.msk [vmem:[%s1679] ss:$8 sm:$0x0] %vm1676, %v1653
    %s1682 = scalar_lea.vmem [#allocation4], 32
    %1683 = vst.msk [vmem:[%s1682] ss:$8 sm:$0x3] %vm1676, %v1661
    %1684 = vst.msk [vmem:[%s1682] ss:$8 sm:$0x0] %vm1676, %v1661
    %s1685 = scalar_lea.vmem [#allocation4], 48
    %1686 = vst.msk [vmem:[%s1685] ss:$8 sm:$0x3] %vm1676, %v1663
    %1687 = vst.msk [vmem:[%s1685] ss:$8 sm:$0x0] %vm1676, %v1663
    %s1688 = scalar_lea.vmem [#allocation4], 64
    %1689 = vst.msk [vmem:[%s1688] ss:$8 sm:$0x3] %vm1676, %v1646
    %1690 = vst.msk [vmem:[%s1688] ss:$8 sm:$0x0] %vm1676, %v1646
    %s1691 = scalar_lea.vmem [#allocation4], 80
    %1692 = vst.msk [vmem:[%s1691] ss:$8 sm:$0x3] %vm1676, %v1660
    %1693 = vst.msk [vmem:[%s1691] ss:$8 sm:$0x0] %vm1676, %v1660
    %s1694 = scalar_lea.vmem [#allocation4], 96
    %1695 = vst.msk [vmem:[%s1694] ss:$8 sm:$0x3] %vm1676, %v1662
    %1696 = vst.msk [vmem:[%s1694] ss:$8 sm:$0x0] %vm1676, %v1662
    %s1697 = scalar_lea.vmem [#allocation4], 112
    %1698 = vst.msk [vmem:[%s1697] ss:$8 sm:$0x3] %vm1676, %v1664
    %1699 = vst.msk [vmem:[%s1697] ss:$8 sm:$0x0] %vm1676, %v1664
    %v1701 = vrot.slane %v1500, 6
    %v1702 = vrot.slane %v1500, 7
    %v1703 = vrot.slane %v1500, 1
    %v1704 = vrot.slane %v1500, 2
    %v1705 = vrot.slane %v1500, 3
    %v1706 = vrot.slane %v1500, 4
    %v1707 = vrot.slane %v1500, 5
    %v1716 = vsub.f32 %v1230, %v1701
    %v1717 = vsub.f32 %v1231, %v1702
    %v1718 = vsub.f32 %v1232, %v1500
    %v1719 = vsub.f32 %v1233, %v1703
    %v1720 = vsub.f32 %v1234, %v1704
    %v1721 = vsub.f32 %v1235, %v1705
    %v1722 = vsub.f32 %v1236, %v1706
    %v1723 = vsub.f32 %v1237, %v1707
    %v1724 = vmul.f32 %v1230, %v1701
    %v1725 = vmul.f32 %v1231, %v1702
    %v1726 = vmul.f32 %v1232, %v1500
    %v1727 = vmul.f32 %v1233, %v1703
    %v1728 = vmul.f32 %v1234, %v1704
    %v1729 = vmul.f32 %v1235, %v1705
    %v1730 = vmul.f32 %v1236, %v1706
    %v1731 = vmul.f32 %v1237, %v1707
    %v1732 = vsel %vm1271, %v1545, %v1230
    %v1733 = vsel %vm1274, %v1547, %v1732
    %v1734 = vsel %vm1277, %v1549, %v1733
    %v1735 = vsel %vm1280, %v1551, %v1734
    %v1736 = vsel %vm1283, %v1553, %v1735
    %v1737 = vsel %vm1265, %v1557, %v1555
    %1740 = vrot.lane.b32.xlu0 %v1701, 64
    %v1741 = vpop.permute.xlu0 %1740
    %v1751 = vrot.slane %v1717, 7
    %v1752 = vsel %vm1271, %v1751, %v1716
    %v1753 = vrot.slane %v1718, 6
    %v1754 = vsel %vm1274, %v1753, %v1752
    %v1755 = vrot.slane %v1719, 5
    %v1756 = vsel %vm1277, %v1755, %v1754
    %v1757 = vrot.slane %v1720, 4
    %v1758 = vsel %vm1280, %v1757, %v1756
    %v1759 = vrot.slane %v1721, 3
    %v1760 = vsel %vm1283, %v1759, %v1758
    %v1761 = vrot.slane %v1722, 2
    %v1762 = vrot.slane %v1723, 1
    %v1763 = vsel %vm1265, %v1762, %v1761
    %v1774 = vrot.slane %v1725, 7
    %v1775 = vsel %vm1271, %v1774, %v1724
    %v1776 = vrot.slane %v1726, 6
    %v1777 = vsel %vm1274, %v1776, %v1775
    %v1778 = vrot.slane %v1727, 5
    %v1779 = vsel %vm1277, %v1778, %v1777
    %v1780 = vrot.slane %v1728, 4
    %v1781 = vsel %vm1280, %v1780, %v1779
    %v1782 = vrot.slane %v1729, 3
    %v1783 = vsel %vm1283, %v1782, %v1781
    %v1784 = vrot.slane %v1730, 2
    %v1785 = vrot.slane %v1731, 1
    %v1786 = vsel %vm1265, %v1785, %v1784
    %1787 = vrot.lane.b32.xlu0 %v1783, 64
    %v1788 = vpop.permute.xlu0 %1787
    %1789 = vrot.lane.b32.xlu0 %v1786, 64
    %v1790 = vpop.permute.xlu0 %1789
    %v1793 = vsel %vm185, %v1736, %v1741
    %v1794 = vsel %vm185, %v1737, %v1741
    %v1795 = vsel %vm185, %v1760, %v1788
    %v1796 = vsel %vm185, %v1763, %v1790
    %v1801 = vcombine.low %v1793, %v1795
    %v1802 = vcombine.high %v1793, %v1795
    %v1804 = vunpack.c.l.s4 1966171168
    %v1805 = vunpack.c.0.s8 %v1804
    %v1806 = vlaneseq
    %v1807 = vshrl.u32 %v1806, 7
    %v1808 = vsub.s32 %v1805, %v1807
    %v1809 = vrot.slane %v1801, %v1808
    %v1811 = vunpack.c.l.s4 1966171168
    %v1812 = vunpack.c.0.s8 %v1811
    %v1813 = vlaneseq
    %v1814 = vshrl.u32 %v1813, 7
    %v1815 = vsub.s32 %v1812, %v1814
    %v1816 = vrot.slane %v1802, %v1815
    %v1817 = vcombine.high %v1809, %v1809
    %v1818 = vcombine.high %v1816, %v1816
    %v1820 = vunpack.c.l.s4 1966171168
    %v1821 = vunpack.c.0.s8 %v1820
    %v1822 = vlaneseq
    %v1823 = vshrl.u32 %v1822, 7
    %v1824 = vsub.s32 %v1821, %v1823
    %v1825 = vrot.slane %v1809, %v1824
    %v1827 = vunpack.c.l.s4 1966171168
    %v1828 = vunpack.c.0.s8 %v1827
    %v1829 = vlaneseq
    %v1830 = vshrl.u32 %v1829, 7
    %v1831 = vsub.s32 %v1828, %v1830
    %v1832 = vrot.slane %v1816, %v1831
    %v1834 = vunpack.c.l.s4 1966171168
    %v1835 = vunpack.c.0.s8 %v1834
    %v1836 = vlaneseq
    %v1837 = vshrl.u32 %v1836, 7
    %v1838 = vsub.s32 %v1835, %v1837
    %v1839 = vrot.slane %v1817, %v1838
    %v1841 = vunpack.c.l.s4 1966171168
    %v1842 = vunpack.c.0.s8 %v1841
    %v1843 = vlaneseq
    %v1844 = vshrl.u32 %v1843, 7
    %v1845 = vsub.s32 %v1842, %v1844
    %v1846 = vrot.slane %v1818, %v1845
    %v1847 = vcombine.high %v1825, %v1825
    %v1848 = vcombine.high %v1832, %v1832
    %v1849 = vcombine.high %v1839, %v1839
    %v1850 = vcombine.high %v1846, %v1846
    %v1851 = vcombine.low %v1794, %v1796
    %v1853 = vunpack.c.l.s4 1966171168
    %v1854 = vunpack.c.0.s8 %v1853
    %v1855 = vlaneseq
    %v1856 = vshrl.u32 %v1855, 7
    %v1857 = vsub.s32 %v1854, %v1856
    %v1858 = vrot.slane %v1851, %v1857
    %v1859 = vcombine.high %v1858, %v1858
    %v1861 = vunpack.c.l.s4 1966171168
    %v1862 = vunpack.c.0.s8 %v1861
    %v1863 = vlaneseq
    %v1864 = vshrl.u32 %v1863, 7
    %v1865 = vsub.s32 %v1862, %v1864
    %v1866 = vrot.slane %v1858, %v1865
    %v1868 = vunpack.c.l.s4 1966171168
    %v1869 = vunpack.c.0.s8 %v1868
    %v1870 = vlaneseq
    %v1871 = vshrl.u32 %v1870, 7
    %v1872 = vsub.s32 %v1869, %v1871
    %v1873 = vrot.slane %v1859, %v1872
    %s1882 = scalar_lea.vmem [#allocation4], 2
    %1883 = vst.msk [vmem:[%s1882] ss:$8 sm:$0x3] %vm1676, %v1847
    %1884 = vst.msk [vmem:[%s1882] ss:$8 sm:$0x0] %vm1676, %v1847
    %s1885 = scalar_lea.vmem [#allocation4], 18
    %1886 = vst.msk [vmem:[%s1885] ss:$8 sm:$0x3] %vm1676, %v1849
    %1887 = vst.msk [vmem:[%s1885] ss:$8 sm:$0x0] %vm1676, %v1849
    %s1888 = scalar_lea.vmem [#allocation4], 34
    %1889 = vst.msk [vmem:[%s1888] ss:$8 sm:$0x3] %vm1676, %v1832
    %1890 = vst.msk [vmem:[%s1888] ss:$8 sm:$0x0] %vm1676, %v1832
    %s1891 = scalar_lea.vmem [#allocation4], 50
    %1892 = vst.msk [vmem:[%s1891] ss:$8 sm:$0x3] %vm1676, %v1846
    %1893 = vst.msk [vmem:[%s1891] ss:$8 sm:$0x0] %vm1676, %v1846
    %s1894 = scalar_lea.vmem [#allocation4], 66
    %1895 = vst.msk [vmem:[%s1894] ss:$8 sm:$0x3] %vm1676, %v1848
    %1896 = vst.msk [vmem:[%s1894] ss:$8 sm:$0x0] %vm1676, %v1848
    %s1897 = scalar_lea.vmem [#allocation4], 82
    %1898 = vst.msk [vmem:[%s1897] ss:$8 sm:$0x3] %vm1676, %v1850
    %1899 = vst.msk [vmem:[%s1897] ss:$8 sm:$0x0] %vm1676, %v1850
    %s1900 = scalar_lea.vmem [#allocation4], 98
    %1901 = vst.msk [vmem:[%s1900] ss:$8 sm:$0x3] %vm1676, %v1866
    %1902 = vst.msk [vmem:[%s1900] ss:$8 sm:$0x0] %vm1676, %v1866
    %s1903 = scalar_lea.vmem [#allocation4], 114
    %1904 = vst.msk [vmem:[%s1903] ss:$8 sm:$0x3] %vm1676, %v1873
    %1905 = vst.msk [vmem:[%s1903] ss:$8 sm:$0x0] %vm1676, %v1873
    %v1906 = vrot.slane %v1256, 1
    %v1907 = vsel %vm1265, %v1257, %v1906
    %v1908 = vrot.slane %v1258, 7
    %v1909 = vsel %vm1268, %v1908, %v1907
    %v1910 = vrot.slane %v1259, 6
    %v1911 = vsel %vm1271, %v1910, %v1909
    %v1912 = vrot.slane %v1260, 5
    %v1913 = vsel %vm1274, %v1912, %v1911
    %v1914 = vrot.slane %v1261, 4
    %v1915 = vsel %vm1277, %v1914, %v1913
    %v1916 = vrot.slane %v1262, 3
    %v1917 = vsel %vm1280, %v1916, %v1915
    %v1918 = vrot.slane %v1263, 2
    %v1919 = vsel %vm1283, %v1918, %v1917
    %v1920 = vpack.c.b16 %v1919, %v1919
    %v1921 = vrot.slane %v1256, 3
    %v1922 = vrot.slane %v1257, 2
    %v1923 = vsel %vm1265, %v1922, %v1921
    %v1924 = vrot.slane %v1258, 1
    %v1925 = vsel %vm1268, %v1924, %v1923
    %v1926 = vsel %vm1271, %v1259, %v1925
    %v1927 = vrot.slane %v1260, 7
    %v1928 = vsel %vm1274, %v1927, %v1926
    %v1929 = vrot.slane %v1261, 6
    %v1930 = vsel %vm1277, %v1929, %v1928
    %v1931 = vrot.slane %v1262, 5
    %v1932 = vsel %vm1280, %v1931, %v1930
    %v1933 = vrot.slane %v1263, 4
    %v1934 = vsel %vm1283, %v1933, %v1932
    %v1935 = vpack.c.b16 %v1934, %v1934
    %v1937 = vsel %vm185, %v1920, 0
    %v1940 = vsel %vm185, %v1935, 0
    %1942 = vmatprep.subr.bf16.mxu0 0
    %1943 = vmatpush1.bf16.xpose.msra.mxu0 0
    %1944 = vmatprep.subr.bf16.mxu0 0
    %1945 = vmatpush1.bf16.xpose.msra.mxu0 0
    %1946 = vmatprep.subr.bf16.mxu0 0
    %1947 = vmatpush1.bf16.xpose.msra.mxu0 0
    %1948 = vmatprep.subr.bf16.mxu0 0
    %1949 = vmatpush1.bf16.xpose.msra.mxu0 0
    %1950 = vmatprep.subr.bf16.mxu0 0
    %1951 = vmatpush1.bf16.xpose.msra.mxu0 0
    %1952 = vmatprep.subr.bf16.mxu0 0
    %1953 = vmatpush1.bf16.xpose.msra.mxu0 0
    %1954 = vmatprep.subr.bf16.mxu0 0
    %1955 = vmatpush1.bf16.xpose.msra.mxu0 0
    %1956 = vmatprep.subr.bf16.mxu0 0
    %1957 = vmatpush1.bf16.xpose.msra.mxu0 %v1940
    %1958 = vmatprep.subr.bf16.mxu0 0
    %1959 = vmatpush2.bf16.xpose.msra.mxu0 0
    %1960 = vmatprep.subr.bf16.mxu0 0
    %1961 = vmatpush2.bf16.xpose.msra.mxu0 0
    %1962 = vmatprep.subr.bf16.mxu0 0
    %1963 = vmatpush2.bf16.xpose.msra.mxu0 0
    %1964 = vmatprep.subr.bf16.mxu0 0
    %1965 = vmatpush2.bf16.xpose.msra.mxu0 0
    %1966 = vmatprep.subr.bf16.mxu0 0
    %1967 = vmatpush2.bf16.xpose.msra.mxu0 0
    %1968 = vmatprep.subr.bf16.mxu0 0
    %1969 = vmatpush2.bf16.xpose.msra.mxu0 0
    %1970 = vmatprep.subr.bf16.mxu0 0
    %1971 = vmatpush2.bf16.xpose.msra.mxu0 0
    %1972 = vmatprep.subr.bf16.mxu0 0
    %1973 = vmatpush2.bf16.xpose.msra.mxu0 0
    %1974 = vmatprep.mubr.bf16.mxu0 0
    %1975 = vmatmul.mubr.bf16.gmra.mxu0 %v1937
    %v1976 = vpop.f32.mrf.mxu0
    %v1977 = vadd.f32 0.0, %v1976
    %v1978 = vpop.f32.mrf.mxu0
    %v1979 = vpop.f32.mrf.mxu0
    %v1980 = vpop.f32.mrf.mxu0
    %1981 = vdwg.mxu0
    %v1982 = vlaneseq
    %v1983 = vshrl.u32 %v1982, 7
    %v1984 = vsub.s32 1, %v1983
    %v1985 = vrot.slane %v1239, %v1984
    %v1986 = vadd.f32 %v1977, %v1985
    %v1987 = vsel %vm1352, %v1986, -inf
    %1988 = vmax.xlane.f32.xlu0 %v1987
    %v1989 = vpop.xlane.xlu0 %1988
    %v1990 = vsub.f32 %v1986, %v1989
    %v1991 = vmul.f32 %v1990, 1.442695
    %v1992 = vpow.pop %v1991
    %v1993 = vsel %vm1352, %v1992, 0.0
    %1994 = vadd.xlane.f32.xlu0 %v1993
    %v1995 = vpop.xlane.xlu0 %1994
    %v1996 = vrcp.pop %v1995
    %v1997 = vmul.f32 %v1992, %v1996
    %1998 = vxpose.xlu0.b32.start [1/16] %v1977, 128
    %1999 = vxpose.xlu0.b32.cont [2/16] 0.0, 128
    %2000 = vxpose.xlu0.b32.cont [3/16] 0.0, 128
    %2001 = vxpose.xlu0.b32.cont [4/16] 0.0, 128
    %2002 = vxpose.xlu0.b32.cont [5/16] 0.0, 128
    %2003 = vxpose.xlu0.b32.cont [6/16] 0.0, 128
    %2004 = vxpose.xlu0.b32.cont [7/16] 0.0, 128
    %2005 = vxpose.xlu0.b32.cont [8/16] 0.0, 128
    %2006 = vxpose.xlu0.b32.cont [9/16] 0.0, 128
    %2007 = vxpose.xlu0.b32.cont [10/16] 0.0, 128
    %2008 = vxpose.xlu0.b32.cont [11/16] 0.0, 128
    %2009 = vxpose.xlu0.b32.cont [12/16] 0.0, 128
    %2010 = vxpose.xlu0.b32.cont [13/16] 0.0, 128
    %2011 = vxpose.xlu0.b32.cont [14/16] 0.0, 128
    %2012 = vxpose.xlu0.b32.cont [15/16] 0.0, 128
    %2013 = vxpose.xlu0.b32.end [16/16] 0.0, 128
    %v2014 = vpop.trf.xlu0
    %v2015 = vpop.trf.xlu0
    %v2016 = vpop.trf.xlu0
    %v2017 = vpop.trf.xlu0
    %v2018 = vpop.trf.xlu0
    %v2019 = vpop.trf.xlu0
    %v2020 = vpop.trf.xlu0
    %v2021 = vpop.trf.xlu0
    %v2022 = vpop.trf.xlu0
    %v2023 = vpop.trf.xlu0
    %v2024 = vpop.trf.xlu0
    %v2025 = vpop.trf.xlu0
    %v2026 = vpop.trf.xlu0
    %v2027 = vpop.trf.xlu0
    %v2028 = vpop.trf.xlu0
    %v2029 = vpop.trf.xlu0
    %v2030 = vlaneseq
    %v2031 = vshrl.u32 %v2030, 7
    %v2032 = vsub.s32 1, %v2031
    %v2033 = vrot.slane %v1238, %v2032
    %v2034 = vadd.f32 %v2014, %v2033
    %v2035 = vsel %vm1352, %v2034, -inf
    %2036 = vmax.xlane.f32.xlu0 %v2035
    %v2037 = vpop.xlane.xlu0 %2036
    %v2038 = vsub.f32 %v2034, %v2037
    %v2039 = vmul.f32 %v2038, 1.442695
    %v2040 = vpow.pop %v2039
    %v2041 = vsel %vm1352, %v2040, 0.0
    %2042 = vadd.xlane.f32.xlu0 %v2041
    %v2043 = vpop.xlane.xlu0 %2042
    %v2044 = vrcp.pop %v2043
    %v2045 = vmul.f32 %v2040, %v2044
    %v2046 = vpack.c.bf16 %v1997, %v1997
    %v2048 = vsel %vm1352, %v2046, 0
    %v2050 = vsel %vm1416, %v1935, 0
    %2052 = vmatprep.subr.bf16.mxu0 0
    %2053 = vmatpush1.bf16.msra.mxu0 0
    %2054 = vmatprep.subr.bf16.mxu0 0
    %2055 = vmatpush1.bf16.msra.mxu0 0
    %2056 = vmatprep.subr.bf16.mxu0 0
    %2057 = vmatpush1.bf16.msra.mxu0 0
    %2058 = vmatprep.subr.bf16.mxu0 0
    %2059 = vmatpush1.bf16.msra.mxu0 0
    %2060 = vmatprep.subr.bf16.mxu0 0
    %2061 = vmatpush1.bf16.msra.mxu0 0
    %2062 = vmatprep.subr.bf16.mxu0 0
    %2063 = vmatpush1.bf16.msra.mxu0 0
    %2064 = vmatprep.subr.bf16.mxu0 0
    %2065 = vmatpush1.bf16.msra.mxu0 0
    %2066 = vmatprep.subr.bf16.mxu0 0
    %2067 = vmatpush1.bf16.msra.mxu0 %v2050
    %2068 = vmatprep.subr.bf16.mxu0 0
    %2069 = vmatpush2.bf16.msra.mxu0 0
    %2070 = vmatprep.subr.bf16.mxu0 0
    %2071 = vmatpush2.bf16.msra.mxu0 0
    %2072 = vmatprep.subr.bf16.mxu0 0
    %2073 = vmatpush2.bf16.msra.mxu0 0
    %2074 = vmatprep.subr.bf16.mxu0 0
    %2075 = vmatpush2.bf16.msra.mxu0 0
    %2076 = vmatprep.subr.bf16.mxu0 0
    %2077 = vmatpush2.bf16.msra.mxu0 0
    %2078 = vmatprep.subr.bf16.mxu0 0
    %2079 = vmatpush2.bf16.msra.mxu0 0
    %2080 = vmatprep.subr.bf16.mxu0 0
    %2081 = vmatpush2.bf16.msra.mxu0 0
    %2082 = vmatprep.subr.bf16.mxu0 0
    %2083 = vmatpush2.bf16.msra.mxu0 0
    %2084 = vmatprep.mubr.bf16.mxu0 0
    %2085 = vmatmul.mubr.bf16.gmra.mxu0 %v2048
    %v2086 = vpop.f32.mrf.mxu0
    %v2087 = vadd.f32 0.0, %v2086
    %v2088 = vpop.f32.mrf.mxu0
    %v2089 = vpop.f32.mrf.mxu0
    %v2090 = vpop.f32.mrf.mxu0
    %2091 = vdwg.mxu0
    %v2092 = vpack.c.bf16 %v2045, %v2045
    %v2094 = vsel %vm1352, %v2092, 0
    %v2096 = vsel %vm1416, %v1920, 0
    %2098 = vmatprep.subr.bf16.mxu0 0
    %2099 = vmatpush1.bf16.msra.mxu0 0
    %2100 = vmatprep.subr.bf16.mxu0 0
    %2101 = vmatpush1.bf16.msra.mxu0 0
    %2102 = vmatprep.subr.bf16.mxu0 0
    %2103 = vmatpush1.bf16.msra.mxu0 0
    %2104 = vmatprep.subr.bf16.mxu0 0
    %2105 = vmatpush1.bf16.msra.mxu0 0
    %2106 = vmatprep.subr.bf16.mxu0 0
    %2107 = vmatpush1.bf16.msra.mxu0 0
    %2108 = vmatprep.subr.bf16.mxu0 0
    %2109 = vmatpush1.bf16.msra.mxu0 0
    %2110 = vmatprep.subr.bf16.mxu0 0
    %2111 = vmatpush1.bf16.msra.mxu0 0
    %2112 = vmatprep.subr.bf16.mxu0 0
    %2113 = vmatpush1.bf16.msra.mxu0 %v2096
    %2114 = vmatprep.subr.bf16.mxu0 0
    %2115 = vmatpush2.bf16.msra.mxu0 0
    %2116 = vmatprep.subr.bf16.mxu0 0
    %2117 = vmatpush2.bf16.msra.mxu0 0
    %2118 = vmatprep.subr.bf16.mxu0 0
    %2119 = vmatpush2.bf16.msra.mxu0 0
    %2120 = vmatprep.subr.bf16.mxu0 0
    %2121 = vmatpush2.bf16.msra.mxu0 0
    %2122 = vmatprep.subr.bf16.mxu0 0
    %2123 = vmatpush2.bf16.msra.mxu0 0
    %2124 = vmatprep.subr.bf16.mxu0 0
    %2125 = vmatpush2.bf16.msra.mxu0 0
    %2126 = vmatprep.subr.bf16.mxu0 0
    %2127 = vmatpush2.bf16.msra.mxu0 0
    %2128 = vmatprep.subr.bf16.mxu0 0
    %2129 = vmatpush2.bf16.msra.mxu0 0
    %2130 = vmatprep.mubr.bf16.mxu0 0
    %2131 = vmatmul.mubr.bf16.gmra.mxu0 %v2094
    %v2132 = vpop.f32.mrf.mxu0
    %v2133 = vadd.f32 0.0, %v2132
    %v2134 = vpop.f32.mrf.mxu0
    %v2135 = vpop.f32.mrf.mxu0
    %v2136 = vpop.f32.mrf.mxu0
    %2137 = vdwg.mxu0
    %v2139 = vrot.slane %v2087, 7
    %v2140 = vrot.slane %v2087, 1
    %v2141 = vrot.slane %v2087, 2
    %v2142 = vrot.slane %v2087, 3
    %v2143 = vrot.slane %v2087, 4
    %v2144 = vrot.slane %v2087, 5
    %v2145 = vrot.slane %v2087, 6
    %v2154 = vsub.f32 %v1230, %v2139
    %v2155 = vsub.f32 %v1231, %v2087
    %v2156 = vsub.f32 %v1232, %v2140
    %v2157 = vsub.f32 %v1233, %v2141
    %v2158 = vsub.f32 %v1234, %v2142
    %v2159 = vsub.f32 %v1235, %v2143
    %v2160 = vsub.f32 %v1236, %v2144
    %v2161 = vsub.f32 %v1237, %v2145
    %v2162 = vmul.f32 %v1230, %v2139
    %v2163 = vmul.f32 %v1231, %v2087
    %v2164 = vmul.f32 %v1232, %v2140
    %v2165 = vmul.f32 %v1233, %v2141
    %v2166 = vmul.f32 %v1234, %v2142
    %v2167 = vmul.f32 %v1235, %v2143
    %v2168 = vmul.f32 %v1236, %v2144
    %v2169 = vmul.f32 %v1237, %v2145
    %v2170 = vsel %vm1268, %v1545, %v1230
    %v2171 = vsel %vm1271, %v1547, %v2170
    %v2172 = vsel %vm1274, %v1549, %v2171
    %v2173 = vsel %vm1277, %v1551, %v2172
    %v2174 = vsel %vm1280, %v1553, %v2173
    %v2175 = vsel %vm1283, %v1555, %v2174
    %2178 = vrot.lane.b32.xlu0 %v2139, 64
    %v2179 = vpop.permute.xlu0 %2178
    %v2189 = vrot.slane %v2155, 7
    %v2190 = vsel %vm1268, %v2189, %v2154
    %v2191 = vrot.slane %v2156, 6
    %v2192 = vsel %vm1271, %v2191, %v2190
    %v2193 = vrot.slane %v2157, 5
    %v2194 = vsel %vm1274, %v2193, %v2192
    %v2195 = vrot.slane %v2158, 4
    %v2196 = vsel %vm1277, %v2195, %v2194
    %v2197 = vrot.slane %v2159, 3
    %v2198 = vsel %vm1280, %v2197, %v2196
    %v2199 = vrot.slane %v2160, 2
    %v2200 = vsel %vm1283, %v2199, %v2198
    %v2201 = vrot.slane %v2161, 1
    %v2212 = vrot.slane %v2163, 7
    %v2213 = vsel %vm1268, %v2212, %v2162
    %v2214 = vrot.slane %v2164, 6
    %v2215 = vsel %vm1271, %v2214, %v2213
    %v2216 = vrot.slane %v2165, 5
    %v2217 = vsel %vm1274, %v2216, %v2215
    %v2218 = vrot.slane %v2166, 4
    %v2219 = vsel %vm1277, %v2218, %v2217
    %v2220 = vrot.slane %v2167, 3
    %v2221 = vsel %vm1280, %v2220, %v2219
    %v2222 = vrot.slane %v2168, 2
    %v2223 = vsel %vm1283, %v2222, %v2221
    %v2224 = vrot.slane %v2169, 1
    %2225 = vrot.lane.b32.xlu0 %v2223, 64
    %v2226 = vpop.permute.xlu0 %2225
    %2227 = vrot.lane.b32.xlu0 %v2224, 64
    %v2228 = vpop.permute.xlu0 %2227
    %v2231 = vsel %vm185, %v2175, %v2179
    %v2232 = vsel %vm185, %v1557, %v2179
    %v2233 = vsel %vm185, %v2200, %v2226
    %v2234 = vsel %vm185, %v2201, %v2228
    %v2239 = vcombine.low %v2231, %v2233
    %v2240 = vcombine.high %v2231, %v2233
    %v2242 = vunpack.c.l.s4 1966171168
    %v2243 = vunpack.c.0.s8 %v2242
    %v2244 = vlaneseq
    %v2245 = vshrl.u32 %v2244, 7
    %v2246 = vsub.s32 %v2243, %v2245
    %v2247 = vrot.slane %v2239, %v2246
    %v2249 = vunpack.c.l.s4 1966171168
    %v2250 = vunpack.c.0.s8 %v2249
    %v2251 = vlaneseq
    %v2252 = vshrl.u32 %v2251, 7
    %v2253 = vsub.s32 %v2250, %v2252
    %v2254 = vrot.slane %v2240, %v2253
    %v2255 = vcombine.high %v2247, %v2247
    %v2256 = vcombine.high %v2254, %v2254
    %v2258 = vunpack.c.l.s4 1966171168
    %v2259 = vunpack.c.0.s8 %v2258
    %v2260 = vlaneseq
    %v2261 = vshrl.u32 %v2260, 7
    %v2262 = vsub.s32 %v2259, %v2261
    %v2263 = vrot.slane %v2247, %v2262
    %v2265 = vunpack.c.l.s4 1966171168
    %v2266 = vunpack.c.0.s8 %v2265
    %v2267 = vlaneseq
    %v2268 = vshrl.u32 %v2267, 7
    %v2269 = vsub.s32 %v2266, %v2268
    %v2270 = vrot.slane %v2254, %v2269
    %v2272 = vunpack.c.l.s4 1966171168
    %v2273 = vunpack.c.0.s8 %v2272
    %v2274 = vlaneseq
    %v2275 = vshrl.u32 %v2274, 7
    %v2276 = vsub.s32 %v2273, %v2275
    %v2277 = vrot.slane %v2255, %v2276
    %v2279 = vunpack.c.l.s4 1966171168
    %v2280 = vunpack.c.0.s8 %v2279
    %v2281 = vlaneseq
    %v2282 = vshrl.u32 %v2281, 7
    %v2283 = vsub.s32 %v2280, %v2282
    %v2284 = vrot.slane %v2256, %v2283
    %v2285 = vcombine.high %v2263, %v2263
    %v2286 = vcombine.high %v2270, %v2270
    %v2287 = vcombine.high %v2277, %v2277
    %v2288 = vcombine.high %v2284, %v2284
    %v2289 = vcombine.low %v2232, %v2234
    %v2291 = vunpack.c.l.s4 1966171168
    %v2292 = vunpack.c.0.s8 %v2291
    %v2293 = vlaneseq
    %v2294 = vshrl.u32 %v2293, 7
    %v2295 = vsub.s32 %v2292, %v2294
    %v2296 = vrot.slane %v2289, %v2295
    %v2298 = vunpack.c.l.s4 1966171168
    %v2299 = vunpack.c.0.s8 %v2298
    %v2300 = vlaneseq
    %v2301 = vshrl.u32 %v2300, 7
    %v2302 = vsub.s32 %v2299, %v2301
    %v2303 = vrot.slane %v2296, %v2302
    %s2312 = scalar_lea.vmem [#allocation4], 1
    %2313 = vst.msk [vmem:[%s2312] ss:$8 sm:$0x3] %vm1676, %v2277
    %2314 = vst.msk [vmem:[%s2312] ss:$8 sm:$0x0] %vm1676, %v2277
    %s2315 = scalar_lea.vmem [#allocation4], 17
    %2316 = vst.msk [vmem:[%s2315] ss:$8 sm:$0x3] %vm1676, %v2285
    %2317 = vst.msk [vmem:[%s2315] ss:$8 sm:$0x0] %vm1676, %v2285
    %s2318 = scalar_lea.vmem [#allocation4], 33
    %2319 = vst.msk [vmem:[%s2318] ss:$8 sm:$0x3] %vm1676, %v2287
    %2320 = vst.msk [vmem:[%s2318] ss:$8 sm:$0x0] %vm1676, %v2287
    %s2321 = scalar_lea.vmem [#allocation4], 49
    %2322 = vst.msk [vmem:[%s2321] ss:$8 sm:$0x3] %vm1676, %v2270
    %2323 = vst.msk [vmem:[%s2321] ss:$8 sm:$0x0] %vm1676, %v2270
    %s2324 = scalar_lea.vmem [#allocation4], 65
    %2325 = vst.msk [vmem:[%s2324] ss:$8 sm:$0x3] %vm1676, %v2284
    %2326 = vst.msk [vmem:[%s2324] ss:$8 sm:$0x0] %vm1676, %v2284
    %s2327 = scalar_lea.vmem [#allocation4], 81
    %2328 = vst.msk [vmem:[%s2327] ss:$8 sm:$0x3] %vm1676, %v2286
    %2329 = vst.msk [vmem:[%s2327] ss:$8 sm:$0x0] %vm1676, %v2286
    %s2330 = scalar_lea.vmem [#allocation4], 97
    %2331 = vst.msk [vmem:[%s2330] ss:$8 sm:$0x3] %vm1676, %v2288
    %2332 = vst.msk [vmem:[%s2330] ss:$8 sm:$0x0] %vm1676, %v2288
    %s2333 = scalar_lea.vmem [#allocation4], 113
    %2334 = vst.msk [vmem:[%s2333] ss:$8 sm:$0x3] %vm1676, %v2303
    %2335 = vst.msk [vmem:[%s2333] ss:$8 sm:$0x0] %vm1676, %v2303
    %v2337 = vrot.slane %v2133, 5
    %v2338 = vrot.slane %v2133, 6
    %v2339 = vrot.slane %v2133, 7
    %v2340 = vrot.slane %v2133, 1
    %v2341 = vrot.slane %v2133, 2
    %v2342 = vrot.slane %v2133, 3
    %v2343 = vrot.slane %v2133, 4
    %v2352 = vsub.f32 %v1230, %v2337
    %v2353 = vsub.f32 %v1231, %v2338
    %v2354 = vsub.f32 %v1232, %v2339
    %v2355 = vsub.f32 %v1233, %v2133
    %v2356 = vsub.f32 %v1234, %v2340
    %v2357 = vsub.f32 %v1235, %v2341
    %v2358 = vsub.f32 %v1236, %v2342
    %v2359 = vsub.f32 %v1237, %v2343
    %v2360 = vmul.f32 %v1230, %v2337
    %v2361 = vmul.f32 %v1231, %v2338
    %v2362 = vmul.f32 %v1232, %v2339
    %v2363 = vmul.f32 %v1233, %v2133
    %v2364 = vmul.f32 %v1234, %v2340
    %v2365 = vmul.f32 %v1235, %v2341
    %v2366 = vmul.f32 %v1236, %v2342
    %v2367 = vmul.f32 %v1237, %v2343
    %v2368 = vsel %vm1274, %v1545, %v1230
    %v2369 = vsel %vm1277, %v1547, %v2368
    %v2370 = vsel %vm1280, %v1549, %v2369
    %v2371 = vsel %vm1283, %v1551, %v2370
    %v2372 = vsel %vm1265, %v1555, %v1553
    %v2373 = vsel %vm1268, %v1557, %v2372
    %2376 = vrot.lane.b32.xlu0 %v2337, 64
    %v2377 = vpop.permute.xlu0 %2376
    %v2387 = vrot.slane %v2353, 7
    %v2388 = vsel %vm1274, %v2387, %v2352
    %v2389 = vrot.slane %v2354, 6
    %v2390 = vsel %vm1277, %v2389, %v2388
    %v2391 = vrot.slane %v2355, 5
    %v2392 = vsel %vm1280, %v2391, %v2390
    %v2393 = vrot.slane %v2356, 4
    %v2394 = vsel %vm1283, %v2393, %v2392
    %v2395 = vrot.slane %v2357, 3
    %v2396 = vrot.slane %v2358, 2
    %v2397 = vsel %vm1265, %v2396, %v2395
    %v2398 = vrot.slane %v2359, 1
    %v2399 = vsel %vm1268, %v2398, %v2397
    %v2410 = vrot.slane %v2361, 7
    %v2411 = vsel %vm1274, %v2410, %v2360
    %v2412 = vrot.slane %v2362, 6
    %v2413 = vsel %vm1277, %v2412, %v2411
    %v2414 = vrot.slane %v2363, 5
    %v2415 = vsel %vm1280, %v2414, %v2413
    %v2416 = vrot.slane %v2364, 4
    %v2417 = vsel %vm1283, %v2416, %v2415
    %v2418 = vrot.slane %v2365, 3
    %v2419 = vrot.slane %v2366, 2
    %v2420 = vsel %vm1265, %v2419, %v2418
    %v2421 = vrot.slane %v2367, 1
    %v2422 = vsel %vm1268, %v2421, %v2420
    %2423 = vrot.lane.b32.xlu0 %v2417, 64
    %v2424 = vpop.permute.xlu0 %2423
    %2425 = vrot.lane.b32.xlu0 %v2422, 64
    %v2426 = vpop.permute.xlu0 %2425
    %v2429 = vsel %vm185, %v2371, %v2377
    %v2430 = vsel %vm185, %v2373, %v2377
    %v2431 = vsel %vm185, %v2394, %v2424
    %v2432 = vsel %vm185, %v2399, %v2426
    %v2437 = vcombine.low %v2429, %v2431
    %v2438 = vcombine.high %v2429, %v2431
    %v2440 = vunpack.c.l.s4 1966171168
    %v2441 = vunpack.c.0.s8 %v2440
    %v2442 = vlaneseq
    %v2443 = vshrl.u32 %v2442, 7
    %v2444 = vsub.s32 %v2441, %v2443
    %v2445 = vrot.slane %v2437, %v2444
    %v2447 = vunpack.c.l.s4 1966171168
    %v2448 = vunpack.c.0.s8 %v2447
    %v2449 = vlaneseq
    %v2450 = vshrl.u32 %v2449, 7
    %v2451 = vsub.s32 %v2448, %v2450
    %v2452 = vrot.slane %v2438, %v2451
    %v2453 = vcombine.high %v2445, %v2445
    %v2454 = vcombine.high %v2452, %v2452
    %v2456 = vunpack.c.l.s4 1966171168
    %v2457 = vunpack.c.0.s8 %v2456
    %v2458 = vlaneseq
    %v2459 = vshrl.u32 %v2458, 7
    %v2460 = vsub.s32 %v2457, %v2459
    %v2461 = vrot.slane %v2452, %v2460
    %v2463 = vunpack.c.l.s4 1966171168
    %v2464 = vunpack.c.0.s8 %v2463
    %v2465 = vlaneseq
    %v2466 = vshrl.u32 %v2465, 7
    %v2467 = vsub.s32 %v2464, %v2466
    %v2468 = vrot.slane %v2453, %v2467
    %v2470 = vunpack.c.l.s4 1966171168
    %v2471 = vunpack.c.0.s8 %v2470
    %v2472 = vlaneseq
    %v2473 = vshrl.u32 %v2472, 7
    %v2474 = vsub.s32 %v2471, %v2473
    %v2475 = vrot.slane %v2454, %v2474
    %v2476 = vcombine.high %v2461, %v2461
    %v2477 = vcombine.high %v2468, %v2468
    %v2478 = vcombine.high %v2475, %v2475
    %v2479 = vcombine.low %v2430, %v2432
    %v2481 = vunpack.c.l.s4 1966171168
    %v2482 = vunpack.c.0.s8 %v2481
    %v2483 = vlaneseq
    %v2484 = vshrl.u32 %v2483, 7
    %v2485 = vsub.s32 %v2482, %v2484
    %v2486 = vrot.slane %v2479, %v2485
    %v2487 = vcombine.high %v2486, %v2486
    %v2489 = vunpack.c.l.s4 1966171168
    %v2490 = vunpack.c.0.s8 %v2489
    %v2491 = vlaneseq
    %v2492 = vshrl.u32 %v2491, 7
    %v2493 = vsub.s32 %v2490, %v2492
    %v2494 = vrot.slane %v2486, %v2493
    %v2496 = vunpack.c.l.s4 1966171168
    %v2497 = vunpack.c.0.s8 %v2496
    %v2498 = vlaneseq
    %v2499 = vshrl.u32 %v2498, 7
    %v2500 = vsub.s32 %v2497, %v2499
    %v2501 = vrot.slane %v2487, %v2500
    %v2502 = vcombine.high %v2494, %v2494
    %s2511 = scalar_lea.vmem [#allocation4], 3
    %2512 = vst.msk [vmem:[%s2511] ss:$8 sm:$0x3] %vm1676, %v2477
    %2513 = vst.msk [vmem:[%s2511] ss:$8 sm:$0x0] %vm1676, %v2477
    %s2514 = scalar_lea.vmem [#allocation4], 19
    %2515 = vst.msk [vmem:[%s2514] ss:$8 sm:$0x3] %vm1676, %v2461
    %2516 = vst.msk [vmem:[%s2514] ss:$8 sm:$0x0] %vm1676, %v2461
    %s2517 = scalar_lea.vmem [#allocation4], 35
    %2518 = vst.msk [vmem:[%s2517] ss:$8 sm:$0x3] %vm1676, %v2475
    %2519 = vst.msk [vmem:[%s2517] ss:$8 sm:$0x0] %vm1676, %v2475
    %s2520 = scalar_lea.vmem [#allocation4], 51
    %2521 = vst.msk [vmem:[%s2520] ss:$8 sm:$0x3] %vm1676, %v2476
    %2522 = vst.msk [vmem:[%s2520] ss:$8 sm:$0x0] %vm1676, %v2476
    %s2523 = scalar_lea.vmem [#allocation4], 67
    %2524 = vst.msk [vmem:[%s2523] ss:$8 sm:$0x3] %vm1676, %v2478
    %2525 = vst.msk [vmem:[%s2523] ss:$8 sm:$0x0] %vm1676, %v2478
    %s2526 = scalar_lea.vmem [#allocation4], 83
    %2527 = vst.msk [vmem:[%s2526] ss:$8 sm:$0x3] %vm1676, %v2494
    %2528 = vst.msk [vmem:[%s2526] ss:$8 sm:$0x0] %vm1676, %v2494
    %s2529 = scalar_lea.vmem [#allocation4], 99
    %2530 = vst.msk [vmem:[%s2529] ss:$8 sm:$0x3] %vm1676, %v2501
    %2531 = vst.msk [vmem:[%s2529] ss:$8 sm:$0x0] %vm1676, %v2501
    %s2532 = scalar_lea.vmem [#allocation4], 115
    %2533 = vst.msk [vmem:[%s2532] ss:$8 sm:$0x3] %vm1676, %v2502
    %2534 = vst.msk [vmem:[%s2532] ss:$8 sm:$0x0] %vm1676, %v2502
    %2535 = vst [vmem:[#allocation4] sm:$0xf0] 0.0
    %2536 = vst [vmem:[#allocation4 + $0x8] sm:$0xf0] 0.0
    %2537 = vst [vmem:[#allocation4 + $0x10] sm:$0xf0] 0.0
    %2538 = vst [vmem:[#allocation4 + $0x18] sm:$0xf0] 0.0
    %2539 = vst [vmem:[#allocation4 + $0x20] sm:$0xf0] 0.0
    %2540 = vst [vmem:[#allocation4 + $0x28] sm:$0xf0] 0.0
    %2541 = vst [vmem:[#allocation4 + $0x30] sm:$0xf0] 0.0
    %2542 = vst [vmem:[#allocation4 + $0x38] sm:$0xf0] 0.0
    %2543 = vst [vmem:[#allocation4 + $0x40] sm:$0xf0] 0.0
    %2544 = vst [vmem:[#allocation4 + $0x48] sm:$0xf0] 0.0
    %2545 = vst [vmem:[#allocation4 + $0x50] sm:$0xf0] 0.0
    %2546 = vst [vmem:[#allocation4 + $0x58] sm:$0xf0] 0.0
    %2547 = vst [vmem:[#allocation4 + $0x60] sm:$0xf0] 0.0
    %2548 = vst [vmem:[#allocation4 + $0x68] sm:$0xf0] 0.0
    %2549 = vst [vmem:[#allocation4 + $0x70] sm:$0xf0] 0.0
    %2550 = vst [vmem:[#allocation4 + $0x78] sm:$0xf0] 0.0
    %v2551 = vld [vmem:[#allocation4] sm:$0xff]
    %v2552 = vld [vmem:[#allocation4 + $0x8] sm:$0xff]
    %v2553 = vld [vmem:[#allocation4 + $0x10] sm:$0xff]
    %v2554 = vld [vmem:[#allocation4 + $0x18] sm:$0xff]
    %v2555 = vld [vmem:[#allocation4 + $0x20] sm:$0xff]
    %v2556 = vld [vmem:[#allocation4 + $0x28] sm:$0xff]
    %v2557 = vld [vmem:[#allocation4 + $0x30] sm:$0xff]
    %v2558 = vld [vmem:[#allocation4 + $0x38] sm:$0xff]
    %v2559 = vld [vmem:[#allocation4 + $0x40] sm:$0xff]
    %v2560 = vld [vmem:[#allocation4 + $0x48] sm:$0xff]
    %v2561 = vld [vmem:[#allocation4 + $0x50] sm:$0xff]
    %v2562 = vld [vmem:[#allocation4 + $0x58] sm:$0xff]
    %v2563 = vld [vmem:[#allocation4 + $0x60] sm:$0xff]
    %v2564 = vld [vmem:[#allocation4 + $0x68] sm:$0xff]
    %v2565 = vld [vmem:[#allocation4 + $0x70] sm:$0xff]
    %v2566 = vld [vmem:[#allocation4 + $0x78] sm:$0xff]
    %v2567 = vpack.c.bf16 %v2553, %v2551
    %v2568 = vpack.c.bf16 %v2554, %v2552
    %v2569 = vpack.c.bf16 %v2557, %v2555
    %v2570 = vpack.c.bf16 %v2558, %v2556
    %v2571 = vpack.c.bf16 %v2561, %v2559
    %v2572 = vpack.c.bf16 %v2562, %v2560
    %v2573 = vpack.c.bf16 %v2565, %v2563
    %v2574 = vpack.c.bf16 %v2566, %v2564
    %v2575 = vld [vmem:[#allocation9] sm:$0xff]
    %v2576 = vld [vmem:[#allocation9 + $0x8] sm:$0xff]
    %v2577 = vld [vmem:[#allocation9 + $0x10] sm:$0xff]
    %v2578 = vld [vmem:[#allocation9 + $0x18] sm:$0xff]
    %v2579 = vld [vmem:[#allocation9 + $0x20] sm:$0xff]
    %v2580 = vld [vmem:[#allocation9 + $0x28] sm:$0xff]
    %v2581 = vld [vmem:[#allocation9 + $0x30] sm:$0xff]
    %v2582 = vld [vmem:[#allocation9 + $0x38] sm:$0xff]
    %v2583 = vld [vmem:[#allocation9 + $0x40] sm:$0xff]
    %v2584 = vld [vmem:[#allocation9 + $0x48] sm:$0xff]
    %v2585 = vld [vmem:[#allocation9 + $0x50] sm:$0xff]
    %v2586 = vld [vmem:[#allocation9 + $0x58] sm:$0xff]
    %v2587 = vld [vmem:[#allocation9 + $0x60] sm:$0xff]
    %v2588 = vld [vmem:[#allocation9 + $0x68] sm:$0xff]
    %v2589 = vld [vmem:[#allocation9 + $0x70] sm:$0xff]
    %v2590 = vld [vmem:[#allocation9 + $0x78] sm:$0xff]
    %v2591 = vld [vmem:[#allocation9 + $0x80] sm:$0xff]
    %v2592 = vld [vmem:[#allocation9 + $0x88] sm:$0xff]
    %v2593 = vld [vmem:[#allocation9 + $0x90] sm:$0xff]
    %v2594 = vld [vmem:[#allocation9 + $0x98] sm:$0xff]
    %v2595 = vld [vmem:[#allocation9 + $0xa0] sm:$0xff]
    %v2596 = vld [vmem:[#allocation9 + $0xa8] sm:$0xff]
    %v2597 = vld [vmem:[#allocation9 + $0xb0] sm:$0xff]
    %v2598 = vld [vmem:[#allocation9 + $0xb8] sm:$0xff]
    %v2599 = vld [vmem:[#allocation9 + $0xc0] sm:$0xff]
    %v2600 = vld [vmem:[#allocation9 + $0xc8] sm:$0xff]
    %v2601 = vld [vmem:[#allocation9 + $0xd0] sm:$0xff]
    %v2602 = vld [vmem:[#allocation9 + $0xd8] sm:$0xff]
    %v2603 = vld [vmem:[#allocation9 + $0xe0] sm:$0xff]
    %v2604 = vld [vmem:[#allocation9 + $0xe8] sm:$0xff]
    %v2605 = vld [vmem:[#allocation9 + $0xf0] sm:$0xff]
    %v2606 = vld [vmem:[#allocation9 + $0xf8] sm:$0xff]
    %v2607 = vld [vmem:[%s8] sm:$0x3]
    %v2609 = vlaneseq
    %v2610 = vshrl.u32 %v2609, 7
    %v2611 = vsub.s32 0, %v2610
    %v2612 = vrot.slane %v2607, %v2611
    %v2613 = vlaneseq
    %v2614 = vshrl.u32 %v2613, 7
    %v2615 = vsub.s32 1, %v2614
    %v2616 = vrot.slane %v2607, %v2615
    %v2651 = vunpack.c.l.b16 %v2575
    %v2652 = vunpack.c.h.b16 %v2575
    %v2653 = vunpack.c.l.b16 %v2576
    %v2654 = vunpack.c.h.b16 %v2576
    %v2655 = vunpack.c.l.b16 %v2577
    %v2656 = vunpack.c.h.b16 %v2577
    %v2657 = vunpack.c.l.b16 %v2578
    %v2658 = vunpack.c.h.b16 %v2578
    %v2659 = vunpack.c.l.b16 %v2579
    %v2660 = vunpack.c.h.b16 %v2579
    %v2661 = vunpack.c.l.b16 %v2580
    %v2662 = vunpack.c.h.b16 %v2580
    %v2663 = vunpack.c.l.b16 %v2581
    %v2664 = vunpack.c.h.b16 %v2581
    %v2665 = vunpack.c.l.b16 %v2582
    %v2666 = vunpack.c.h.b16 %v2582
    %v2667 = vunpack.c.l.b16 %v2583
    %v2668 = vunpack.c.h.b16 %v2583
    %v2669 = vunpack.c.l.b16 %v2584
    %v2670 = vunpack.c.h.b16 %v2584
    %v2671 = vunpack.c.l.b16 %v2585
    %v2672 = vunpack.c.h.b16 %v2585
    %v2673 = vunpack.c.l.b16 %v2586
    %v2674 = vunpack.c.h.b16 %v2586
    %v2675 = vunpack.c.l.b16 %v2587
    %v2676 = vunpack.c.h.b16 %v2587
    %v2677 = vunpack.c.l.b16 %v2588
    %v2678 = vunpack.c.h.b16 %v2588
    %v2679 = vunpack.c.l.b16 %v2589
    %v2680 = vunpack.c.h.b16 %v2589
    %v2681 = vunpack.c.l.b16 %v2590
    %v2682 = vunpack.c.h.b16 %v2590
    %v2683 = vunpack.c.l.b16 %v2591
    %v2684 = vunpack.c.h.b16 %v2591
    %v2685 = vunpack.c.l.b16 %v2592
    %v2686 = vunpack.c.h.b16 %v2592
    %v2687 = vunpack.c.l.b16 %v2593
    %v2688 = vunpack.c.h.b16 %v2593
    %v2689 = vunpack.c.l.b16 %v2594
    %v2690 = vunpack.c.h.b16 %v2594
    %v2691 = vunpack.c.l.b16 %v2595
    %v2692 = vunpack.c.h.b16 %v2595
    %v2693 = vunpack.c.l.b16 %v2596
    %v2694 = vunpack.c.h.b16 %v2596
    %v2695 = vunpack.c.l.b16 %v2597
    %v2696 = vunpack.c.h.b16 %v2597
    %v2697 = vunpack.c.l.b16 %v2598
    %v2698 = vunpack.c.h.b16 %v2598
    %v2699 = vunpack.c.l.b16 %v2599
    %v2700 = vunpack.c.h.b16 %v2599
    %v2701 = vunpack.c.l.b16 %v2600
    %v2702 = vunpack.c.h.b16 %v2600
    %v2703 = vunpack.c.l.b16 %v2601
    %v2704 = vunpack.c.h.b16 %v2601
    %v2705 = vunpack.c.l.b16 %v2602
    %v2706 = vunpack.c.h.b16 %v2602
    %v2707 = vunpack.c.l.b16 %v2603
    %v2708 = vunpack.c.h.b16 %v2603
    %v2709 = vunpack.c.l.b16 %v2604
    %v2710 = vunpack.c.h.b16 %v2604
    %v2711 = vunpack.c.l.b16 %v2605
    %v2712 = vunpack.c.h.b16 %v2605
    %v2713 = vunpack.c.l.b16 %v2606
    %v2714 = vunpack.c.h.b16 %v2606
    %v2715 = vpack.c.b16 %v2653, %v2651
    %v2716 = vpack.c.b16 %v2654, %v2652
    %v2717 = vpack.c.b16 %v2657, %v2655
    %v2718 = vpack.c.b16 %v2658, %v2656
    %v2719 = vpack.c.b16 %v2661, %v2659
    %v2720 = vpack.c.b16 %v2662, %v2660
    %v2721 = vpack.c.b16 %v2665, %v2663
    %v2722 = vpack.c.b16 %v2666, %v2664
    %v2723 = vpack.c.b16 %v2669, %v2667
    %v2724 = vpack.c.b16 %v2670, %v2668
    %v2725 = vpack.c.b16 %v2673, %v2671
    %v2726 = vpack.c.b16 %v2674, %v2672
    %v2727 = vpack.c.b16 %v2677, %v2675
    %v2728 = vpack.c.b16 %v2678, %v2676
    %v2729 = vpack.c.b16 %v2681, %v2679
    %v2730 = vpack.c.b16 %v2682, %v2680
    %v2731 = vpack.c.b16 %v2685, %v2683
    %v2732 = vpack.c.b16 %v2686, %v2684
    %v2733 = vpack.c.b16 %v2689, %v2687
    %v2734 = vpack.c.b16 %v2690, %v2688
    %v2735 = vpack.c.b16 %v2693, %v2691
    %v2736 = vpack.c.b16 %v2694, %v2692
    %v2737 = vpack.c.b16 %v2697, %v2695
    %v2738 = vpack.c.b16 %v2698, %v2696
    %v2739 = vpack.c.b16 %v2701, %v2699
    %v2740 = vpack.c.b16 %v2702, %v2700
    %v2741 = vpack.c.b16 %v2705, %v2703
    %v2742 = vpack.c.b16 %v2706, %v2704
    %v2743 = vpack.c.b16 %v2709, %v2707
    %v2744 = vpack.c.b16 %v2710, %v2708
    %v2745 = vpack.c.b16 %v2713, %v2711
    %v2746 = vpack.c.b16 %v2714, %v2712
    %2779 = vmatprep.subr.bf16.mxu0 %v2730
    %2780 = vmatpush1.bf16.msra.mxu0 %v2729
    %2781 = vmatprep.subr.bf16.mxu0 %v2728
    %2782 = vmatpush1.bf16.msra.mxu0 %v2727
    %2783 = vmatprep.subr.bf16.mxu0 %v2726
    %2784 = vmatpush1.bf16.msra.mxu0 %v2725
    %2785 = vmatprep.subr.bf16.mxu0 %v2724
    %2786 = vmatpush1.bf16.msra.mxu0 %v2723
    %2787 = vmatprep.subr.bf16.mxu0 %v2722
    %2788 = vmatpush1.bf16.msra.mxu0 %v2721
    %2789 = vmatprep.subr.bf16.mxu0 %v2720
    %2790 = vmatpush1.bf16.msra.mxu0 %v2719
    %2791 = vmatprep.subr.bf16.mxu0 %v2718
    %2792 = vmatpush1.bf16.msra.mxu0 %v2717
    %2793 = vmatprep.subr.bf16.mxu0 %v2716
    %2794 = vmatpush1.bf16.msra.mxu0 %v2715
    %2795 = vmatprep.subr.bf16.mxu0 %v2746
    %2796 = vmatpush2.bf16.msra.mxu0 %v2745
    %2797 = vmatprep.subr.bf16.mxu0 %v2744
    %2798 = vmatpush2.bf16.msra.mxu0 %v2743
    %2799 = vmatprep.subr.bf16.mxu0 %v2742
    %2800 = vmatpush2.bf16.msra.mxu0 %v2741
    %2801 = vmatprep.subr.bf16.mxu0 %v2740
    %2802 = vmatpush2.bf16.msra.mxu0 %v2739
    %2803 = vmatprep.subr.bf16.mxu0 %v2738
    %2804 = vmatpush2.bf16.msra.mxu0 %v2737
    %2805 = vmatprep.subr.bf16.mxu0 %v2736
    %2806 = vmatpush2.bf16.msra.mxu0 %v2735
    %2807 = vmatprep.subr.bf16.mxu0 %v2734
    %2808 = vmatpush2.bf16.msra.mxu0 %v2733
    %2809 = vmatprep.subr.bf16.mxu0 %v2732
    %2810 = vmatpush2.bf16.msra.mxu0 %v2731
    %2811 = vmatprep.mubr.bf16.mxu0 %v2568
    %2812 = vmatmul.mubr.bf16.gmra.mxu0 %v2567
    %v2813 = vpop.f32.mrf.mxu0
    %v2814 = vadd.f32 %v2612, %v2813
    %v2815 = vpop.f32.mrf.mxu0
    %v2816 = vadd.f32 %v2616, %v2815
    %v2817 = vpop.f32.mrf.mxu0
    %v2818 = vadd.f32 %v2612, %v2817
    %v2819 = vpop.f32.mrf.mxu0
    %v2820 = vadd.f32 %v2616, %v2819
    %2821 = vmatprep.mubr.bf16.mxu0 %v2570
    %2822 = vmatmul.mubr.bf16.gmra.mxu0 %v2569
    %v2823 = vpop.f32.mrf.mxu0
    %v2824 = vadd.f32 %v2612, %v2823
    %v2825 = vpop.f32.mrf.mxu0
    %v2826 = vadd.f32 %v2616, %v2825
    %v2827 = vpop.f32.mrf.mxu0
    %v2828 = vadd.f32 %v2612, %v2827
    %v2829 = vpop.f32.mrf.mxu0
    %v2830 = vadd.f32 %v2616, %v2829
    %2831 = vmatprep.mubr.bf16.mxu0 %v2572
    %2832 = vmatmul.mubr.bf16.gmra.mxu0 %v2571
    %v2833 = vpop.f32.mrf.mxu0
    %v2834 = vadd.f32 %v2612, %v2833
    %v2835 = vpop.f32.mrf.mxu0
    %v2836 = vadd.f32 %v2616, %v2835
    %v2837 = vpop.f32.mrf.mxu0
    %v2838 = vadd.f32 %v2612, %v2837
    %v2839 = vpop.f32.mrf.mxu0
    %v2840 = vadd.f32 %v2616, %v2839
    %2841 = vmatprep.mubr.bf16.mxu0 %v2574
    %2842 = vmatmul.mubr.bf16.gmra.mxu0 %v2573
    %v2843 = vpop.f32.mrf.mxu0
    %v2844 = vadd.f32 %v2612, %v2843
    %v2845 = vpop.f32.mrf.mxu0
    %v2846 = vadd.f32 %v2616, %v2845
    %v2847 = vpop.f32.mrf.mxu0
    %v2848 = vadd.f32 %v2612, %v2847
    %v2849 = vpop.f32.mrf.mxu0
    %v2850 = vadd.f32 %v2616, %v2849
    %2851 = vdwg.mxu0
    %2852 = vst [vmem:[#allocation2] sm:$0xff] %v2814
    %2853 = vst [vmem:[#allocation2 + $0x8] sm:$0xff] %v2816
    %2854 = vst [vmem:[#allocation2 + $0x10] sm:$0xff] %v2818
    %2855 = vst [vmem:[#allocation2 + $0x18] sm:$0xff] %v2820
    %2856 = vst [vmem:[#allocation2 + $0x20] sm:$0xff] %v2824
    %2857 = vst [vmem:[#allocation2 + $0x28] sm:$0xff] %v2826
    %2858 = vst [vmem:[#allocation2 + $0x30] sm:$0xff] %v2828
    %2859 = vst [vmem:[#allocation2 + $0x38] sm:$0xff] %v2830
    %2860 = vst [vmem:[#allocation2 + $0x40] sm:$0xff] %v2834
    %2861 = vst [vmem:[#allocation2 + $0x48] sm:$0xff] %v2836
    %2862 = vst [vmem:[#allocation2 + $0x50] sm:$0xff] %v2838
    %2863 = vst [vmem:[#allocation2 + $0x58] sm:$0xff] %v2840
    %2864 = vst [vmem:[#allocation2 + $0x60] sm:$0xff] %v2844
    %2865 = vst [vmem:[#allocation2 + $0x68] sm:$0xff] %v2846
    %2866 = vst [vmem:[#allocation2 + $0x70] sm:$0xff] %v2848
    %2867 = vst [vmem:[#allocation2 + $0x78] sm:$0xff] %v2850
    %v2868 = vld [vmem:[#allocation11] sm:$0xff]
    %v2869 = vld [vmem:[#allocation11 + $0x8] sm:$0xff]
    %v2870 = vld [vmem:[#allocation11 + $0x10] sm:$0xff]
    %v2871 = vld [vmem:[#allocation11 + $0x18] sm:$0xff]
    %v2872 = vld [vmem:[#allocation11 + $0x20] sm:$0xff]
    %v2873 = vld [vmem:[#allocation11 + $0x28] sm:$0xff]
    %v2874 = vld [vmem:[#allocation11 + $0x30] sm:$0xff]
    %v2875 = vld [vmem:[#allocation11 + $0x38] sm:$0xff]
    %v2884 = vunpack.c.l.b16 %v2868
    %v2885 = vunpack.c.h.b16 %v2868
    %v2886 = vunpack.c.l.b16 %v2869
    %v2887 = vunpack.c.h.b16 %v2869
    %v2888 = vunpack.c.l.b16 %v2870
    %v2889 = vunpack.c.h.b16 %v2870
    %v2890 = vunpack.c.l.b16 %v2871
    %v2891 = vunpack.c.h.b16 %v2871
    %v2892 = vunpack.c.l.b16 %v2872
    %v2893 = vunpack.c.h.b16 %v2872
    %v2894 = vunpack.c.l.b16 %v2873
    %v2895 = vunpack.c.h.b16 %v2873
    %v2896 = vunpack.c.l.b16 %v2874
    %v2897 = vunpack.c.h.b16 %v2874
    %v2898 = vunpack.c.l.b16 %v2875
    %v2899 = vunpack.c.h.b16 %v2875
    %v2900 = vpack.c.b16 %v2886, %v2884
    %v2901 = vpack.c.b16 %v2887, %v2885
    %v2902 = vpack.c.b16 %v2890, %v2888
    %v2903 = vpack.c.b16 %v2891, %v2889
    %v2904 = vpack.c.b16 %v2894, %v2892
    %v2905 = vpack.c.b16 %v2895, %v2893
    %v2906 = vpack.c.b16 %v2898, %v2896
    %v2907 = vpack.c.b16 %v2899, %v2897
    %2916 = vmatprep.subr.bf16.mxu0 0
    %2917 = vmatpush1.bf16.msra.mxu0 0
    %2918 = vmatprep.subr.bf16.mxu0 0
    %2919 = vmatpush1.bf16.msra.mxu0 0
    %2920 = vmatprep.subr.bf16.mxu0 0
    %2921 = vmatpush1.bf16.msra.mxu0 0
    %2922 = vmatprep.subr.bf16.mxu0 0
    %2923 = vmatpush1.bf16.msra.mxu0 0
    %2924 = vmatprep.subr.bf16.mxu0 %v2907
    %2925 = vmatpush1.bf16.msra.mxu0 %v2906
    %2926 = vmatprep.subr.bf16.mxu0 %v2905
    %2927 = vmatpush1.bf16.msra.mxu0 %v2904
    %2928 = vmatprep.subr.bf16.mxu0 %v2903
    %2929 = vmatpush1.bf16.msra.mxu0 %v2902
    %2930 = vmatprep.subr.bf16.mxu0 %v2901
    %2931 = vmatpush1.bf16.msra.mxu0 %v2900
    %2932 = vmatprep.subr.bf16.mxu0 0
    %2933 = vmatpush2.bf16.msra.mxu0 0
    %2934 = vmatprep.subr.bf16.mxu0 0
    %2935 = vmatpush2.bf16.msra.mxu0 0
    %2936 = vmatprep.subr.bf16.mxu0 0
    %2937 = vmatpush2.bf16.msra.mxu0 0
    %2938 = vmatprep.subr.bf16.mxu0 0
    %2939 = vmatpush2.bf16.msra.mxu0 0
    %2940 = vmatprep.subr.bf16.mxu0 0
    %2941 = vmatpush2.bf16.msra.mxu0 0
    %2942 = vmatprep.subr.bf16.mxu0 0
    %2943 = vmatpush2.bf16.msra.mxu0 0
    %2944 = vmatprep.subr.bf16.mxu0 0
    %2945 = vmatpush2.bf16.msra.mxu0 0
    %2946 = vmatprep.subr.bf16.mxu0 0
    %2947 = vmatpush2.bf16.msra.mxu0 0
    %2948 = vmatprep.mubr.bf16.mxu0 0
    %2949 = vmatmul.mubr.bf16.gmra.mxu0 %v336
    %v2950 = vpop.f32.mrf.mxu0
    %v2951 = vadd.f32 0.0, %v2950
    %v2952 = vpop.f32.mrf.mxu0
    %v2953 = vadd.f32 0.0, %v2952
    %v2954 = vpop.f32.mrf.mxu0
    %v2955 = vpop.f32.mrf.mxu0
    %2956 = vdwg.mxu0
    %v2957 = vld [vmem:[%s381] sm:$0xff]
    %v2958 = vadd.f32 %v2957, %v2951
    %v2959 = vld [vmem:[%s386 + $0x8] sm:$0xff]
    %v2960 = vadd.f32 %v2959, %v2953
    %v2961 = vxor.u32 %v2958, 2147483648
    %v2962 = vxor.u32 %v2960, 2147483648
    %v2963 = vmul.f32 %v2961, 1.442695
    %v2964 = vpow.pop %v2963
    %v2965 = vmul.f32 %v2962, 1.442695
    %v2966 = vpow.pop %v2965
    %v2967 = vadd.f32 %v2964, 1.0
    %v2968 = vadd.f32 %v2966, 1.0
    %v2969 = vrcp.pop %v2967
    %v2970 = vmul.f32 1.0, %v2969
    %v2971 = vrcp.pop %v2968
    %v2972 = vmul.f32 1.0, %v2971
    %v2973 = vtanh.pop %v2958
    %v2974 = vtanh.pop %v2960
    %v2975 = vmul.f32 %v2970, 0.0
    %2977 = vrot.lane.b32.xlu0 %v2973, 64
    %v2978 = vpop.permute.xlu0 %2977
    %v2980 = vmul.f32 %v2970, %v2978
    %2982 = vrot.lane.b32.xlu0 %v2980, 32
    %v2983 = vpop.permute.xlu0 %2982
    %v2985 = vadd.f32 %v2975, %v2983
    %v2986 = vtanh.pop %v2985
    %2988 = vrot.lane.b32.xlu0 %v2986, 64
    %v2989 = vpop.permute.xlu0 %2988
    %v2991 = vmul.f32 %v2970, %v2989
    %v2992 = vmul.f32 %v2972, 0.0
    %2994 = vrot.lane.b32.xlu0 %v2974, 64
    %v2995 = vpop.permute.xlu0 %2994
    %v2997 = vmul.f32 %v2972, %v2995
    %2999 = vrot.lane.b32.xlu0 %v2997, 32
    %v3000 = vpop.permute.xlu0 %2999
    %v3002 = vadd.f32 %v2992, %v3000
    %v3003 = vtanh.pop %v3002
    %3005 = vrot.lane.b32.xlu0 %v3003, 64
    %v3006 = vpop.permute.xlu0 %3005
    %v3008 = vmul.f32 %v2972, %v3006
    %3010 = vrot.lane.b32.xlu0 %v2991, 32
    %v3011 = vpop.permute.xlu0 %3010
    %3013 = vst.msk [vmem:[#allocation5] sm:$0xff] %vm441, %v3011
    %3015 = vrot.lane.b32.xlu0 %v3008, 64
    %v3016 = vpop.permute.xlu0 %3015
    %s3018 = scalar_lea.vmem [#allocation5], 56
    %3019 = vst.msk [vmem:[%s3018] sm:$0xff] %vm448, %v3016
    %v3020 = vsel %vm441, %v3011, %v3016
    %v3021 = vpack.c.bf16 %v3020, %v3020
    %v3023 = vsel %vm185, %v3021, 0
    %3025 = vmatprep.subr.bf16.mxu0 0
    %3026 = vmatpush1.bf16.msra.mxu0 0
    %3027 = vmatprep.subr.bf16.mxu0 0
    %3028 = vmatpush1.bf16.msra.mxu0 0
    %3029 = vmatprep.subr.bf16.mxu0 0
    %3030 = vmatpush1.bf16.msra.mxu0 0
    %3031 = vmatprep.subr.bf16.mxu0 0
    %3032 = vmatpush1.bf16.msra.mxu0 0
    %3033 = vmatprep.subr.bf16.mxu0 %v2907
    %3034 = vmatpush1.bf16.msra.mxu0 %v2906
    %3035 = vmatprep.subr.bf16.mxu0 %v2905
    %3036 = vmatpush1.bf16.msra.mxu0 %v2904
    %3037 = vmatprep.subr.bf16.mxu0 %v2903
    %3038 = vmatpush1.bf16.msra.mxu0 %v2902
    %3039 = vmatprep.subr.bf16.mxu0 %v2901
    %3040 = vmatpush1.bf16.msra.mxu0 %v2900
    %3041 = vmatprep.subr.bf16.mxu0 0
    %3042 = vmatpush2.bf16.msra.mxu0 0
    %3043 = vmatprep.subr.bf16.mxu0 0
    %3044 = vmatpush2.bf16.msra.mxu0 0
    %3045 = vmatprep.subr.bf16.mxu0 0
    %3046 = vmatpush2.bf16.msra.mxu0 0
    %3047 = vmatprep.subr.bf16.mxu0 0
    %3048 = vmatpush2.bf16.msra.mxu0 0
    %3049 = vmatprep.subr.bf16.mxu0 0
    %3050 = vmatpush2.bf16.msra.mxu0 0
    %3051 = vmatprep.subr.bf16.mxu0 0
    %3052 = vmatpush2.bf16.msra.mxu0 0
    %3053 = vmatprep.subr.bf16.mxu0 0
    %3054 = vmatpush2.bf16.msra.mxu0 0
    %3055 = vmatprep.subr.bf16.mxu0 0
    %3056 = vmatpush2.bf16.msra.mxu0 0
    %3057 = vmatprep.mubr.bf16.mxu0 0
    %3058 = vmatmul.mubr.bf16.gmra.mxu0 %v3023
    %v3059 = vpop.f32.mrf.mxu0
    %v3060 = vadd.f32 0.0, %v3059
    %v3061 = vpop.f32.mrf.mxu0
    %v3062 = vadd.f32 0.0, %v3061
    %v3063 = vpop.f32.mrf.mxu0
    %v3064 = vpop.f32.mrf.mxu0
    %3065 = vdwg.mxu0
    %v3066 = vld [vmem:[%s498] sm:$0xff]
    %v3067 = vadd.f32 %v3066, %v3060
    %v3068 = vld [vmem:[%s503 + $0x8] sm:$0xff]
    %v3069 = vadd.f32 %v3068, %v3062
    %v3070 = vxor.u32 %v3067, 2147483648
    %v3071 = vxor.u32 %v3069, 2147483648
    %v3072 = vmul.f32 %v3070, 1.442695
    %v3073 = vpow.pop %v3072
    %v3074 = vmul.f32 %v3071, 1.442695
    %v3075 = vpow.pop %v3074
    %v3076 = vadd.f32 %v3073, 1.0
    %v3077 = vadd.f32 %v3075, 1.0
    %v3078 = vrcp.pop %v3076
    %v3079 = vmul.f32 1.0, %v3078
    %v3080 = vrcp.pop %v3077
    %v3081 = vmul.f32 1.0, %v3080
    %v3082 = vtanh.pop %v3067
    %v3083 = vtanh.pop %v3069
    %v3084 = vmul.f32 %v3079, %v2985
    %3086 = vrot.lane.b32.xlu0 %v3082, 64
    %v3087 = vpop.permute.xlu0 %3086
    %v3089 = vmul.f32 %v3079, %v3087
    %3091 = vrot.lane.b32.xlu0 %v3089, 32
    %v3092 = vpop.permute.xlu0 %3091
    %v3094 = vadd.f32 %v3084, %v3092
    %v3095 = vtanh.pop %v3094
    %3097 = vrot.lane.b32.xlu0 %v3095, 64
    %v3098 = vpop.permute.xlu0 %3097
    %v3100 = vmul.f32 %v3079, %v3098
    %v3101 = vmul.f32 %v3081, %v3002
    %3103 = vrot.lane.b32.xlu0 %v3083, 64
    %v3104 = vpop.permute.xlu0 %3103
    %v3106 = vmul.f32 %v3081, %v3104
    %3108 = vrot.lane.b32.xlu0 %v3106, 32
    %v3109 = vpop.permute.xlu0 %3108
    %v3111 = vadd.f32 %v3101, %v3109
    %v3112 = vtanh.pop %v3111
    %3114 = vrot.lane.b32.xlu0 %v3112, 64
    %v3115 = vpop.permute.xlu0 %3114
    %v3117 = vmul.f32 %v3081, %v3115
    %3119 = vrot.lane.b32.xlu0 %v3100, 32
    %v3120 = vpop.permute.xlu0 %3119
    %s3122 = scalar_lea.vmem [#allocation5], 8
    %3123 = vst.msk [vmem:[%s3122] sm:$0xff] %vm441, %v3120
    %3125 = vrot.lane.b32.xlu0 %v3117, 64
    %v3126 = vpop.permute.xlu0 %3125
    %s3128 = scalar_lea.vmem [#allocation5], 48
    %3129 = vst.msk [vmem:[%s3128] sm:$0xff] %vm448, %v3126
    %v3130 = vsel %vm441, %v3120, %v3126
    %v3131 = vpack.c.bf16 %v3130, %v3130
    %v3133 = vsel %vm185, %v3131, 0
    %3135 = vmatprep.subr.bf16.mxu0 0
    %3136 = vmatpush1.bf16.msra.mxu0 0
    %3137 = vmatprep.subr.bf16.mxu0 0
    %3138 = vmatpush1.bf16.msra.mxu0 0
    %3139 = vmatprep.subr.bf16.mxu0 0
    %3140 = vmatpush1.bf16.msra.mxu0 0
    %3141 = vmatprep.subr.bf16.mxu0 0
    %3142 = vmatpush1.bf16.msra.mxu0 0
    %3143 = vmatprep.subr.bf16.mxu0 %v2907
    %3144 = vmatpush1.bf16.msra.mxu0 %v2906
    %3145 = vmatprep.subr.bf16.mxu0 %v2905
    %3146 = vmatpush1.bf16.msra.mxu0 %v2904
    %3147 = vmatprep.subr.bf16.mxu0 %v2903
    %3148 = vmatpush1.bf16.msra.mxu0 %v2902
    %3149 = vmatprep.subr.bf16.mxu0 %v2901
    %3150 = vmatpush1.bf16.msra.mxu0 %v2900
    %3151 = vmatprep.subr.bf16.mxu0 0
    %3152 = vmatpush2.bf16.msra.mxu0 0
    %3153 = vmatprep.subr.bf16.mxu0 0
    %3154 = vmatpush2.bf16.msra.mxu0 0
    %3155 = vmatprep.subr.bf16.mxu0 0
    %3156 = vmatpush2.bf16.msra.mxu0 0
    %3157 = vmatprep.subr.bf16.mxu0 0
    %3158 = vmatpush2.bf16.msra.mxu0 0
    %3159 = vmatprep.subr.bf16.mxu0 0
    %3160 = vmatpush2.bf16.msra.mxu0 0
    %3161 = vmatprep.subr.bf16.mxu0 0
    %3162 = vmatpush2.bf16.msra.mxu0 0
    %3163 = vmatprep.subr.bf16.mxu0 0
    %3164 = vmatpush2.bf16.msra.mxu0 0
    %3165 = vmatprep.subr.bf16.mxu0 0
    %3166 = vmatpush2.bf16.msra.mxu0 0
    %3167 = vmatprep.mubr.bf16.mxu0 0
    %3168 = vmatmul.mubr.bf16.gmra.mxu0 %v3133
    %v3169 = vpop.f32.mrf.mxu0
    %v3170 = vadd.f32 0.0, %v3169
    %v3171 = vpop.f32.mrf.mxu0
    %v3172 = vadd.f32 0.0, %v3171
    %v3173 = vpop.f32.mrf.mxu0
    %v3174 = vpop.f32.mrf.mxu0
    %3175 = vdwg.mxu0
    %v3176 = vld [vmem:[%s614] sm:$0xff]
    %v3177 = vadd.f32 %v3176, %v3170
    %v3178 = vld [vmem:[%s619 + $0x8] sm:$0xff]
    %v3179 = vadd.f32 %v3178, %v3172
    %v3180 = vxor.u32 %v3177, 2147483648
    %v3181 = vxor.u32 %v3179, 2147483648
    %v3182 = vmul.f32 %v3180, 1.442695
    %v3183 = vpow.pop %v3182
    %v3184 = vmul.f32 %v3181, 1.442695
    %v3185 = vpow.pop %v3184
    %v3186 = vadd.f32 %v3183, 1.0
    %v3187 = vadd.f32 %v3185, 1.0
    %v3188 = vrcp.pop %v3186
    %v3189 = vmul.f32 1.0, %v3188
    %v3190 = vrcp.pop %v3187
    %v3191 = vmul.f32 1.0, %v3190
    %v3192 = vtanh.pop %v3177
    %v3193 = vtanh.pop %v3179
    %v3194 = vmul.f32 %v3189, %v3094
    %3196 = vrot.lane.b32.xlu0 %v3192, 64
    %v3197 = vpop.permute.xlu0 %3196
    %v3199 = vmul.f32 %v3189, %v3197
    %3201 = vrot.lane.b32.xlu0 %v3199, 32
    %v3202 = vpop.permute.xlu0 %3201
    %v3204 = vadd.f32 %v3194, %v3202
    %v3205 = vtanh.pop %v3204
    %3207 = vrot.lane.b32.xlu0 %v3205, 64
    %v3208 = vpop.permute.xlu0 %3207
    %v3210 = vmul.f32 %v3189, %v3208
    %v3211 = vmul.f32 %v3191, %v3111
    %3213 = vrot.lane.b32.xlu0 %v3193, 64
    %v3214 = vpop.permute.xlu0 %3213
    %v3216 = vmul.f32 %v3191, %v3214
    %3218 = vrot.lane.b32.xlu0 %v3216, 32
    %v3219 = vpop.permute.xlu0 %3218
    %v3221 = vadd.f32 %v3211, %v3219
    %v3222 = vtanh.pop %v3221
    %3224 = vrot.lane.b32.xlu0 %v3222, 64
    %v3225 = vpop.permute.xlu0 %3224
    %v3227 = vmul.f32 %v3191, %v3225
    %3229 = vrot.lane.b32.xlu0 %v3210, 32
    %v3230 = vpop.permute.xlu0 %3229
    %s3232 = scalar_lea.vmem [#allocation5], 16
    %3233 = vst.msk [vmem:[%s3232] sm:$0xff] %vm441, %v3230
    %3235 = vrot.lane.b32.xlu0 %v3227, 64
    %v3236 = vpop.permute.xlu0 %3235
    %s3238 = scalar_lea.vmem [#allocation5], 40
    %3239 = vst.msk [vmem:[%s3238] sm:$0xff] %vm448, %v3236
    %v3240 = vsel %vm441, %v3230, %v3236
    %v3241 = vpack.c.bf16 %v3240, %v3240
    %v3243 = vsel %vm185, %v3241, 0
    %3245 = vmatprep.subr.bf16.mxu0 0
    %3246 = vmatpush1.bf16.msra.mxu0 0
    %3247 = vmatprep.subr.bf16.mxu0 0
    %3248 = vmatpush1.bf16.msra.mxu0 0
    %3249 = vmatprep.subr.bf16.mxu0 0
    %3250 = vmatpush1.bf16.msra.mxu0 0
    %3251 = vmatprep.subr.bf16.mxu0 0
    %3252 = vmatpush1.bf16.msra.mxu0 0
    %3253 = vmatprep.subr.bf16.mxu0 %v2907
    %3254 = vmatpush1.bf16.msra.mxu0 %v2906
    %3255 = vmatprep.subr.bf16.mxu0 %v2905
    %3256 = vmatpush1.bf16.msra.mxu0 %v2904
    %3257 = vmatprep.subr.bf16.mxu0 %v2903
    %3258 = vmatpush1.bf16.msra.mxu0 %v2902
    %3259 = vmatprep.subr.bf16.mxu0 %v2901
    %3260 = vmatpush1.bf16.msra.mxu0 %v2900
    %3261 = vmatprep.subr.bf16.mxu0 0
    %3262 = vmatpush2.bf16.msra.mxu0 0
    %3263 = vmatprep.subr.bf16.mxu0 0
    %3264 = vmatpush2.bf16.msra.mxu0 0
    %3265 = vmatprep.subr.bf16.mxu0 0
    %3266 = vmatpush2.bf16.msra.mxu0 0
    %3267 = vmatprep.subr.bf16.mxu0 0
    %3268 = vmatpush2.bf16.msra.mxu0 0
    %3269 = vmatprep.subr.bf16.mxu0 0
    %3270 = vmatpush2.bf16.msra.mxu0 0
    %3271 = vmatprep.subr.bf16.mxu0 0
    %3272 = vmatpush2.bf16.msra.mxu0 0
    %3273 = vmatprep.subr.bf16.mxu0 0
    %3274 = vmatpush2.bf16.msra.mxu0 0
    %3275 = vmatprep.subr.bf16.mxu0 0
    %3276 = vmatpush2.bf16.msra.mxu0 0
    %3277 = vmatprep.mubr.bf16.mxu0 0
    %3278 = vmatmul.mubr.bf16.gmra.mxu0 %v3243
    %v3279 = vpop.f32.mrf.mxu0
    %v3280 = vadd.f32 0.0, %v3279
    %v3281 = vpop.f32.mrf.mxu0
    %v3282 = vadd.f32 0.0, %v3281
    %v3283 = vpop.f32.mrf.mxu0
    %v3284 = vpop.f32.mrf.mxu0
    %3285 = vdwg.mxu0
    %v3286 = vld [vmem:[%s730] sm:$0xff]
    %v3287 = vadd.f32 %v3286, %v3280
    %v3288 = vld [vmem:[%s735 + $0x8] sm:$0xff]
    %v3289 = vadd.f32 %v3288, %v3282
    %v3290 = vxor.u32 %v3287, 2147483648
    %v3291 = vxor.u32 %v3289, 2147483648
    %v3292 = vmul.f32 %v3290, 1.442695
    %v3293 = vpow.pop %v3292
    %v3294 = vmul.f32 %v3291, 1.442695
    %v3295 = vpow.pop %v3294
    %v3296 = vadd.f32 %v3293, 1.0
    %v3297 = vadd.f32 %v3295, 1.0
    %v3298 = vrcp.pop %v3296
    %v3299 = vmul.f32 1.0, %v3298
    %v3300 = vrcp.pop %v3297
    %v3301 = vmul.f32 1.0, %v3300
    %v3302 = vtanh.pop %v3287
    %v3303 = vtanh.pop %v3289
    %v3304 = vmul.f32 %v3299, %v3204
    %3306 = vrot.lane.b32.xlu0 %v3302, 64
    %v3307 = vpop.permute.xlu0 %3306
    %v3309 = vmul.f32 %v3299, %v3307
    %3311 = vrot.lane.b32.xlu0 %v3309, 32
    %v3312 = vpop.permute.xlu0 %3311
    %v3314 = vadd.f32 %v3304, %v3312
    %v3315 = vtanh.pop %v3314
    %3317 = vrot.lane.b32.xlu0 %v3315, 64
    %v3318 = vpop.permute.xlu0 %3317
    %v3320 = vmul.f32 %v3299, %v3318
    %v3321 = vmul.f32 %v3301, %v3221
    %3323 = vrot.lane.b32.xlu0 %v3303, 64
    %v3324 = vpop.permute.xlu0 %3323
    %v3326 = vmul.f32 %v3301, %v3324
    %3328 = vrot.lane.b32.xlu0 %v3326, 32
    %v3329 = vpop.permute.xlu0 %3328
    %v3331 = vadd.f32 %v3321, %v3329
    %v3332 = vtanh.pop %v3331
    %3334 = vrot.lane.b32.xlu0 %v3332, 64
    %v3335 = vpop.permute.xlu0 %3334
    %v3337 = vmul.f32 %v3301, %v3335
    %3339 = vrot.lane.b32.xlu0 %v3320, 32
    %v3340 = vpop.permute.xlu0 %3339
    %s3342 = scalar_lea.vmem [#allocation5], 24
    %3343 = vst.msk [vmem:[%s3342] sm:$0xff] %vm441, %v3340
    %3345 = vrot.lane.b32.xlu0 %v3337, 64
    %v3346 = vpop.permute.xlu0 %3345
    %s3348 = scalar_lea.vmem [#allocation5], 32
    %3349 = vst.msk [vmem:[%s3348] sm:$0xff] %vm448, %v3346
    %v3350 = vsel %vm441, %v3340, %v3346
    %v3351 = vpack.c.bf16 %v3350, %v3350
    %v3353 = vsel %vm185, %v3351, 0
    %3355 = vmatprep.subr.bf16.mxu0 0
    %3356 = vmatpush1.bf16.msra.mxu0 0
    %3357 = vmatprep.subr.bf16.mxu0 0
    %3358 = vmatpush1.bf16.msra.mxu0 0
    %3359 = vmatprep.subr.bf16.mxu0 0
    %3360 = vmatpush1.bf16.msra.mxu0 0
    %3361 = vmatprep.subr.bf16.mxu0 0
    %3362 = vmatpush1.bf16.msra.mxu0 0
    %3363 = vmatprep.subr.bf16.mxu0 %v2907
    %3364 = vmatpush1.bf16.msra.mxu0 %v2906
    %3365 = vmatprep.subr.bf16.mxu0 %v2905
    %3366 = vmatpush1.bf16.msra.mxu0 %v2904
    %3367 = vmatprep.subr.bf16.mxu0 %v2903
    %3368 = vmatpush1.bf16.msra.mxu0 %v2902
    %3369 = vmatprep.subr.bf16.mxu0 %v2901
    %3370 = vmatpush1.bf16.msra.mxu0 %v2900
    %3371 = vmatprep.subr.bf16.mxu0 0
    %3372 = vmatpush2.bf16.msra.mxu0 0
    %3373 = vmatprep.subr.bf16.mxu0 0
    %3374 = vmatpush2.bf16.msra.mxu0 0
    %3375 = vmatprep.subr.bf16.mxu0 0
    %3376 = vmatpush2.bf16.msra.mxu0 0
    %3377 = vmatprep.subr.bf16.mxu0 0
    %3378 = vmatpush2.bf16.msra.mxu0 0
    %3379 = vmatprep.subr.bf16.mxu0 0
    %3380 = vmatpush2.bf16.msra.mxu0 0
    %3381 = vmatprep.subr.bf16.mxu0 0
    %3382 = vmatpush2.bf16.msra.mxu0 0
    %3383 = vmatprep.subr.bf16.mxu0 0
    %3384 = vmatpush2.bf16.msra.mxu0 0
    %3385 = vmatprep.subr.bf16.mxu0 0
    %3386 = vmatpush2.bf16.msra.mxu0 0
    %3387 = vmatprep.mubr.bf16.mxu0 0
    %3388 = vmatmul.mubr.bf16.gmra.mxu0 %v3353
    %v3389 = vpop.f32.mrf.mxu0
    %v3390 = vadd.f32 0.0, %v3389
    %v3391 = vpop.f32.mrf.mxu0
    %v3392 = vadd.f32 0.0, %v3391
    %v3393 = vpop.f32.mrf.mxu0
    %v3394 = vpop.f32.mrf.mxu0
    %3395 = vdwg.mxu0
    %v3396 = vld [vmem:[%s735] sm:$0xff]
    %v3397 = vadd.f32 %v3396, %v3390
    %v3398 = vld [vmem:[%s730 + $0x8] sm:$0xff]
    %v3399 = vadd.f32 %v3398, %v3392
    %v3400 = vxor.u32 %v3397, 2147483648
    %v3401 = vxor.u32 %v3399, 2147483648
    %v3402 = vmul.f32 %v3400, 1.442695
    %v3403 = vpow.pop %v3402
    %v3404 = vmul.f32 %v3401, 1.442695
    %v3405 = vpow.pop %v3404
    %v3406 = vadd.f32 %v3403, 1.0
    %v3407 = vadd.f32 %v3405, 1.0
    %v3408 = vrcp.pop %v3406
    %v3409 = vmul.f32 1.0, %v3408
    %v3410 = vrcp.pop %v3407
    %v3411 = vmul.f32 1.0, %v3410
    %v3412 = vtanh.pop %v3397
    %v3413 = vtanh.pop %v3399
    %v3414 = vmul.f32 %v3409, %v3314
    %3416 = vrot.lane.b32.xlu0 %v3412, 64
    %v3417 = vpop.permute.xlu0 %3416
    %v3419 = vmul.f32 %v3409, %v3417
    %3421 = vrot.lane.b32.xlu0 %v3419, 32
    %v3422 = vpop.permute.xlu0 %3421
    %v3424 = vadd.f32 %v3414, %v3422
    %v3425 = vtanh.pop %v3424
    %3427 = vrot.lane.b32.xlu0 %v3425, 64
    %v3428 = vpop.permute.xlu0 %3427
    %v3430 = vmul.f32 %v3409, %v3428
    %v3431 = vmul.f32 %v3411, %v3331
    %3433 = vrot.lane.b32.xlu0 %v3413, 64
    %v3434 = vpop.permute.xlu0 %3433
    %v3436 = vmul.f32 %v3411, %v3434
    %3438 = vrot.lane.b32.xlu0 %v3436, 32
    %v3439 = vpop.permute.xlu0 %3438
    %v3441 = vadd.f32 %v3431, %v3439
    %v3442 = vtanh.pop %v3441
    %3444 = vrot.lane.b32.xlu0 %v3442, 64
    %v3445 = vpop.permute.xlu0 %3444
    %v3447 = vmul.f32 %v3411, %v3445
    %3449 = vrot.lane.b32.xlu0 %v3430, 32
    %v3450 = vpop.permute.xlu0 %3449
    %3452 = vst.msk [vmem:[%s3348] sm:$0xff] %vm441, %v3450
    %3454 = vrot.lane.b32.xlu0 %v3447, 64
    %v3455 = vpop.permute.xlu0 %3454
    %3457 = vst.msk [vmem:[%s3342] sm:$0xff] %vm448, %v3455
    %v3458 = vsel %vm441, %v3450, %v3455
    %v3459 = vpack.c.bf16 %v3458, %v3458
    %v3461 = vsel %vm185, %v3459, 0
    %3463 = vmatprep.subr.bf16.mxu0 0
    %3464 = vmatpush1.bf16.msra.mxu0 0
    %3465 = vmatprep.subr.bf16.mxu0 0
    %3466 = vmatpush1.bf16.msra.mxu0 0
    %3467 = vmatprep.subr.bf16.mxu0 0
    %3468 = vmatpush1.bf16.msra.mxu0 0
    %3469 = vmatprep.subr.bf16.mxu0 0
    %3470 = vmatpush1.bf16.msra.mxu0 0
    %3471 = vmatprep.subr.bf16.mxu0 %v2907
    %3472 = vmatpush1.bf16.msra.mxu0 %v2906
    %3473 = vmatprep.subr.bf16.mxu0 %v2905
    %3474 = vmatpush1.bf16.msra.mxu0 %v2904
    %3475 = vmatprep.subr.bf16.mxu0 %v2903
    %3476 = vmatpush1.bf16.msra.mxu0 %v2902
    %3477 = vmatprep.subr.bf16.mxu0 %v2901
    %3478 = vmatpush1.bf16.msra.mxu0 %v2900
    %3479 = vmatprep.subr.bf16.mxu0 0
    %3480 = vmatpush2.bf16.msra.mxu0 0
    %3481 = vmatprep.subr.bf16.mxu0 0
    %3482 = vmatpush2.bf16.msra.mxu0 0
    %3483 = vmatprep.subr.bf16.mxu0 0
    %3484 = vmatpush2.bf16.msra.mxu0 0
    %3485 = vmatprep.subr.bf16.mxu0 0
    %3486 = vmatpush2.bf16.msra.mxu0 0
    %3487 = vmatprep.subr.bf16.mxu0 0
    %3488 = vmatpush2.bf16.msra.mxu0 0
    %3489 = vmatprep.subr.bf16.mxu0 0
    %3490 = vmatpush2.bf16.msra.mxu0 0
    %3491 = vmatprep.subr.bf16.mxu0 0
    %3492 = vmatpush2.bf16.msra.mxu0 0
    %3493 = vmatprep.subr.bf16.mxu0 0
    %3494 = vmatpush2.bf16.msra.mxu0 0
    %3495 = vmatprep.mubr.bf16.mxu0 0
    %3496 = vmatmul.mubr.bf16.gmra.mxu0 %v3461
    %v3497 = vpop.f32.mrf.mxu0
    %v3498 = vadd.f32 0.0, %v3497
    %v3499 = vpop.f32.mrf.mxu0
    %v3500 = vadd.f32 0.0, %v3499
    %v3501 = vpop.f32.mrf.mxu0
    %v3502 = vpop.f32.mrf.mxu0
    %3503 = vdwg.mxu0
    %v3504 = vld [vmem:[%s619] sm:$0xff]
    %v3505 = vadd.f32 %v3504, %v3498
    %v3506 = vld [vmem:[%s614 + $0x8] sm:$0xff]
    %v3507 = vadd.f32 %v3506, %v3500
    %v3508 = vxor.u32 %v3505, 2147483648
    %v3509 = vxor.u32 %v3507, 2147483648
    %v3510 = vmul.f32 %v3508, 1.442695
    %v3511 = vpow.pop %v3510
    %v3512 = vmul.f32 %v3509, 1.442695
    %v3513 = vpow.pop %v3512
    %v3514 = vadd.f32 %v3511, 1.0
    %v3515 = vadd.f32 %v3513, 1.0
    %v3516 = vrcp.pop %v3514
    %v3517 = vmul.f32 1.0, %v3516
    %v3518 = vrcp.pop %v3515
    %v3519 = vmul.f32 1.0, %v3518
    %v3520 = vtanh.pop %v3505
    %v3521 = vtanh.pop %v3507
    %v3522 = vmul.f32 %v3517, %v3424
    %3524 = vrot.lane.b32.xlu0 %v3520, 64
    %v3525 = vpop.permute.xlu0 %3524
    %v3527 = vmul.f32 %v3517, %v3525
    %3529 = vrot.lane.b32.xlu0 %v3527, 32
    %v3530 = vpop.permute.xlu0 %3529
    %v3532 = vadd.f32 %v3522, %v3530
    %v3533 = vtanh.pop %v3532
    %3535 = vrot.lane.b32.xlu0 %v3533, 64
    %v3536 = vpop.permute.xlu0 %3535
    %v3538 = vmul.f32 %v3517, %v3536
    %v3539 = vmul.f32 %v3519, %v3441
    %3541 = vrot.lane.b32.xlu0 %v3521, 64
    %v3542 = vpop.permute.xlu0 %3541
    %v3544 = vmul.f32 %v3519, %v3542
    %3546 = vrot.lane.b32.xlu0 %v3544, 32
    %v3547 = vpop.permute.xlu0 %3546
    %v3549 = vadd.f32 %v3539, %v3547
    %v3550 = vtanh.pop %v3549
    %3552 = vrot.lane.b32.xlu0 %v3550, 64
    %v3553 = vpop.permute.xlu0 %3552
    %v3555 = vmul.f32 %v3519, %v3553
    %3557 = vrot.lane.b32.xlu0 %v3538, 32
    %v3558 = vpop.permute.xlu0 %3557
    %3560 = vst.msk [vmem:[%s3238] sm:$0xff] %vm441, %v3558
    %3562 = vrot.lane.b32.xlu0 %v3555, 64
    %v3563 = vpop.permute.xlu0 %3562
    %3565 = vst.msk [vmem:[%s3232] sm:$0xff] %vm448, %v3563
    %v3566 = vsel %vm441, %v3558, %v3563
    %v3567 = vpack.c.bf16 %v3566, %v3566
    %v3569 = vsel %vm185, %v3567, 0
    %3571 = vmatprep.subr.bf16.mxu0 0
    %3572 = vmatpush1.bf16.msra.mxu0 0
    %3573 = vmatprep.subr.bf16.mxu0 0
    %3574 = vmatpush1.bf16.msra.mxu0 0
    %3575 = vmatprep.subr.bf16.mxu0 0
    %3576 = vmatpush1.bf16.msra.mxu0 0
    %3577 = vmatprep.subr.bf16.mxu0 0
    %3578 = vmatpush1.bf16.msra.mxu0 0
    %3579 = vmatprep.subr.bf16.mxu0 %v2907
    %3580 = vmatpush1.bf16.msra.mxu0 %v2906
    %3581 = vmatprep.subr.bf16.mxu0 %v2905
    %3582 = vmatpush1.bf16.msra.mxu0 %v2904
    %3583 = vmatprep.subr.bf16.mxu0 %v2903
    %3584 = vmatpush1.bf16.msra.mxu0 %v2902
    %3585 = vmatprep.subr.bf16.mxu0 %v2901
    %3586 = vmatpush1.bf16.msra.mxu0 %v2900
    %3587 = vmatprep.subr.bf16.mxu0 0
    %3588 = vmatpush2.bf16.msra.mxu0 0
    %3589 = vmatprep.subr.bf16.mxu0 0
    %3590 = vmatpush2.bf16.msra.mxu0 0
    %3591 = vmatprep.subr.bf16.mxu0 0
    %3592 = vmatpush2.bf16.msra.mxu0 0
    %3593 = vmatprep.subr.bf16.mxu0 0
    %3594 = vmatpush2.bf16.msra.mxu0 0
    %3595 = vmatprep.subr.bf16.mxu0 0
    %3596 = vmatpush2.bf16.msra.mxu0 0
    %3597 = vmatprep.subr.bf16.mxu0 0
    %3598 = vmatpush2.bf16.msra.mxu0 0
    %3599 = vmatprep.subr.bf16.mxu0 0
    %3600 = vmatpush2.bf16.msra.mxu0 0
    %3601 = vmatprep.subr.bf16.mxu0 0
    %3602 = vmatpush2.bf16.msra.mxu0 0
    %3603 = vmatprep.mubr.bf16.mxu0 0
    %3604 = vmatmul.mubr.bf16.gmra.mxu0 %v3569
    %v3605 = vpop.f32.mrf.mxu0
    %v3606 = vadd.f32 0.0, %v3605
    %v3607 = vpop.f32.mrf.mxu0
    %v3608 = vadd.f32 0.0, %v3607
    %v3609 = vpop.f32.mrf.mxu0
    %v3610 = vpop.f32.mrf.mxu0
    %3611 = vdwg.mxu0
    %v3612 = vld [vmem:[%s503] sm:$0xff]
    %v3613 = vadd.f32 %v3612, %v3606
    %v3614 = vld [vmem:[%s498 + $0x8] sm:$0xff]
    %v3615 = vadd.f32 %v3614, %v3608
    %v3616 = vxor.u32 %v3613, 2147483648
    %v3617 = vxor.u32 %v3615, 2147483648
    %v3618 = vmul.f32 %v3616, 1.442695
    %v3619 = vpow.pop %v3618
    %v3620 = vmul.f32 %v3617, 1.442695
    %v3621 = vpow.pop %v3620
    %v3622 = vadd.f32 %v3619, 1.0
    %v3623 = vadd.f32 %v3621, 1.0
    %v3624 = vrcp.pop %v3622
    %v3625 = vmul.f32 1.0, %v3624
    %v3626 = vrcp.pop %v3623
    %v3627 = vmul.f32 1.0, %v3626
    %v3628 = vtanh.pop %v3613
    %v3629 = vtanh.pop %v3615
    %v3630 = vmul.f32 %v3625, %v3532
    %3632 = vrot.lane.b32.xlu0 %v3628, 64
    %v3633 = vpop.permute.xlu0 %3632
    %v3635 = vmul.f32 %v3625, %v3633
    %3637 = vrot.lane.b32.xlu0 %v3635, 32
    %v3638 = vpop.permute.xlu0 %3637
    %v3640 = vadd.f32 %v3630, %v3638
    %v3641 = vtanh.pop %v3640
    %3643 = vrot.lane.b32.xlu0 %v3641, 64
    %v3644 = vpop.permute.xlu0 %3643
    %v3646 = vmul.f32 %v3625, %v3644
    %v3647 = vmul.f32 %v3627, %v3549
    %3649 = vrot.lane.b32.xlu0 %v3629, 64
    %v3650 = vpop.permute.xlu0 %3649
    %v3652 = vmul.f32 %v3627, %v3650
    %3654 = vrot.lane.b32.xlu0 %v3652, 32
    %v3655 = vpop.permute.xlu0 %3654
    %v3657 = vadd.f32 %v3647, %v3655
    %v3658 = vtanh.pop %v3657
    %3660 = vrot.lane.b32.xlu0 %v3658, 64
    %v3661 = vpop.permute.xlu0 %3660
    %v3663 = vmul.f32 %v3627, %v3661
    %3665 = vrot.lane.b32.xlu0 %v3646, 32
    %v3666 = vpop.permute.xlu0 %3665
    %3668 = vst.msk [vmem:[%s3128] sm:$0xff] %vm441, %v3666
    %3670 = vrot.lane.b32.xlu0 %v3663, 64
    %v3671 = vpop.permute.xlu0 %3670
    %3673 = vst.msk [vmem:[%s3122] sm:$0xff] %vm448, %v3671
    %v3674 = vsel %vm441, %v3666, %v3671
    %v3675 = vpack.c.bf16 %v3674, %v3674
    %v3677 = vsel %vm185, %v3675, 0
    %3679 = vmatprep.subr.bf16.mxu0 0
    %3680 = vmatpush1.bf16.msra.mxu0 0
    %3681 = vmatprep.subr.bf16.mxu0 0
    %3682 = vmatpush1.bf16.msra.mxu0 0
    %3683 = vmatprep.subr.bf16.mxu0 0
    %3684 = vmatpush1.bf16.msra.mxu0 0
    %3685 = vmatprep.subr.bf16.mxu0 0
    %3686 = vmatpush1.bf16.msra.mxu0 0
    %3687 = vmatprep.subr.bf16.mxu0 %v2907
    %3688 = vmatpush1.bf16.msra.mxu0 %v2906
    %3689 = vmatprep.subr.bf16.mxu0 %v2905
    %3690 = vmatpush1.bf16.msra.mxu0 %v2904
    %3691 = vmatprep.subr.bf16.mxu0 %v2903
    %3692 = vmatpush1.bf16.msra.mxu0 %v2902
    %3693 = vmatprep.subr.bf16.mxu0 %v2901
    %3694 = vmatpush1.bf16.msra.mxu0 %v2900
    %3695 = vmatprep.subr.bf16.mxu0 0
    %3696 = vmatpush2.bf16.msra.mxu0 0
    %3697 = vmatprep.subr.bf16.mxu0 0
    %3698 = vmatpush2.bf16.msra.mxu0 0
    %3699 = vmatprep.subr.bf16.mxu0 0
    %3700 = vmatpush2.bf16.msra.mxu0 0
    %3701 = vmatprep.subr.bf16.mxu0 0
    %3702 = vmatpush2.bf16.msra.mxu0 0
    %3703 = vmatprep.subr.bf16.mxu0 0
    %3704 = vmatpush2.bf16.msra.mxu0 0
    %3705 = vmatprep.subr.bf16.mxu0 0
    %3706 = vmatpush2.bf16.msra.mxu0 0
    %3707 = vmatprep.subr.bf16.mxu0 0
    %3708 = vmatpush2.bf16.msra.mxu0 0
    %3709 = vmatprep.subr.bf16.mxu0 0
    %3710 = vmatpush2.bf16.msra.mxu0 0
    %3711 = vmatprep.mubr.bf16.mxu0 0
    %3712 = vmatmul.mubr.bf16.gmra.mxu0 %v3677
    %v3713 = vpop.f32.mrf.mxu0
    %v3714 = vadd.f32 0.0, %v3713
    %v3715 = vpop.f32.mrf.mxu0
    %v3716 = vadd.f32 0.0, %v3715
    %v3717 = vpop.f32.mrf.mxu0
    %v3718 = vpop.f32.mrf.mxu0
    %3719 = vdwg.mxu0
    %v3720 = vld [vmem:[%s386] sm:$0xff]
    %v3721 = vadd.f32 %v3720, %v3714
    %v3722 = vld [vmem:[%s381 + $0x8] sm:$0xff]
    %v3723 = vadd.f32 %v3722, %v3716
    %v3724 = vxor.u32 %v3721, 2147483648
    %v3725 = vxor.u32 %v3723, 2147483648
    %v3726 = vmul.f32 %v3724, 1.442695
    %v3727 = vpow.pop %v3726
    %v3728 = vmul.f32 %v3725, 1.442695
    %v3729 = vpow.pop %v3728
    %v3730 = vadd.f32 %v3727, 1.0
    %v3731 = vadd.f32 %v3729, 1.0
    %v3732 = vrcp.pop %v3730
    %v3733 = vmul.f32 1.0, %v3732
    %v3734 = vrcp.pop %v3731
    %v3735 = vmul.f32 1.0, %v3734
    %v3736 = vtanh.pop %v3721
    %v3737 = vtanh.pop %v3723
    %v3738 = vmul.f32 %v3733, %v3640
    %3740 = vrot.lane.b32.xlu0 %v3736, 64
    %v3741 = vpop.permute.xlu0 %3740
    %v3743 = vmul.f32 %v3733, %v3741
    %3745 = vrot.lane.b32.xlu0 %v3743, 32
    %v3746 = vpop.permute.xlu0 %3745
    %v3748 = vadd.f32 %v3738, %v3746
    %v3749 = vtanh.pop %v3748
    %3751 = vrot.lane.b32.xlu0 %v3749, 64
    %v3752 = vpop.permute.xlu0 %3751
    %v3754 = vmul.f32 %v3733, %v3752
    %v3755 = vmul.f32 %v3735, %v3657
    %3757 = vrot.lane.b32.xlu0 %v3737, 64
    %v3758 = vpop.permute.xlu0 %3757
    %v3760 = vmul.f32 %v3735, %v3758
    %3762 = vrot.lane.b32.xlu0 %v3760, 32
    %v3763 = vpop.permute.xlu0 %3762
    %v3765 = vadd.f32 %v3755, %v3763
    %v3766 = vtanh.pop %v3765
    %3768 = vrot.lane.b32.xlu0 %v3766, 64
    %v3769 = vpop.permute.xlu0 %3768
    %v3771 = vmul.f32 %v3735, %v3769
    %3773 = vrot.lane.b32.xlu0 %v3754, 32
    %v3774 = vpop.permute.xlu0 %3773
    %3776 = vst.msk [vmem:[%s3018] sm:$0xff] %vm441, %v3774
    %3778 = vrot.lane.b32.xlu0 %v3771, 64
    %v3779 = vpop.permute.xlu0 %3778
    %3781 = vst.msk [vmem:[#allocation5] sm:$0xff] %vm448, %v3779
    %v3782 = vld [vmem:[#allocation5] sm:$0xff]
    %v3783 = vld [vmem:[#allocation5 + $0x8] sm:$0xff]
    %v3784 = vld [vmem:[#allocation5 + $0x10] sm:$0xff]
    %v3785 = vld [vmem:[#allocation5 + $0x18] sm:$0xff]
    %v3786 = vld [vmem:[#allocation5 + $0x20] sm:$0xff]
    %v3787 = vld [vmem:[#allocation5 + $0x28] sm:$0xff]
    %v3788 = vld [vmem:[#allocation5 + $0x30] sm:$0xff]
    %v3789 = vld [vmem:[#allocation5 + $0x38] sm:$0xff]
    %v3790 = vsel %vm185, %v3782, 0.0
    %v3791 = vsel %vm185, %v3783, 0.0
    %v3792 = vadd.f32 %v3790, %v3791
    %v3793 = vsel %vm185, %v3784, 0.0
    %v3794 = vadd.f32 %v3792, %v3793
    %v3795 = vsel %vm185, %v3785, 0.0
    %v3796 = vadd.f32 %v3794, %v3795
    %v3797 = vsel %vm185, %v3786, 0.0
    %v3798 = vadd.f32 %v3796, %v3797
    %v3799 = vsel %vm185, %v3787, 0.0
    %v3800 = vadd.f32 %v3798, %v3799
    %v3801 = vsel %vm185, %v3788, 0.0
    %v3802 = vadd.f32 %v3800, %v3801
    %v3803 = vsel %vm185, %v3789, 0.0
    %v3804 = vadd.f32 %v3802, %v3803
    %v3805 = vrcp.pop 8.0
    %v3806 = vmul.f32 %v3804, %v3805
    %v3807 = vsel %vm185, %v3782, -inf
    %v3808 = vsel %vm185, %v3783, -inf
    %v3809 = vsel %vm185, %v3784, -inf
    %v3810 = vsel %vm185, %v3785, -inf
    %v3811 = vsel %vm185, %v3786, -inf
    %v3812 = vmax.f32 %v3807, %v3811
    %v3813 = vsel %vm185, %v3787, -inf
    %v3814 = vmax.f32 %v3808, %v3813
    %v3815 = vsel %vm185, %v3788, -inf
    %v3816 = vmax.f32 %v3809, %v3815
    %v3817 = vsel %vm185, %v3789, -inf
    %v3818 = vmax.f32 %v3810, %v3817
    %v3819 = vmax.f32 %v3812, %v3814
    %v3820 = vmax.f32 %v3816, %v3818
    %v3821 = vmax.f32 %v3819, %v3820
    %3823 = vrot.lane.b32.xlu0 %v3821, 64
    %v3824 = vpop.permute.xlu0 %3823
    %v3826 = vsel %vm185, %v3806, %v3824
    %v3828 = vrot.slane %v3826, 2
    %v3830 = vld [vmem:[%s9] sm:$0x3]
    %v3832 = vlaneseq
    %v3833 = vshrl.u32 %v3832, 7
    %v3834 = vsub.s32 0, %v3833
    %v3835 = vrot.slane %v3830, %v3834
    %v3836 = vlaneseq
    %v3837 = vshrl.u32 %v3836, 7
    %v3838 = vsub.s32 1, %v3837
    %v3839 = vrot.slane %v3830, %v3838
    %v3842 = vmul.f32 %v3826, %v3835
    %v3843 = vmul.f32 %v3828, %v3839
    %v3844 = vld [vmem:[%s10] sm:$0x3]
    %v3846 = vlaneseq
    %v3847 = vshrl.u32 %v3846, 7
    %v3848 = vsub.s32 0, %v3847
    %v3849 = vrot.slane %v3844, %v3848
    %v3850 = vlaneseq
    %v3851 = vshrl.u32 %v3850, 7
    %v3852 = vsub.s32 1, %v3851
    %v3853 = vrot.slane %v3844, %v3852
    %v3856 = vadd.f32 %v3842, %v3849
    %v3857 = vadd.f32 %v3843, %v3853
    %v3858 = vpack.c.bf16 %v3856, %v3856
    %v3859 = vpack.c.bf16 %v3857, %v3857
    %v3860 = vld [vmem:[%s11] sm:$0xf]
    %v3861 = vld [vmem:[%s11 + $0x4] sm:$0xf]
    %v3862 = vld [vmem:[%s11 + $0x8] sm:$0xf]
    %v3863 = vld [vmem:[%s11 + $0xc] sm:$0xf]
    %v3864 = vld [vmem:[%s11 + $0x10] sm:$0xf]
    %v3865 = vld [vmem:[%s11 + $0x14] sm:$0xf]
    %v3866 = vld [vmem:[%s11 + $0x18] sm:$0xf]
    %v3867 = vld [vmem:[%s11 + $0x1c] sm:$0xf]
    %v3868 = vld [vmem:[%s11 + $0x20] sm:$0xf]
    %v3869 = vld [vmem:[%s11 + $0x24] sm:$0xf]
    %v3870 = vld [vmem:[%s11 + $0x28] sm:$0xf]
    %v3871 = vld [vmem:[%s11 + $0x2c] sm:$0xf]
    %v3872 = vld [vmem:[%s11 + $0x30] sm:$0xf]
    %v3873 = vld [vmem:[%s11 + $0x34] sm:$0xf]
    %v3874 = vld [vmem:[%s11 + $0x38] sm:$0xf]
    %v3875 = vld [vmem:[%s11 + $0x3c] sm:$0xf]
    %v3876 = vld [vmem:[%s11 + $0x40] sm:$0xf]
    %v3877 = vld [vmem:[%s11 + $0x44] sm:$0xf]
    %v3878 = vld [vmem:[%s11 + $0x48] sm:$0xf]
    %v3879 = vld [vmem:[%s11 + $0x4c] sm:$0xf]
    %v3880 = vld [vmem:[%s11 + $0x50] sm:$0xf]
    %v3881 = vld [vmem:[%s11 + $0x54] sm:$0xf]
    %v3882 = vld [vmem:[%s11 + $0x58] sm:$0xf]
    %v3883 = vld [vmem:[%s11 + $0x5c] sm:$0xf]
    %v3884 = vld [vmem:[%s11 + $0x60] sm:$0xf]
    %v3885 = vld [vmem:[%s11 + $0x64] sm:$0xf]
    %v3886 = vld [vmem:[%s11 + $0x68] sm:$0xf]
    %v3887 = vld [vmem:[%s11 + $0x6c] sm:$0xf]
    %v3888 = vld [vmem:[%s11 + $0x70] sm:$0xf]
    %v3889 = vld [vmem:[%s11 + $0x74] sm:$0xf]
    %v3890 = vld [vmem:[%s11 + $0x78] sm:$0xf]
    %v3891 = vld [vmem:[%s11 + $0x7c] sm:$0xf]
    %v3892 = vld [vmem:[%s12] sm:$0x1]
    %v3894 = vlaneseq
    %v3895 = vshrl.u32 %v3894, 7
    %v3896 = vsub.s32 0, %v3895
    %v3897 = vrot.slane %v3892, %v3896
    %v3931 = vunpack.c.l.b16 %v3860
    %v3932 = vunpack.c.l.b16 %v3861
    %v3933 = vunpack.c.l.b16 %v3862
    %v3934 = vunpack.c.l.b16 %v3863
    %v3935 = vunpack.c.l.b16 %v3864
    %v3936 = vunpack.c.l.b16 %v3865
    %v3937 = vunpack.c.l.b16 %v3866
    %v3938 = vunpack.c.l.b16 %v3867
    %v3939 = vunpack.c.l.b16 %v3868
    %v3940 = vunpack.c.l.b16 %v3869
    %v3941 = vunpack.c.l.b16 %v3870
    %v3942 = vunpack.c.l.b16 %v3871
    %v3943 = vunpack.c.l.b16 %v3872
    %v3944 = vunpack.c.l.b16 %v3873
    %v3945 = vunpack.c.l.b16 %v3874
    %v3946 = vunpack.c.l.b16 %v3875
    %v3947 = vunpack.c.l.b16 %v3876
    %v3948 = vunpack.c.l.b16 %v3877
    %v3949 = vunpack.c.l.b16 %v3878
    %v3950 = vunpack.c.l.b16 %v3879
    %v3951 = vunpack.c.l.b16 %v3880
    %v3952 = vunpack.c.l.b16 %v3881
    %v3953 = vunpack.c.l.b16 %v3882
    %v3954 = vunpack.c.l.b16 %v3883
    %v3955 = vunpack.c.l.b16 %v3884
    %v3956 = vunpack.c.l.b16 %v3885
    %v3957 = vunpack.c.l.b16 %v3886
    %v3958 = vunpack.c.l.b16 %v3887
    %v3959 = vunpack.c.l.b16 %v3888
    %v3960 = vunpack.c.l.b16 %v3889
    %v3961 = vunpack.c.l.b16 %v3890
    %v3962 = vunpack.c.l.b16 %v3891
    %v3963 = vpack.c.b16 %v3932, %v3931
    %v3964 = vpack.c.b16 %v3934, %v3933
    %v3965 = vpack.c.b16 %v3936, %v3935
    %v3966 = vpack.c.b16 %v3938, %v3937
    %v3967 = vpack.c.b16 %v3940, %v3939
    %v3968 = vpack.c.b16 %v3942, %v3941
    %v3969 = vpack.c.b16 %v3944, %v3943
    %v3970 = vpack.c.b16 %v3946, %v3945
    %v3971 = vpack.c.b16 %v3948, %v3947
    %v3972 = vpack.c.b16 %v3950, %v3949
    %v3973 = vpack.c.b16 %v3952, %v3951
    %v3974 = vpack.c.b16 %v3954, %v3953
    %v3975 = vpack.c.b16 %v3956, %v3955
    %v3976 = vpack.c.b16 %v3958, %v3957
    %v3977 = vpack.c.b16 %v3960, %v3959
    %v3978 = vpack.c.b16 %v3962, %v3961
    %3995 = vmatprep.subr.bf16.mxu0 0
    %3996 = vmatpush1.bf16.msra.mxu0 %v3970
    %3997 = vmatprep.subr.bf16.mxu0 0
    %3998 = vmatpush1.bf16.msra.mxu0 %v3969
    %3999 = vmatprep.subr.bf16.mxu0 0
    %4000 = vmatpush1.bf16.msra.mxu0 %v3968
    %4001 = vmatprep.subr.bf16.mxu0 0
    %4002 = vmatpush1.bf16.msra.mxu0 %v3967
    %4003 = vmatprep.subr.bf16.mxu0 0
    %4004 = vmatpush1.bf16.msra.mxu0 %v3966
    %4005 = vmatprep.subr.bf16.mxu0 0
    %4006 = vmatpush1.bf16.msra.mxu0 %v3965
    %4007 = vmatprep.subr.bf16.mxu0 0
    %4008 = vmatpush1.bf16.msra.mxu0 %v3964
    %4009 = vmatprep.subr.bf16.mxu0 0
    %4010 = vmatpush1.bf16.msra.mxu0 %v3963
    %4011 = vmatprep.subr.bf16.mxu0 0
    %4012 = vmatpush2.bf16.msra.mxu0 %v3978
    %4013 = vmatprep.subr.bf16.mxu0 0
    %4014 = vmatpush2.bf16.msra.mxu0 %v3977
    %4015 = vmatprep.subr.bf16.mxu0 0
    %4016 = vmatpush2.bf16.msra.mxu0 %v3976
    %4017 = vmatprep.subr.bf16.mxu0 0
    %4018 = vmatpush2.bf16.msra.mxu0 %v3975
    %4019 = vmatprep.subr.bf16.mxu0 0
    %4020 = vmatpush2.bf16.msra.mxu0 %v3974
    %4021 = vmatprep.subr.bf16.mxu0 0
    %4022 = vmatpush2.bf16.msra.mxu0 %v3973
    %4023 = vmatprep.subr.bf16.mxu0 0
    %4024 = vmatpush2.bf16.msra.mxu0 %v3972
    %4025 = vmatprep.subr.bf16.mxu0 0
    %4026 = vmatpush2.bf16.msra.mxu0 %v3971
    %4027 = vmatprep.mubr.bf16.mxu0 %v3859
    %4028 = vmatmul.mubr.bf16.gmra.mxu0 %v3858
    %v4029 = vpop.f32.mrf.mxu0
    %v4030 = vadd.f32 %v3897, %v4029
    %v4031 = vpop.f32.mrf.mxu0
    %v4032 = vpop.f32.mrf.mxu0
    %v4033 = vpop.f32.mrf.mxu0
    %4034 = vdwg.mxu0
    %v4035 = vmax.f32 %v4030, 0.0
    %v4036 = vld [vmem:[%s13] sm:$0x1]
    %v4038 = vlaneseq
    %v4039 = vshrl.u32 %v4038, 7
    %v4040 = vsub.s32 0, %v4039
    %v4041 = vrot.slane %v4036, %v4040
    %v4043 = vmul.f32 %v4035, %v4041
    %v4044 = vld [vmem:[%s14] sm:$0x1]
    %v4046 = vlaneseq
    %v4047 = vshrl.u32 %v4046, 7
    %v4048 = vsub.s32 0, %v4047
    %v4049 = vrot.slane %v4044, %v4048
    %v4051 = vadd.f32 %v4043, %v4049
    %v4052 = vpack.c.bf16 %v4051, %v4051
    %v4053 = vld [vmem:[#allocation12] sm:$0xf]
    %v4054 = vld [vmem:[#allocation12 + $0x4] sm:$0xf]
    %v4055 = vld [vmem:[#allocation12 + $0x8] sm:$0xf]
    %v4056 = vld [vmem:[#allocation12 + $0xc] sm:$0xf]
    %v4057 = vld [vmem:[#allocation12 + $0x10] sm:$0xf]
    %v4058 = vld [vmem:[#allocation12 + $0x14] sm:$0xf]
    %v4059 = vld [vmem:[#allocation12 + $0x18] sm:$0xf]
    %v4060 = vld [vmem:[#allocation12 + $0x1c] sm:$0xf]
    %v4061 = vld [vmem:[#allocation12 + $0x20] sm:$0xf]
    %v4062 = vld [vmem:[#allocation12 + $0x24] sm:$0xf]
    %v4063 = vld [vmem:[#allocation12 + $0x28] sm:$0xf]
    %v4064 = vld [vmem:[#allocation12 + $0x2c] sm:$0xf]
    %v4065 = vld [vmem:[#allocation12 + $0x30] sm:$0xf]
    %v4066 = vld [vmem:[#allocation12 + $0x34] sm:$0xf]
    %v4067 = vld [vmem:[#allocation12 + $0x38] sm:$0xf]
    %v4068 = vld [vmem:[#allocation12 + $0x3c] sm:$0xf]
    %v4069 = vld [vmem:[%s16] sm:$0x1]
    %v4071 = vlaneseq
    %v4072 = vshrl.u32 %v4071, 7
    %v4073 = vsub.s32 0, %v4072
    %v4074 = vrot.slane %v4069, %v4073
    %v4092 = vunpack.c.l.b16 %v4053
    %v4093 = vunpack.c.l.b16 %v4054
    %v4094 = vunpack.c.l.b16 %v4055
    %v4095 = vunpack.c.l.b16 %v4056
    %v4096 = vunpack.c.l.b16 %v4057
    %v4097 = vunpack.c.l.b16 %v4058
    %v4098 = vunpack.c.l.b16 %v4059
    %v4099 = vunpack.c.l.b16 %v4060
    %v4100 = vunpack.c.l.b16 %v4061
    %v4101 = vunpack.c.l.b16 %v4062
    %v4102 = vunpack.c.l.b16 %v4063
    %v4103 = vunpack.c.l.b16 %v4064
    %v4104 = vunpack.c.l.b16 %v4065
    %v4105 = vunpack.c.l.b16 %v4066
    %v4106 = vunpack.c.l.b16 %v4067
    %v4107 = vunpack.c.l.b16 %v4068
    %v4108 = vpack.c.b16 %v4093, %v4092
    %v4109 = vpack.c.b16 %v4095, %v4094
    %v4110 = vpack.c.b16 %v4097, %v4096
    %v4111 = vpack.c.b16 %v4099, %v4098
    %v4112 = vpack.c.b16 %v4101, %v4100
    %v4113 = vpack.c.b16 %v4103, %v4102
    %v4114 = vpack.c.b16 %v4105, %v4104
    %v4115 = vpack.c.b16 %v4107, %v4106
    %4124 = vmatprep.subr.bf16.mxu0 0
    %4125 = vmatpush1.bf16.msra.mxu0 %v4115
    %4126 = vmatprep.subr.bf16.mxu0 0
    %4127 = vmatpush1.bf16.msra.mxu0 %v4114
    %4128 = vmatprep.subr.bf16.mxu0 0
    %4129 = vmatpush1.bf16.msra.mxu0 %v4113
    %4130 = vmatprep.subr.bf16.mxu0 0
    %4131 = vmatpush1.bf16.msra.mxu0 %v4112
    %4132 = vmatprep.subr.bf16.mxu0 0
    %4133 = vmatpush1.bf16.msra.mxu0 %v4111
    %4134 = vmatprep.subr.bf16.mxu0 0
    %4135 = vmatpush1.bf16.msra.mxu0 %v4110
    %4136 = vmatprep.subr.bf16.mxu0 0
    %4137 = vmatpush1.bf16.msra.mxu0 %v4109
    %4138 = vmatprep.subr.bf16.mxu0 0
    %4139 = vmatpush1.bf16.msra.mxu0 %v4108
    %4140 = vmatprep.subr.bf16.mxu0 0
    %4141 = vmatpush2.bf16.msra.mxu0 0
    %4142 = vmatprep.subr.bf16.mxu0 0
    %4143 = vmatpush2.bf16.msra.mxu0 0
    %4144 = vmatprep.subr.bf16.mxu0 0
    %4145 = vmatpush2.bf16.msra.mxu0 0
    %4146 = vmatprep.subr.bf16.mxu0 0
    %4147 = vmatpush2.bf16.msra.mxu0 0
    %4148 = vmatprep.subr.bf16.mxu0 0
    %4149 = vmatpush2.bf16.msra.mxu0 0
    %4150 = vmatprep.subr.bf16.mxu0 0
    %4151 = vmatpush2.bf16.msra.mxu0 0
    %4152 = vmatprep.subr.bf16.mxu0 0
    %4153 = vmatpush2.bf16.msra.mxu0 0
    %4154 = vmatprep.subr.bf16.mxu0 0
    %4155 = vmatpush2.bf16.msra.mxu0 0
    %4156 = vmatprep.mubr.bf16.mxu0 0
    %4157 = vmatmul.mubr.bf16.gmra.mxu0 %v4052
    %v4158 = vpop.f32.mrf.mxu0
    %v4159 = vadd.f32 %v4074, %v4158
    %v4160 = vpop.f32.mrf.mxu0
    %v4161 = vpop.f32.mrf.mxu0
    %v4162 = vpop.f32.mrf.mxu0
    %4163 = vdwg.mxu0
    %4164 = vst [vmem:[#allocation14] sm:$0x3] %v4159
    // Predicated region
    $region86: #{esim_forward.1} parent=1 // pred_check
      _
    $region87: #{esim_forward.1} parent=1 // pred_check_branch
      %4166 = sbr.rel (0) target = $region89
    $region88: #{esim_forward.1} parent=1 // pred_region
      %s4168 = ssub.s32 32, 32
      %4169 = vsyncadd [#allocation8], %s4168
      %s4171 = sshll.u32 [#allocation14], 4
      %s4172 = int_to_ptr.vmem [resolvable:$true] %s4171
      %4174 = dma.vmem_to_hbm [thread:$0]  %s4172, 32, %s17, [#allocation8]
    $region89: #{esim_forward.1} parent=1 // pred_fallthru
      _
    // Predicated region
    $region90: #{esim_forward.1} parent=1 // pred_check
      _
    $region91: #{esim_forward.1} parent=1 // pred_check_branch
      %4176 = sbr.rel (0) target = $region93
    $region92: #{esim_forward.1} parent=1 // pred_region
      %4177 = dma.done [#allocation8], 32
    $region93: #{esim_forward.1} parent=1 // pred_fallthru
      _
    %4178 = vsyncpa [#allocation7], 1
    %4179 = vsyncpa [#allocation10], 1
    %4180 = vsyncpa [#allocation13], 1
    %4181 = vsyncpa [#allocation8], 1

</llo_original>
